<compile_context>
chip_gen: v6e
topology: v6e:2x2x1
jax: 0.10.0
libtpu: 0.0.40
codegen_flags: <defaults>
</compile_context>

<pallas_src>
import functools

import numpy as np
import jax
import jax.numpy as jnp
from jax import lax
from jax.experimental import pallas as pl
from jax.experimental.pallas import tpu as pltpu


def _bump_kernel(x_ref, coef_ref, lohi_ref, m_ref, y_ref, hit_ref, *,
                 d_in, km, n_sub, nbc, sub, unroll_static):
    """Grid = (sample tiles, bump chunks); bump chunks are the reduction axis.

    x_ref    : (n_sub, K, SUB)   per sub-chunk rows: [xs^2 (d_in); xs (d_in); 1; x_raw (d_in)]
    coef_ref : (NBC, KM)         per-bump quadratic coefficients, KM = 2*d_in + 1
    lohi_ref : (NBC, 2*d_in)     support box bounds [lo | hi], bumps on sublanes
    m_ref    : (1, 1, NBC)       magnitudes, bumps on lanes
    y_ref    : (n_sub, 1, SUB)   lane-dense output rows (accumulated over bump chunks)
    hit_ref  : (1, 1, 1, NBC)    lane-dense per-bump "any sample inside" indicator
    """
    j = pl.program_id(1)

    # y accumulates across the bump-chunk (reduction) grid axis.
    @pl.when(j == 0)
    def _():
        y_ref[...] = jnp.zeros_like(y_ref)

    coef = coef_ref[...]          # (NBC, KM)      bumps on sublanes
    lohi = lohi_ref[...]          # (NBC, 2*d_in)  bumps on sublanes
    m_row = m_ref[0]              # (1, NBC)       bumps on lanes

    def step(s, any_acc):
        xb = x_ref[s]                                    # (K, SUB)
        x_mm = xb[:km, :]                                # (KM, SUB): [xs^2; xs; 1]

        # sq[b, s] = sum_d ((x[s,d]-c[b,d])/w[b,d])^2, expanded quadratic on MXU.
        sq = jnp.dot(coef, x_mm,
                     preferred_element_type=jnp.float32,
                     precision=lax.Precision.HIGHEST)    # (NBC, SUB)

        # Strict torch support box: all_d (x > lo) & (x < hi), raw coordinates.
        xr = xb[km:km + 1, :]                            # (1, SUB)
        ok = (xr > lohi[:, 0:1]) & (xr < lohi[:, d_in:d_in + 1])
        for d in range(1, d_in):
            xr = xb[km + d:km + d + 1, :]
            ok = ok & (xr > lohi[:, d:d + 1]) & (xr < lohi[:, d_in + d:d_in + d + 1])

        val = jnp.where(ok, jnp.exp(-sq), 0.0)           # (NBC, SUB)  EUP exp + select

        # Bump-axis reduction on the MXU: (1, NBC) @ (NBC, SUB) -> (1, SUB).
        y_row = jnp.dot(m_row, val,
                        preferred_element_type=jnp.float32,
                        precision=lax.Precision.HIGHEST)
        y_ref[s] = y_ref[s] + y_row                      # unmasked 128-lane store
        return any_acc | ok

    any0 = jnp.zeros((nbc, sub), dtype=jnp.bool_)
    if unroll_static:
        any_acc = any0
        for s in range(n_sub):
            any_acc = step(s, any_acc)
    else:
        # Bounds code size / live ranges for large sample tiles.
        any_acc = lax.fori_loop(0, n_sub, step, any0)

    # One lane-dense hit row per (tile, chunk): single cast + transpose (XLU has
    # slack), instead of a masked width-1 column store.
    hits_t = jnp.transpose(any_acc.astype(jnp.float32))      # (SUB, NBC)
    hit_ref[0, 0] = jnp.max(hits_t, axis=0, keepdims=True)   # (1, NBC)


def slow_sum_of_bump_fcns(x, c, w, m, support_p=0.01, *,
                          max_tile=4096, bump_chunk=64,
                          core_parallel=False, interpret=False):
    """Forward pass of SlowSumOfBumpFcns.

    x: (n_smps, d_in) float32
    c: (d_in, n_bumps) centers (each column is a bump center)
    w: (d_in, n_bumps) widths (assumed > 0, as the torch module assumes)
    m: (n_bumps,)      magnitudes
    """
    x = jnp.asarray(x, jnp.float32)
    c = jnp.asarray(c, jnp.float32)
    w = jnp.asarray(w, jnp.float32)
    m = jnp.asarray(m, jnp.float32)

    n_smps, d_in = x.shape
    n_bumps = c.shape[1]
    k = np.float32(np.sqrt(-np.log(support_p)))

    SUB = 128                       # samples per lane sub-chunk
    NBC = int(bump_chunk)           # bumps per chunk; 64 keeps (NBC, SUB) f32
                                    # intermediates within the vreg budget
    nbp = -(-n_bumps // NBC) * NBC
    n_bc = nbp // NBC

    # Sample tiling: one grid step handles up to max_tile samples.
    if n_smps <= max_tile:
        nsp = -(-n_smps // SUB) * SUB
        ts = nsp
    else:
        ts = max_tile
        nsp = -(-n_smps // ts) * ts
    n_tiles = nsp // ts
    n_sub = ts // SUB

    # ---- bump-side parameters (streamed per chunk via the grid) ------------
    # Strict torch support box (same f32 op order as the torch module).
    lo = (-k) * w + c               # (d_in, n_bumps)
    hi = k * w + c
    # Padded bumps get an empty box (hi < lo) and zero magnitude / coefficients.
    lohi = jnp.concatenate(
        [jnp.ones((nbp, d_in), jnp.float32).at[:n_bumps].set(lo.T),
         jnp.zeros((nbp, d_in), jnp.float32).at[:n_bumps].set(hi.T)], axis=1)

    # Centered coordinates keep the expanded quadratic (MXU path) well
    # conditioned regardless of where the data lives.
    x0 = 0.5 * (jnp.min(x, axis=0) + jnp.max(x, axis=0))      # (d_in,)
    cs = c - x0[:, None]
    winv2 = 1.0 / (w * w)
    km = 2 * d_in + 1
    coef = jnp.zeros((nbp, km), jnp.float32)
    coef = coef.at[:n_bumps, 0:d_in].set(winv2.T)                         # * xs^2
    coef = coef.at[:n_bumps, d_in:2 * d_in].set((-2.0 * cs * winv2).T)    # * xs
    coef = coef.at[:n_bumps, 2 * d_in].set(jnp.sum(cs * cs * winv2, axis=0))

    m_pad = jnp.zeros((nbp,), jnp.float32).at[:n_bumps].set(m)
    m3 = m_pad.reshape(n_bc, 1, NBC)                     # bumps on lanes

    # ---- sample-side stacked rows ------------------------------------------
    # Padded samples sit strictly outside every real bump's box -> contribute
    # nothing and never register as a hit; finite pad keeps everything finite.
    pad_val = jnp.max(hi) + 1.0
    xt_raw = jnp.full((d_in, nsp), pad_val, jnp.float32).at[:, :n_smps].set(x.T)
    xs_t = xt_raw - x0[:, None]
    K = 3 * d_in + 1
    x_ext = jnp.concatenate(
        [xs_t * xs_t, xs_t, jnp.ones((1, nsp), jnp.float32), xt_raw], axis=0)
    x_ext = x_ext.reshape(K, n_tiles * n_sub, SUB).transpose(1, 0, 2)

    kernel = functools.partial(
        _bump_kernel, d_in=d_in, km=km, n_sub=n_sub, nbc=NBC, sub=SUB,
        unroll_static=(n_sub <= 8))

    if core_parallel:
        # v7x: split the independent sample-tile axis across both TensorCores.
        sem0 = pltpu.CORE_PARALLEL
    else:
        sem0 = "parallel"

    y3, hits4 = pl.pallas_call(
        kernel,
        out_shape=(
            jax.ShapeDtypeStruct((n_tiles * n_sub, 1, SUB), jnp.float32),
            jax.ShapeDtypeStruct((n_tiles, n_bc, 1, NBC), jnp.float32),
        ),
        grid=(n_tiles, n_bc),
        in_specs=[
            pl.BlockSpec((n_sub, K, SUB), lambda i, j: (i, 0, 0)),    # samples
            pl.BlockSpec((NBC, km), lambda i, j: (j, 0)),             # quad. coefs
            pl.BlockSpec((NBC, 2 * d_in), lambda i, j: (j, 0)),       # box bounds
            pl.BlockSpec((1, 1, NBC), lambda i, j: (j, 0, 0)),        # magnitudes
        ],
        out_specs=(
            pl.BlockSpec((n_sub, 1, SUB), lambda i, j: (i, 0, 0)),    # y (acc over j)
            pl.BlockSpec((1, 1, 1, NBC), lambda i, j: (i, j, 0, 0)),  # hit indicators
        ),
        compiler_params=pltpu.CompilerParams(
            dimension_semantics=(sem0, "arbitrary"),
            vmem_limit_bytes=32 * 1024 * 1024),
        interpret=interpret,
    )(x_ext, coef, lohi, m3)

    y = y3.reshape(nsp)[:n_smps]
    hit = jnp.max(hits4, axis=0).reshape(nbp)[:n_bumps]   # > 0 iff any sample inside

    # Torch edge case: a bump whose support contains no sample still adds its
    # value at x[0] to y[0] (BumpFcn.calc_pts defaults to [0]).
    t0 = (x[0][:, None] - c) / w
    v0 = m * jnp.exp(-jnp.sum(t0 * t0, axis=0))
    y = y.at[0].add(jnp.sum(jnp.where(hit == 0.0, v0, 0.0)))
    return y


def _reference_forward(x, c, w, m, support_p=0.01):
    """Plain-numpy transcription of the torch module (float32)."""
    x = np.asarray(x, np.float32)
    c = np.asarray(c, np.float32)
    w = np.asarray(w, np.float32)
    m = np.asarray(m, np.float32)
    k = np.float32(np.sqrt(-np.log(support_p)))
    n_smps = x.shape[0]
    y = np.zeros(n_smps, dtype=np.float32)
    for b in range(c.shape[1]):
        cb, wb, mb = c[:, b], w[:, b], m[b]
        min_b = -k * wb + cb
        max_b = k * wb + cb
        inside = np.all((x > min_b) & (x < max_b), axis=1)
        idx = np.nonzero(inside)[0]
        if idx.size == 0:
            idx = np.array([0], dtype=np.int64)
        yb = np.zeros(n_smps, dtype=np.float32)
        yb[idx] = mb * np.exp(-np.sum(((x[idx] - cb) / wb) ** 2, axis=1))
        y += yb
    return y


if __name__ == "__main__":
    key = jax.random.PRNGKey(0)
    n_smps, d_in, n_bumps = 200, 4, 20

    k_x, k_c, k_w, k_m = jax.random.split(key, 4)
    x = jax.random.uniform(k_x, (n_smps, d_in), jnp.float32)
    c = jax.random.uniform(k_c, (d_in, n_bumps), jnp.float32)
    w = 0.1 + 0.3 * jax.random.uniform(k_w, (d_in, n_bumps), jnp.float32)
    m = 0.5 + jax.random.uniform(k_m, (n_bumps,), jnp.float32)

    # One bump whose support contains no sample, to exercise the
    # calc_pts-defaults-to-[0] edge case of the torch forward.
    c = jnp.concatenate([c, jnp.full((d_in, 1), 10.0, jnp.float32)], axis=1)
    w = jnp.concatenate([w, jnp.full((d_in, 1), 0.2, jnp.float32)], axis=1)
    m = jnp.concatenate([m, jnp.asarray([2.0], jnp.float32)])

    y = slow_sum_of_bump_fcns(x, c, w, m, support_p=0.01)
    y = jax.block_until_ready(y)

    y_ref = _reference_forward(np.asarray(x), np.asarray(c), np.asarray(w),
                               np.asarray(m), support_p=0.01)
    # The expanded-quadratic (MXU) form of sum(((x-c)/w)^2) rounds slightly
    # differently than the factored per-dim form (see the perf review's
    # correctness note); HIGHEST-precision matmuls + centered coordinates keep
    # the error comfortably below this tolerance.
    np.testing.assert_allclose(np.asarray(y), y_ref, rtol=2e-4, atol=2e-5)
    print("KERNEL_OK")
</pallas_src>

<mosaic_0001>
module attributes {stable_mosaic.version = 11 : i64} {
  func.func @_bump_kernel(%arg0: i32, %arg1: i32, %arg2: memref<2x13x128xf32, #tpu.memory_space<vmem>>, %arg3: memref<64x9xf32, #tpu.memory_space<vmem>>, %arg4: memref<64x8xf32, #tpu.memory_space<vmem>>, %arg5: memref<1x1x64xf32, #tpu.memory_space<vmem>>, %arg6: memref<2x1x128xf32, #tpu.memory_space<vmem>>, %arg7: memref<1x1x1x64xf32, #tpu.memory_space<vmem>>) attributes {dimension_semantics = [#tpu.dimension_semantics<parallel>, #tpu.dimension_semantics<arbitrary>], iteration_bounds = array<i64: 1, 1>, scalar_prefetch = 0 : i64, scratch_operands = 0 : i64, tpu.core_type = #tpu.core_type<tc>, window_params = [{transform_indices = @transform_0, window_bounds = array<i64: 2, 13, 128>}, {transform_indices = @transform_1, window_bounds = array<i64: 64, 9>}, {transform_indices = @transform_2, window_bounds = array<i64: 64, 8>}, {transform_indices = @transform_3, window_bounds = array<i64: 1, 1, 64>}, {transform_indices = @transform_4, window_bounds = array<i64: 2, 1, 128>}, {transform_indices = @transform_5, window_bounds = array<i64: 1, 1, 1, 64>}]} {
    %c0_i32 = arith.constant 0 : i32
    %0 = arith.cmpi eq, %arg1, %c0_i32 : i32
    %1 = arith.extui %0 : i1 to i32
    %c0_i32_0 = arith.constant 0 : i32
    %2 = arith.cmpi ne, %1, %c0_i32_0 : i32
    scf.if %2 {
      %cst_36 = arith.constant 0.000000e+00 : f32
      %136 = vector.broadcast %cst_36 : f32 to vector<2x1x128xf32>
      %c0_37 = arith.constant 0 : index
      %c0_38 = arith.constant 0 : index
      %c0_39 = arith.constant 0 : index
      %137 = vector.load %arg6[%c0_37, %c0_38, %c0_39] : memref<2x1x128xf32, #tpu.memory_space<vmem>>, vector<2x1x128xf32>
      tpu.vector_store %arg6[%c0_37, %c0_38, %c0_39], %136 {strides = array<i32>} : memref<2x1x128xf32, #tpu.memory_space<vmem>>, vector<2x1x128xf32>,
    } else {
    }
    %c0 = arith.constant 0 : index
    %c0_1 = arith.constant 0 : index
    %3 = vector.load %arg3[%c0, %c0_1] : memref<64x9xf32, #tpu.memory_space<vmem>>, vector<64x9xf32>
    %c0_2 = arith.constant 0 : index
    %c0_3 = arith.constant 0 : index
    %4 = vector.load %arg4[%c0_2, %c0_3] : memref<64x8xf32, #tpu.memory_space<vmem>>, vector<64x8xf32>
    %c0_4 = arith.constant 0 : index
    %c0_5 = arith.constant 0 : index
    %c0_6 = arith.constant 0 : index
    %5 = vector.load %arg5[%c0_4, %c0_5, %c0_6] : memref<1x1x64xf32, #tpu.memory_space<vmem>>, vector<1x1x64xf32>
    %6 = vector.shape_cast %5 : vector<1x1x64xf32> to vector<1x64xf32>
    %false = arith.constant false
    %7 = vector.broadcast %false : i1 to vector<64x128xi1>
    %c0_7 = arith.constant 0 : index
    %c0_8 = arith.constant 0 : index
    %c0_9 = arith.constant 0 : index
    %8 = vector.load %arg2[%c0_7, %c0_8, %c0_9] : memref<2x13x128xf32, #tpu.memory_space<vmem>>, vector<1x13x128xf32>
    %9 = vector.shape_cast %8 : vector<1x13x128xf32> to vector<13x128xf32>
    %10 = vector.extract_strided_slice %9 {offsets = [0, 0], sizes = [9, 128], strides = [1, 1]} : vector<13x128xf32> to vector<9x128xf32>
    %cst = arith.constant dense<0.000000e+00> : vector<64x128xf32>
    %11 = tpu.matmul %3, %10, %cst {dimension_numbers = #tpu.dot_dimension_numbers<[1], [0], [0], [1], [0, 0, 1, 1], [], []>, precision = #tpu.contract_precision<fp32>} : vector<64x9xf32>, vector<9x128xf32>, vector<64x128xf32> -> vector<64x128xf32>
    %12 = vector.extract_strided_slice %9 {offsets = [9, 0], sizes = [1, 128], strides = [1, 1]} : vector<13x128xf32> to vector<1x128xf32>
    %13 = vector.extract_strided_slice %4 {offsets = [0, 0], sizes = [64, 1], strides = [1, 1]} : vector<64x8xf32> to vector<64x1xf32>
    %14 = vector.broadcast %12 : vector<1x128xf32> to vector<64x128xf32>
    %15 = vector.broadcast %13 : vector<64x1xf32> to vector<64x128xf32>
    %16 = arith.cmpf ogt, %14, %15 : vector<64x128xf32>
    %17 = vector.extract_strided_slice %4 {offsets = [0, 4], sizes = [64, 1], strides = [1, 1]} : vector<64x8xf32> to vector<64x1xf32>
    %18 = vector.broadcast %12 : vector<1x128xf32> to vector<64x128xf32>
    %19 = vector.broadcast %17 : vector<64x1xf32> to vector<64x128xf32>
    %20 = arith.cmpf olt, %18, %19 : vector<64x128xf32>
    %21 = arith.andi %16, %20 : vector<64x128xi1>
    %22 = vector.extract_strided_slice %9 {offsets = [10, 0], sizes = [1, 128], strides = [1, 1]} : vector<13x128xf32> to vector<1x128xf32>
    %23 = vector.extract_strided_slice %4 {offsets = [0, 1], sizes = [64, 1], strides = [1, 1]} : vector<64x8xf32> to vector<64x1xf32>
    %24 = vector.broadcast %22 : vector<1x128xf32> to vector<64x128xf32>
    %25 = vector.broadcast %23 : vector<64x1xf32> to vector<64x128xf32>
    %26 = arith.cmpf ogt, %24, %25 : vector<64x128xf32>
    %27 = arith.andi %21, %26 : vector<64x128xi1>
    %28 = vector.extract_strided_slice %4 {offsets = [0, 5], sizes = [64, 1], strides = [1, 1]} : vector<64x8xf32> to vector<64x1xf32>
    %29 = vector.broadcast %22 : vector<1x128xf32> to vector<64x128xf32>
    %30 = vector.broadcast %28 : vector<64x1xf32> to vector<64x128xf32>
    %31 = arith.cmpf olt, %29, %30 : vector<64x128xf32>
    %32 = arith.andi %27, %31 : vector<64x128xi1>
    %33 = vector.extract_strided_slice %9 {offsets = [11, 0], sizes = [1, 128], strides = [1, 1]} : vector<13x128xf32> to vector<1x128xf32>
    %34 = vector.extract_strided_slice %4 {offsets = [0, 2], sizes = [64, 1], strides = [1, 1]} : vector<64x8xf32> to vector<64x1xf32>
    %35 = vector.broadcast %33 : vector<1x128xf32> to vector<64x128xf32>
    %36 = vector.broadcast %34 : vector<64x1xf32> to vector<64x128xf32>
    %37 = arith.cmpf ogt, %35, %36 : vector<64x128xf32>
    %38 = arith.andi %32, %37 : vector<64x128xi1>
    %39 = vector.extract_strided_slice %4 {offsets = [0, 6], sizes = [64, 1], strides = [1, 1]} : vector<64x8xf32> to vector<64x1xf32>
    %40 = vector.broadcast %33 : vector<1x128xf32> to vector<64x128xf32>
    %41 = vector.broadcast %39 : vector<64x1xf32> to vector<64x128xf32>
    %42 = arith.cmpf olt, %40, %41 : vector<64x128xf32>
    %43 = arith.andi %38, %42 : vector<64x128xi1>
    %44 = vector.extract_strided_slice %9 {offsets = [12, 0], sizes = [1, 128], strides = [1, 1]} : vector<13x128xf32> to vector<1x128xf32>
    %45 = vector.extract_strided_slice %4 {offsets = [0, 3], sizes = [64, 1], strides = [1, 1]} : vector<64x8xf32> to vector<64x1xf32>
    %46 = vector.broadcast %44 : vector<1x128xf32> to vector<64x128xf32>
    %47 = vector.broadcast %45 : vector<64x1xf32> to vector<64x128xf32>
    %48 = arith.cmpf ogt, %46, %47 : vector<64x128xf32>
    %49 = arith.andi %43, %48 : vector<64x128xi1>
    %50 = vector.extract_strided_slice %4 {offsets = [0, 7], sizes = [64, 1], strides = [1, 1]} : vector<64x8xf32> to vector<64x1xf32>
    %51 = vector.broadcast %44 : vector<1x128xf32> to vector<64x128xf32>
    %52 = vector.broadcast %50 : vector<64x1xf32> to vector<64x128xf32>
    %53 = arith.cmpf olt, %51, %52 : vector<64x128xf32>
    %54 = arith.andi %49, %53 : vector<64x128xi1>
    %cst_10 = arith.constant 0.000000e+00 : f32
    %55 = vector.broadcast %cst_10 : f32 to vector<64x128xf32>
    %56 = arith.subf %55, %11 : vector<64x128xf32>
    %57 = math.exp %56 : vector<64x128xf32>
    %cst_11 = arith.constant 0.000000e+00 : f32
    %58 = vector.broadcast %cst_11 : f32 to vector<64x128xf32>
    %59 = arith.select %54, %57, %58 : vector<64x128xi1>, vector<64x128xf32>
    %cst_12 = arith.constant dense<0.000000e+00> : vector<1x128xf32>
    %60 = tpu.matmul %6, %59, %cst_12 {dimension_numbers = #tpu.dot_dimension_numbers<[1], [0], [0], [1], [0, 0, 1, 1], [], []>, precision = #tpu.contract_precision<fp32>} : vector<1x64xf32>, vector<64x128xf32>, vector<1x128xf32> -> vector<1x128xf32>
    %c0_13 = arith.constant 0 : index
    %c0_14 = arith.constant 0 : index
    %c0_15 = arith.constant 0 : index
    %61 = vector.load %arg6[%c0_13, %c0_14, %c0_15] : memref<2x1x128xf32, #tpu.memory_space<vmem>>, vector<1x1x128xf32>
    %62 = vector.shape_cast %61 : vector<1x1x128xf32> to vector<1x128xf32>
    %63 = arith.addf %62, %60 : vector<1x128xf32>
    %c0_16 = arith.constant 0 : index
    %c0_17 = arith.constant 0 : index
    %c0_18 = arith.constant 0 : index
    %64 = vector.load %arg6[%c0_16, %c0_17, %c0_18] : memref<2x1x128xf32, #tpu.memory_space<vmem>>, vector<1x1x128xf32>
    %65 = vector.shape_cast %64 : vector<1x1x128xf32> to vector<1x128xf32>
    %66 = vector.shape_cast %63 : vector<1x128xf32> to vector<1x1x128xf32>
    tpu.vector_store %arg6[%c0_16, %c0_17, %c0_18], %66 {strides = array<i32>} : memref<2x1x128xf32, #tpu.memory_space<vmem>>, vector<1x1x128xf32>,
    %67 = arith.ori %7, %54 : vector<64x128xi1>
    %c1 = arith.constant 1 : index
    %c0_19 = arith.constant 0 : index
    %c0_20 = arith.constant 0 : index
    %68 = vector.load %arg2[%c1, %c0_19, %c0_20] : memref<2x13x128xf32, #tpu.memory_space<vmem>>, vector<1x13x128xf32>
    %69 = vector.shape_cast %68 : vector<1x13x128xf32> to vector<13x128xf32>
    %70 = vector.extract_strided_slice %69 {offsets = [0, 0], sizes = [9, 128], strides = [1, 1]} : vector<13x128xf32> to vector<9x128xf32>
    %cst_21 = arith.constant dense<0.000000e+00> : vector<64x128xf32>
    %71 = tpu.matmul %3, %70, %cst_21 {dimension_numbers = #tpu.dot_dimension_numbers<[1], [0], [0], [1], [0, 0, 1, 1], [], []>, precision = #tpu.contract_precision<fp32>} : vector<64x9xf32>, vector<9x128xf32>, vector<64x128xf32> -> vector<64x128xf32>
    %72 = vector.extract_strided_slice %69 {offsets = [9, 0], sizes = [1, 128], strides = [1, 1]} : vector<13x128xf32> to vector<1x128xf32>
    %73 = vector.extract_strided_slice %4 {offsets = [0, 0], sizes = [64, 1], strides = [1, 1]} : vector<64x8xf32> to vector<64x1xf32>
    %74 = vector.broadcast %72 : vector<1x128xf32> to vector<64x128xf32>
    %75 = vector.broadcast %73 : vector<64x1xf32> to vector<64x128xf32>
    %76 = arith.cmpf ogt, %74, %75 : vector<64x128xf32>
    %77 = vector.extract_strided_slice %4 {offsets = [0, 4], sizes = [64, 1], strides = [1, 1]} : vector<64x8xf32> to vector<64x1xf32>
    %78 = vector.broadcast %72 : vector<1x128xf32> to vector<64x128xf32>
    %79 = vector.broadcast %77 : vector<64x1xf32> to vector<64x128xf32>
    %80 = arith.cmpf olt, %78, %79 : vector<64x128xf32>
    %81 = arith.andi %76, %80 : vector<64x128xi1>
    %82 = vector.extract_strided_slice %69 {offsets = [10, 0], sizes = [1, 128], strides = [1, 1]} : vector<13x128xf32> to vector<1x128xf32>
    %83 = vector.extract_strided_slice %4 {offsets = [0, 1], sizes = [64, 1], strides = [1, 1]} : vector<64x8xf32> to vector<64x1xf32>
    %84 = vector.broadcast %82 : vector<1x128xf32> to vector<64x128xf32>
    %85 = vector.broadcast %83 : vector<64x1xf32> to vector<64x128xf32>
    %86 = arith.cmpf ogt, %84, %85 : vector<64x128xf32>
    %87 = arith.andi %81, %86 : vector<64x128xi1>
    %88 = vector.extract_strided_slice %4 {offsets = [0, 5], sizes = [64, 1], strides = [1, 1]} : vector<64x8xf32> to vector<64x1xf32>
    %89 = vector.broadcast %82 : vector<1x128xf32> to vector<64x128xf32>
    %90 = vector.broadcast %88 : vector<64x1xf32> to vector<64x128xf32>
    %91 = arith.cmpf olt, %89, %90 : vector<64x128xf32>
    %92 = arith.andi %87, %91 : vector<64x128xi1>
    %93 = vector.extract_strided_slice %69 {offsets = [11, 0], sizes = [1, 128], strides = [1, 1]} : vector<13x128xf32> to vector<1x128xf32>
    %94 = vector.extract_strided_slice %4 {offsets = [0, 2], sizes = [64, 1], strides = [1, 1]} : vector<64x8xf32> to vector<64x1xf32>
    %95 = vector.broadcast %93 : vector<1x128xf32> to vector<64x128xf32>
    %96 = vector.broadcast %94 : vector<64x1xf32> to vector<64x128xf32>
    %97 = arith.cmpf ogt, %95, %96 : vector<64x128xf32>
    %98 = arith.andi %92, %97 : vector<64x128xi1>
    %99 = vector.extract_strided_slice %4 {offsets = [0, 6], sizes = [64, 1], strides = [1, 1]} : vector<64x8xf32> to vector<64x1xf32>
    %100 = vector.broadcast %93 : vector<1x128xf32> to vector<64x128xf32>
    %101 = vector.broadcast %99 : vector<64x1xf32> to vector<64x128xf32>
    %102 = arith.cmpf olt, %100, %101 : vector<64x128xf32>
    %103 = arith.andi %98, %102 : vector<64x128xi1>
    %104 = vector.extract_strided_slice %69 {offsets = [12, 0], sizes = [1, 128], strides = [1, 1]} : vector<13x128xf32> to vector<1x128xf32>
    %105 = vector.extract_strided_slice %4 {offsets = [0, 3], sizes = [64, 1], strides = [1, 1]} : vector<64x8xf32> to vector<64x1xf32>
    %106 = vector.broadcast %104 : vector<1x128xf32> to vector<64x128xf32>
    %107 = vector.broadcast %105 : vector<64x1xf32> to vector<64x128xf32>
    %108 = arith.cmpf ogt, %106, %107 : vector<64x128xf32>
    %109 = arith.andi %103, %108 : vector<64x128xi1>
    %110 = vector.extract_strided_slice %4 {offsets = [0, 7], sizes = [64, 1], strides = [1, 1]} : vector<64x8xf32> to vector<64x1xf32>
    %111 = vector.broadcast %104 : vector<1x128xf32> to vector<64x128xf32>
    %112 = vector.broadcast %110 : vector<64x1xf32> to vector<64x128xf32>
    %113 = arith.cmpf olt, %111, %112 : vector<64x128xf32>
    %114 = arith.andi %109, %113 : vector<64x128xi1>
    %cst_22 = arith.constant 0.000000e+00 : f32
    %115 = vector.broadcast %cst_22 : f32 to vector<64x128xf32>
    %116 = arith.subf %115, %71 : vector<64x128xf32>
    %117 = math.exp %116 : vector<64x128xf32>
    %cst_23 = arith.constant 0.000000e+00 : f32
    %118 = vector.broadcast %cst_23 : f32 to vector<64x128xf32>
    %119 = arith.select %114, %117, %118 : vector<64x128xi1>, vector<64x128xf32>
    %cst_24 = arith.constant dense<0.000000e+00> : vector<1x128xf32>
    %120 = tpu.matmul %6, %119, %cst_24 {dimension_numbers = #tpu.dot_dimension_numbers<[1], [0], [0], [1], [0, 0, 1, 1], [], []>, precision = #tpu.contract_precision<fp32>} : vector<1x64xf32>, vector<64x128xf32>, vector<1x128xf32> -> vector<1x128xf32>
    %c1_25 = arith.constant 1 : index
    %c0_26 = arith.constant 0 : index
    %c0_27 = arith.constant 0 : index
    %121 = vector.load %arg6[%c1_25, %c0_26, %c0_27] : memref<2x1x128xf32, #tpu.memory_space<vmem>>, vector<1x1x128xf32>
    %122 = vector.shape_cast %121 : vector<1x1x128xf32> to vector<1x128xf32>
    %123 = arith.addf %122, %120 : vector<1x128xf32>
    %c1_28 = arith.constant 1 : index
    %c0_29 = arith.constant 0 : index
    %c0_30 = arith.constant 0 : index
    %124 = vector.load %arg6[%c1_28, %c0_29, %c0_30] : memref<2x1x128xf32, #tpu.memory_space<vmem>>, vector<1x1x128xf32>
    %125 = vector.shape_cast %124 : vector<1x1x128xf32> to vector<1x128xf32>
    %126 = vector.shape_cast %123 : vector<1x128xf32> to vector<1x1x128xf32>
    tpu.vector_store %arg6[%c1_28, %c0_29, %c0_30], %126 {strides = array<i32>} : memref<2x1x128xf32, #tpu.memory_space<vmem>>, vector<1x1x128xf32>,
    %127 = arith.ori %67, %114 : vector<64x128xi1>
    %128 = arith.extui %127 : vector<64x128xi1> to vector<64x128xi32>
    %129 = arith.sitofp %128 : vector<64x128xi32> to vector<64x128xf32>
    %130 = tpu.transpose %129, [1, 0] : vector<64x128xf32> -> vector<128x64xf32>
    %cst_31 = arith.constant dense<0xFF800000> : vector<64xf32>
    %131 = vector.multi_reduction <maximumf>, %130, %cst_31 [0] : vector<128x64xf32> to vector<64xf32>
    %132 = vector.shape_cast %131 : vector<64xf32> to vector<1x64xf32>
    %c0_32 = arith.constant 0 : index
    %c0_33 = arith.constant 0 : index
    %c0_34 = arith.constant 0 : index
    %c0_35 = arith.constant 0 : index
    %133 = vector.load %arg7[%c0_32, %c0_33, %c0_34, %c0_35] : memref<1x1x1x64xf32, #tpu.memory_space<vmem>>, vector<1x1x1x64xf32>
    %134 = vector.shape_cast %133 : vector<1x1x1x64xf32> to vector<1x64xf32>
    %135 = vector.shape_cast %132 : vector<1x64xf32> to vector<1x1x1x64xf32>
    tpu.vector_store %arg7[%c0_32, %c0_33, %c0_34, %c0_35], %135 {strides = array<i32>} : memref<1x1x1x64xf32, #tpu.memory_space<vmem>>, vector<1x1x1x64xf32>,
    return
  }
  func.func @transform_0(%arg0: i32, %arg1: i32) -> (i32, i32, i32) {
    %c0_i32 = arith.constant 0 : i32
    %c0_i32_0 = arith.constant 0 : i32
    %c0_i32_1 = arith.constant 0 : i32
    return %arg0, %c0_i32, %c0_i32_0 : i32, i32, i32
  }
  func.func @transform_1(%arg0: i32, %arg1: i32) -> (i32, i32) {
    %c0_i32 = arith.constant 0 : i32
    %c0_i32_0 = arith.constant 0 : i32
    return %arg1, %c0_i32 : i32, i32
  }
  func.func @transform_2(%arg0: i32, %arg1: i32) -> (i32, i32) {
    %c0_i32 = arith.constant 0 : i32
    %c0_i32_0 = arith.constant 0 : i32
    return %arg1, %c0_i32 : i32, i32
  }
  func.func @transform_3(%arg0: i32, %arg1: i32) -> (i32, i32, i32) {
    %c0_i32 = arith.constant 0 : i32
    %c0_i32_0 = arith.constant 0 : i32
    %c0_i32_1 = arith.constant 0 : i32
    return %arg1, %c0_i32, %c0_i32_0 : i32, i32, i32
  }
  func.func @transform_4(%arg0: i32, %arg1: i32) -> (i32, i32, i32) {
    %c0_i32 = arith.constant 0 : i32
    %c0_i32_0 = arith.constant 0 : i32
    %c0_i32_1 = arith.constant 0 : i32
    return %arg0, %c0_i32, %c0_i32_0 : i32, i32, i32
  }
  func.func @transform_5(%arg0: i32, %arg1: i32) -> (i32, i32, i32, i32) {
    %c0_i32 = arith.constant 0 : i32
    %c0_i32_0 = arith.constant 0 : i32
    %c0_i32_1 = arith.constant 0 : i32
    return %arg0, %arg1, %c0_i32, %c0_i32_0 : i32, i32, i32, i32
  }
}

</mosaic_0001>

<llo_original>
// kernel: tpu_custom_call.1
$region0: #{tpu_custom_call.1}
  #allocation0 [shape = 'u32[]', space=smem, size = 0x4, offset = 0x4, fixed_abs, tag = 'smem constant byte address 0x4 - core index']
  #allocation1 [shape = 'u32[144,128]{1,0:T(1,128)}', space=vmem, size = 0x12000, scoped, tag = 'internal scratch']
  %s0 = inlined_call_operand.vmem [shape: f32[2,13,128], index: 0, kind: input, shape index: {}]
  %s1 = inlined_call_operand.vmem [shape: f32[64,9], index: 1, kind: input, shape index: {}]
  %s2 = inlined_call_operand.vmem [shape: f32[64,8], index: 2, kind: input, shape index: {}]
  %s3 = inlined_call_operand.vmem [shape: f32[1,1,64], index: 3, kind: input, shape index: {}]
  %s4 = inlined_call_operand.hbm [shape: f32[2,1,128], index: 4, kind: output, shape index: {0}]
  %s5 = inlined_call_operand.hbm [shape: f32[1,1,1,64], index: 5, kind: output, shape index: {1}]
  %6 = xla_tuple %s4, %s5
  %s7 = sld [smem:[#allocation0]]
  $region38: #{tpu_custom_call.1} parent=0
    _
  %s9 = ssub.s32 1, %s7
  %s10 = scalar_select 0, %s9, %s7
  $region1: #{tpu_custom_call.1} parent=0
    #allocation2 [shape = 'u8[1024]{0}', space=vmem, size = 0x400, scoped, tag = 'output window, operand 0, single buffered']
    #allocation3 [shape = 's32[1]{0}', space=sflag, size = 0x4, scoped, tag = 'scoped memory for tpu_custom_call.1']
    #allocation4 [shape = 'u8[512]{0}', space=vmem, size = 0x400, scoped, tag = 'output window, operand 1, single buffered']
    #allocation5 [shape = 's32[1]{0}', space=sflag, size = 0x4, scoped, tag = 'scoped memory for tpu_custom_call.1']
    %11 = vsyncpa [#allocation3], 0
    %12 = vsyncpa [#allocation5], 0
    // Predicated region
    $region2: #{tpu_custom_call.1} parent=1 // pred_check
      _
    $region3: #{tpu_custom_call.1} parent=1 // pred_check_branch
      %14 = sbr.rel (0) target = $region5
    $region4: #{tpu_custom_call.1} parent=1 // pred_region
      _
    $region5: #{tpu_custom_call.1} parent=1 // pred_fallthru
      _
    // Predicated region
    $region6: #{tpu_custom_call.1} parent=1 // pred_check
      _
    $region7: #{tpu_custom_call.1} parent=1 // pred_check_branch
      %16 = sbr.rel (0) target = $region9
    $region8: #{tpu_custom_call.1} parent=1 // pred_region
      _
    $region9: #{tpu_custom_call.1} parent=1 // pred_fallthru
      _
    // Predicated region
    $region10: #{tpu_custom_call.1} parent=1 // pred_check
      _
    $region11: #{tpu_custom_call.1} parent=1 // pred_check_branch
      %18 = sbr.rel (0) target = $region13
    $region12: #{tpu_custom_call.1} parent=1 // pred_region
      _
    $region13: #{tpu_custom_call.1} parent=1 // pred_fallthru
      _
    // Predicated region
    $region14: #{tpu_custom_call.1} parent=1 // pred_check
      _
    $region15: #{tpu_custom_call.1} parent=1 // pred_check_branch
      %20 = sbr.rel (0) target = $region17
    $region16: #{tpu_custom_call.1} parent=1 // pred_region
      _
    $region17: #{tpu_custom_call.1} parent=1 // pred_fallthru
      _
    %p21 = scmp.eq.s32.totalorder 0, 0
    // Predicated region
    $region18: #{tpu_custom_call.1} parent=1 // pred_check
      %p22 = pneg %p21
    $region19: #{tpu_custom_call.1} parent=1 // pred_check_branch
      %24 = sbr.rel (%p22) target = $region21
    $region20: #{tpu_custom_call.1} parent=1 // pred_region
      %25 = vst [vmem:[#allocation2] sm:$0x1] 0.0
      %26 = vst [vmem:[#allocation2 + $0x1] sm:$0x1] 0.0
    $region21: #{tpu_custom_call.1} parent=1 // pred_fallthru
      _
    %v27 = vld [vmem:[%s1] sm:$0xff]
    %v28 = vld [vmem:[%s1 + $0x8] sm:$0xff]
    %v29 = vld [vmem:[%s1 + $0x10] sm:$0xff]
    %v30 = vld [vmem:[%s1 + $0x18] sm:$0xff]
    %v31 = vld [vmem:[%s1 + $0x20] sm:$0xff]
    %v32 = vld [vmem:[%s1 + $0x28] sm:$0xff]
    %v33 = vld [vmem:[%s1 + $0x30] sm:$0xff]
    %v34 = vld [vmem:[%s1 + $0x38] sm:$0xff]
    %v35 = vld [vmem:[%s2] sm:$0xff]
    %v36 = vld [vmem:[%s2 + $0x8] sm:$0xff]
    %v37 = vld [vmem:[%s2 + $0x10] sm:$0xff]
    %v38 = vld [vmem:[%s2 + $0x18] sm:$0xff]
    %v39 = vld [vmem:[%s2 + $0x20] sm:$0xff]
    %v40 = vld [vmem:[%s2 + $0x28] sm:$0xff]
    %v41 = vld [vmem:[%s2 + $0x30] sm:$0xff]
    %v42 = vld [vmem:[%s2 + $0x38] sm:$0xff]
    %v43 = vld [vmem:[%s3] sm:$0x1]
    %v44 = vld [vmem:[%s0] sm:$0xff]
    %v45 = vld [vmem:[%s0 + $0x8] sm:$0x1f]
    %vm46 = vcmask 72704
    %v48 = vsel %vm46, %v27, 0
    %v51 = vsel %vm46, %v28, 0
    %v54 = vsel %vm46, %v29, 0
    %v57 = vsel %vm46, %v30, 0
    %v60 = vsel %vm46, %v31, 0
    %v63 = vsel %vm46, %v32, 0
    %v66 = vsel %vm46, %v33, 0
    %v69 = vsel %vm46, %v34, 0
    %vm71 = vcmask 1040384
    %v73 = vsel %vm71, %v45, 0
    %75 = vmatprep.subr.mxu0 0.0
    %76 = vmatpush1.msra.mxu0 0.0
    %77 = vmatprep.subr.mxu0 0.0
    %78 = vmatpush1.msra.mxu0 0.0
    %79 = vmatprep.subr.mxu0 0.0
    %80 = vmatpush1.msra.mxu0 0.0
    %81 = vmatprep.subr.mxu0 0.0
    %82 = vmatpush1.msra.mxu0 0.0
    %83 = vmatprep.subr.mxu0 0.0
    %84 = vmatpush1.msra.mxu0 0.0
    %85 = vmatprep.subr.mxu0 0.0
    %86 = vmatpush1.msra.mxu0 0.0
    %87 = vmatprep.subr.mxu0 0.0
    %88 = vmatpush1.msra.mxu0 0.0
    %89 = vmatprep.subr.mxu0 0.0
    %90 = vmatpush1.msra.mxu0 0.0
    %91 = vmatprep.subr.mxu0 0.0
    %92 = vmatpush1.msra.mxu0 0.0
    %93 = vmatprep.subr.mxu0 0.0
    %94 = vmatpush1.msra.mxu0 0.0
    %95 = vmatprep.subr.mxu0 0.0
    %96 = vmatpush1.msra.mxu0 0.0
    %97 = vmatprep.subr.mxu0 0.0
    %98 = vmatpush1.msra.mxu0 0.0
    %99 = vmatprep.subr.mxu0 0.0
    %100 = vmatpush1.msra.mxu0 0.0
    %101 = vmatprep.subr.mxu0 0.0
    %102 = vmatpush1.msra.mxu0 0.0
    %103 = vmatprep.subr.mxu0 0.0
    %v104 = vand.u32 %v73, 4294901760
    %105 = vmatpush1.msra.mxu0 %v104
    %106 = vmatprep.subr.mxu0 0.0
    %v107 = vand.u32 %v44, 4294901760
    %108 = vmatpush1.msra.mxu0 %v107
    %109 = vmatprep.subr.mxu0 0.0
    %110 = vmatpush2.msra.mxu0 0.0
    %111 = vmatprep.subr.mxu0 0.0
    %112 = vmatpush2.msra.mxu0 0.0
    %113 = vmatprep.subr.mxu0 0.0
    %114 = vmatpush2.msra.mxu0 0.0
    %115 = vmatprep.subr.mxu0 0.0
    %116 = vmatpush2.msra.mxu0 0.0
    %117 = vmatprep.subr.mxu0 0.0
    %118 = vmatpush2.msra.mxu0 0.0
    %119 = vmatprep.subr.mxu0 0.0
    %120 = vmatpush2.msra.mxu0 0.0
    %121 = vmatprep.subr.mxu0 0.0
    %122 = vmatpush2.msra.mxu0 0.0
    %123 = vmatprep.subr.mxu0 0.0
    %124 = vmatpush2.msra.mxu0 0.0
    %125 = vmatprep.subr.mxu0 0.0
    %126 = vmatpush2.msra.mxu0 0.0
    %127 = vmatprep.subr.mxu0 0.0
    %128 = vmatpush2.msra.mxu0 0.0
    %129 = vmatprep.subr.mxu0 0.0
    %130 = vmatpush2.msra.mxu0 0.0
    %131 = vmatprep.subr.mxu0 0.0
    %132 = vmatpush2.msra.mxu0 0.0
    %133 = vmatprep.subr.mxu0 0.0
    %134 = vmatpush2.msra.mxu0 0.0
    %135 = vmatprep.subr.mxu0 0.0
    %136 = vmatpush2.msra.mxu0 0.0
    %137 = vmatprep.subr.mxu0 0.0
    %138 = vmatpush2.msra.mxu0 0.0
    %139 = vmatprep.subr.mxu0 0.0
    %140 = vmatpush2.msra.mxu0 0.0
    %141 = vmatprep.mubr.f32.mxu0 0.0
    %v142 = vand.u32 %v48, 4294901760
    %v143 = vsub.f32 %v48, %v142
    %v144 = vand.u32 %v143, 4294901760
    %v145 = vsub.f32 %v143, %v144
    %v146 = vand.u32 %v145, 4294901760
    %147 = vmatmul.mubr.f32.gmra.mxu0 %v146
    %v148 = vpop.f32.mrf.mxu0
    %v149 = vadd.f32 0.0, %v148
    %v150 = vpop.f32.mrf.mxu0
    %151 = vmatprep.mubr.f32.mxu0 0.0
    %v152 = vand.u32 %v51, 4294901760
    %v153 = vsub.f32 %v51, %v152
    %v154 = vand.u32 %v153, 4294901760
    %v155 = vsub.f32 %v153, %v154
    %v156 = vand.u32 %v155, 4294901760
    %157 = vmatmul.mubr.f32.gmra.mxu0 %v156
    %v158 = vpop.f32.mrf.mxu0
    %v159 = vadd.f32 0.0, %v158
    %v160 = vpop.f32.mrf.mxu0
    %161 = vmatprep.mubr.f32.mxu0 0.0
    %v162 = vand.u32 %v54, 4294901760
    %v163 = vsub.f32 %v54, %v162
    %v164 = vand.u32 %v163, 4294901760
    %v165 = vsub.f32 %v163, %v164
    %v166 = vand.u32 %v165, 4294901760
    %167 = vmatmul.mubr.f32.gmra.mxu0 %v166
    %v168 = vpop.f32.mrf.mxu0
    %v169 = vadd.f32 0.0, %v168
    %v170 = vpop.f32.mrf.mxu0
    %171 = vmatprep.mubr.f32.mxu0 0.0
    %v172 = vand.u32 %v57, 4294901760
    %v173 = vsub.f32 %v57, %v172
    %v174 = vand.u32 %v173, 4294901760
    %v175 = vsub.f32 %v173, %v174
    %v176 = vand.u32 %v175, 4294901760
    %177 = vmatmul.mubr.f32.gmra.mxu0 %v176
    %v178 = vpop.f32.mrf.mxu0
    %v179 = vadd.f32 0.0, %v178
    %v180 = vpop.f32.mrf.mxu0
    %181 = vmatprep.mubr.f32.mxu0 0.0
    %v182 = vand.u32 %v60, 4294901760
    %v183 = vsub.f32 %v60, %v182
    %v184 = vand.u32 %v183, 4294901760
    %v185 = vsub.f32 %v183, %v184
    %v186 = vand.u32 %v185, 4294901760
    %187 = vmatmul.mubr.f32.gmra.mxu0 %v186
    %v188 = vpop.f32.mrf.mxu0
    %v189 = vadd.f32 0.0, %v188
    %v190 = vpop.f32.mrf.mxu0
    %191 = vmatprep.mubr.f32.mxu0 0.0
    %v192 = vand.u32 %v63, 4294901760
    %v193 = vsub.f32 %v63, %v192
    %v194 = vand.u32 %v193, 4294901760
    %v195 = vsub.f32 %v193, %v194
    %v196 = vand.u32 %v195, 4294901760
    %197 = vmatmul.mubr.f32.gmra.mxu0 %v196
    %v198 = vpop.f32.mrf.mxu0
    %v199 = vadd.f32 0.0, %v198
    %v200 = vpop.f32.mrf.mxu0
    %201 = vmatprep.mubr.f32.mxu0 0.0
    %v202 = vand.u32 %v66, 4294901760
    %v203 = vsub.f32 %v66, %v202
    %v204 = vand.u32 %v203, 4294901760
    %v205 = vsub.f32 %v203, %v204
    %v206 = vand.u32 %v205, 4294901760
    %207 = vmatmul.mubr.f32.gmra.mxu0 %v206
    %v208 = vpop.f32.mrf.mxu0
    %v209 = vadd.f32 0.0, %v208
    %v210 = vpop.f32.mrf.mxu0
    %211 = vmatprep.mubr.f32.mxu0 0.0
    %v212 = vand.u32 %v69, 4294901760
    %v213 = vsub.f32 %v69, %v212
    %v214 = vand.u32 %v213, 4294901760
    %v215 = vsub.f32 %v213, %v214
    %v216 = vand.u32 %v215, 4294901760
    %217 = vmatmul.mubr.f32.gmra.mxu0 %v216
    %v218 = vpop.f32.mrf.mxu0
    %v219 = vadd.f32 0.0, %v218
    %v220 = vpop.f32.mrf.mxu0
    %221 = vdwg.mxu0
    %222 = vmatprep.subr.mxu0 0.0
    %223 = vmatpush1.msra.mxu0 0.0
    %224 = vmatprep.subr.mxu0 0.0
    %225 = vmatpush1.msra.mxu0 0.0
    %226 = vmatprep.subr.mxu0 0.0
    %227 = vmatpush1.msra.mxu0 0.0
    %228 = vmatprep.subr.mxu0 0.0
    %229 = vmatpush1.msra.mxu0 0.0
    %230 = vmatprep.subr.mxu0 0.0
    %231 = vmatpush1.msra.mxu0 0.0
    %232 = vmatprep.subr.mxu0 0.0
    %233 = vmatpush1.msra.mxu0 0.0
    %234 = vmatprep.subr.mxu0 0.0
    %235 = vmatpush1.msra.mxu0 0.0
    %236 = vmatprep.subr.mxu0 0.0
    %237 = vmatpush1.msra.mxu0 0.0
    %238 = vmatprep.subr.mxu0 0.0
    %239 = vmatpush1.msra.mxu0 0.0
    %240 = vmatprep.subr.mxu0 0.0
    %241 = vmatpush1.msra.mxu0 0.0
    %242 = vmatprep.subr.mxu0 0.0
    %243 = vmatpush1.msra.mxu0 0.0
    %244 = vmatprep.subr.mxu0 0.0
    %245 = vmatpush1.msra.mxu0 0.0
    %246 = vmatprep.subr.mxu0 0.0
    %247 = vmatpush1.msra.mxu0 0.0
    %248 = vmatprep.subr.mxu0 0.0
    %249 = vmatpush1.msra.mxu0 0.0
    %250 = vmatprep.subr.mxu0 0.0
    %v251 = vand.u32 %v73, 4294901760
    %v252 = vsub.f32 %v73, %v251
    %v253 = vand.u32 %v252, 4294901760
    %v254 = vsub.f32 %v252, %v253
    %v255 = vand.u32 %v254, 4294901760
    %256 = vmatpush1.msra.mxu0 %v255
    %257 = vmatprep.subr.mxu0 0.0
    %v258 = vand.u32 %v44, 4294901760
    %v259 = vsub.f32 %v44, %v258
    %v260 = vand.u32 %v259, 4294901760
    %v261 = vsub.f32 %v259, %v260
    %v262 = vand.u32 %v261, 4294901760
    %263 = vmatpush1.msra.mxu0 %v262
    %264 = vmatprep.subr.mxu0 0.0
    %265 = vmatpush2.msra.mxu0 0.0
    %266 = vmatprep.subr.mxu0 0.0
    %267 = vmatpush2.msra.mxu0 0.0
    %268 = vmatprep.subr.mxu0 0.0
    %269 = vmatpush2.msra.mxu0 0.0
    %270 = vmatprep.subr.mxu0 0.0
    %271 = vmatpush2.msra.mxu0 0.0
    %272 = vmatprep.subr.mxu0 0.0
    %273 = vmatpush2.msra.mxu0 0.0
    %274 = vmatprep.subr.mxu0 0.0
    %275 = vmatpush2.msra.mxu0 0.0
    %276 = vmatprep.subr.mxu0 0.0
    %277 = vmatpush2.msra.mxu0 0.0
    %278 = vmatprep.subr.mxu0 0.0
    %279 = vmatpush2.msra.mxu0 0.0
    %280 = vmatprep.subr.mxu0 0.0
    %281 = vmatpush2.msra.mxu0 0.0
    %282 = vmatprep.subr.mxu0 0.0
    %283 = vmatpush2.msra.mxu0 0.0
    %284 = vmatprep.subr.mxu0 0.0
    %285 = vmatpush2.msra.mxu0 0.0
    %286 = vmatprep.subr.mxu0 0.0
    %287 = vmatpush2.msra.mxu0 0.0
    %288 = vmatprep.subr.mxu0 0.0
    %289 = vmatpush2.msra.mxu0 0.0
    %290 = vmatprep.subr.mxu0 0.0
    %291 = vmatpush2.msra.mxu0 0.0
    %292 = vmatprep.subr.mxu0 0.0
    %293 = vmatpush2.msra.mxu0 0.0
    %294 = vmatprep.subr.mxu0 0.0
    %295 = vmatpush2.msra.mxu0 0.0
    %296 = vmatprep.mubr.f32.mxu0 0.0
    %v297 = vand.u32 %v48, 4294901760
    %298 = vmatmul.mubr.f32.gmra.mxu0 %v297
    %v299 = vpop.f32.mrf.mxu0
    %v300 = vadd.f32 %v149, %v299
    %v301 = vpop.f32.mrf.mxu0
    %302 = vmatprep.mubr.f32.mxu0 0.0
    %v303 = vand.u32 %v51, 4294901760
    %304 = vmatmul.mubr.f32.gmra.mxu0 %v303
    %v305 = vpop.f32.mrf.mxu0
    %v306 = vadd.f32 %v159, %v305
    %v307 = vpop.f32.mrf.mxu0
    %308 = vmatprep.mubr.f32.mxu0 0.0
    %v309 = vand.u32 %v54, 4294901760
    %310 = vmatmul.mubr.f32.gmra.mxu0 %v309
    %v311 = vpop.f32.mrf.mxu0
    %v312 = vadd.f32 %v169, %v311
    %v313 = vpop.f32.mrf.mxu0
    %314 = vmatprep.mubr.f32.mxu0 0.0
    %v315 = vand.u32 %v57, 4294901760
    %316 = vmatmul.mubr.f32.gmra.mxu0 %v315
    %v317 = vpop.f32.mrf.mxu0
    %v318 = vadd.f32 %v179, %v317
    %v319 = vpop.f32.mrf.mxu0
    %320 = vmatprep.mubr.f32.mxu0 0.0
    %v321 = vand.u32 %v60, 4294901760
    %322 = vmatmul.mubr.f32.gmra.mxu0 %v321
    %v323 = vpop.f32.mrf.mxu0
    %v324 = vadd.f32 %v189, %v323
    %v325 = vpop.f32.mrf.mxu0
    %326 = vmatprep.mubr.f32.mxu0 0.0
    %v327 = vand.u32 %v63, 4294901760
    %328 = vmatmul.mubr.f32.gmra.mxu0 %v327
    %v329 = vpop.f32.mrf.mxu0
    %v330 = vadd.f32 %v199, %v329
    %v331 = vpop.f32.mrf.mxu0
    %332 = vmatprep.mubr.f32.mxu0 0.0
    %v333 = vand.u32 %v66, 4294901760
    %334 = vmatmul.mubr.f32.gmra.mxu0 %v333
    %v335 = vpop.f32.mrf.mxu0
    %v336 = vadd.f32 %v209, %v335
    %v337 = vpop.f32.mrf.mxu0
    %338 = vmatprep.mubr.f32.mxu0 0.0
    %v339 = vand.u32 %v69, 4294901760
    %340 = vmatmul.mubr.f32.gmra.mxu0 %v339
    %v341 = vpop.f32.mrf.mxu0
    %v342 = vadd.f32 %v219, %v341
    %v343 = vpop.f32.mrf.mxu0
    %344 = vdwg.mxu0
    %345 = vmatprep.subr.mxu0 0.0
    %346 = vmatpush1.msra.mxu0 0.0
    %347 = vmatprep.subr.mxu0 0.0
    %348 = vmatpush1.msra.mxu0 0.0
    %349 = vmatprep.subr.mxu0 0.0
    %350 = vmatpush1.msra.mxu0 0.0
    %351 = vmatprep.subr.mxu0 0.0
    %352 = vmatpush1.msra.mxu0 0.0
    %353 = vmatprep.subr.mxu0 0.0
    %354 = vmatpush1.msra.mxu0 0.0
    %355 = vmatprep.subr.mxu0 0.0
    %356 = vmatpush1.msra.mxu0 0.0
    %357 = vmatprep.subr.mxu0 0.0
    %358 = vmatpush1.msra.mxu0 0.0
    %359 = vmatprep.subr.mxu0 0.0
    %360 = vmatpush1.msra.mxu0 0.0
    %361 = vmatprep.subr.mxu0 0.0
    %362 = vmatpush1.msra.mxu0 0.0
    %363 = vmatprep.subr.mxu0 0.0
    %364 = vmatpush1.msra.mxu0 0.0
    %365 = vmatprep.subr.mxu0 0.0
    %366 = vmatpush1.msra.mxu0 0.0
    %367 = vmatprep.subr.mxu0 0.0
    %368 = vmatpush1.msra.mxu0 0.0
    %369 = vmatprep.subr.mxu0 0.0
    %370 = vmatpush1.msra.mxu0 0.0
    %371 = vmatprep.subr.mxu0 0.0
    %372 = vmatpush1.msra.mxu0 0.0
    %373 = vmatprep.subr.mxu0 0.0
    %v374 = vand.u32 %v73, 4294901760
    %v375 = vsub.f32 %v73, %v374
    %376 = vmatpush1.msra.mxu0 %v375
    %377 = vmatprep.subr.mxu0 0.0
    %v378 = vand.u32 %v44, 4294901760
    %v379 = vsub.f32 %v44, %v378
    %380 = vmatpush1.msra.mxu0 %v379
    %381 = vmatprep.subr.mxu0 0.0
    %382 = vmatpush2.msra.mxu0 0.0
    %383 = vmatprep.subr.mxu0 0.0
    %384 = vmatpush2.msra.mxu0 0.0
    %385 = vmatprep.subr.mxu0 0.0
    %386 = vmatpush2.msra.mxu0 0.0
    %387 = vmatprep.subr.mxu0 0.0
    %388 = vmatpush2.msra.mxu0 0.0
    %389 = vmatprep.subr.mxu0 0.0
    %390 = vmatpush2.msra.mxu0 0.0
    %391 = vmatprep.subr.mxu0 0.0
    %392 = vmatpush2.msra.mxu0 0.0
    %393 = vmatprep.subr.mxu0 0.0
    %394 = vmatpush2.msra.mxu0 0.0
    %395 = vmatprep.subr.mxu0 0.0
    %396 = vmatpush2.msra.mxu0 0.0
    %397 = vmatprep.subr.mxu0 0.0
    %398 = vmatpush2.msra.mxu0 0.0
    %399 = vmatprep.subr.mxu0 0.0
    %400 = vmatpush2.msra.mxu0 0.0
    %401 = vmatprep.subr.mxu0 0.0
    %402 = vmatpush2.msra.mxu0 0.0
    %403 = vmatprep.subr.mxu0 0.0
    %404 = vmatpush2.msra.mxu0 0.0
    %405 = vmatprep.subr.mxu0 0.0
    %406 = vmatpush2.msra.mxu0 0.0
    %407 = vmatprep.subr.mxu0 0.0
    %408 = vmatpush2.msra.mxu0 0.0
    %409 = vmatprep.subr.mxu0 0.0
    %410 = vmatpush2.msra.mxu0 0.0
    %411 = vmatprep.subr.mxu0 0.0
    %412 = vmatpush2.msra.mxu0 0.0
    %413 = vmatprep.mubr.f32.mxu0 0.0
    %v414 = vand.u32 %v48, 4294901760
    %v415 = vsub.f32 %v48, %v414
    %416 = vmatmul.mubr.f32.gmra.mxu0 %v415
    %v417 = vpop.f32.mrf.mxu0
    %v418 = vadd.f32 %v300, %v417
    %v419 = vpop.f32.mrf.mxu0
    %420 = vmatprep.mubr.f32.mxu0 0.0
    %v421 = vand.u32 %v51, 4294901760
    %v422 = vsub.f32 %v51, %v421
    %423 = vmatmul.mubr.f32.gmra.mxu0 %v422
    %v424 = vpop.f32.mrf.mxu0
    %v425 = vadd.f32 %v306, %v424
    %v426 = vpop.f32.mrf.mxu0
    %427 = vmatprep.mubr.f32.mxu0 0.0
    %v428 = vand.u32 %v54, 4294901760
    %v429 = vsub.f32 %v54, %v428
    %430 = vmatmul.mubr.f32.gmra.mxu0 %v429
    %v431 = vpop.f32.mrf.mxu0
    %v432 = vadd.f32 %v312, %v431
    %v433 = vpop.f32.mrf.mxu0
    %434 = vmatprep.mubr.f32.mxu0 0.0
    %v435 = vand.u32 %v57, 4294901760
    %v436 = vsub.f32 %v57, %v435
    %437 = vmatmul.mubr.f32.gmra.mxu0 %v436
    %v438 = vpop.f32.mrf.mxu0
    %v439 = vadd.f32 %v318, %v438
    %v440 = vpop.f32.mrf.mxu0
    %441 = vmatprep.mubr.f32.mxu0 0.0
    %v442 = vand.u32 %v60, 4294901760
    %v443 = vsub.f32 %v60, %v442
    %444 = vmatmul.mubr.f32.gmra.mxu0 %v443
    %v445 = vpop.f32.mrf.mxu0
    %v446 = vadd.f32 %v324, %v445
    %v447 = vpop.f32.mrf.mxu0
    %448 = vmatprep.mubr.f32.mxu0 0.0
    %v449 = vand.u32 %v63, 4294901760
    %v450 = vsub.f32 %v63, %v449
    %451 = vmatmul.mubr.f32.gmra.mxu0 %v450
    %v452 = vpop.f32.mrf.mxu0
    %v453 = vadd.f32 %v330, %v452
    %v454 = vpop.f32.mrf.mxu0
    %455 = vmatprep.mubr.f32.mxu0 0.0
    %v456 = vand.u32 %v66, 4294901760
    %v457 = vsub.f32 %v66, %v456
    %458 = vmatmul.mubr.f32.gmra.mxu0 %v457
    %v459 = vpop.f32.mrf.mxu0
    %v460 = vadd.f32 %v336, %v459
    %v461 = vpop.f32.mrf.mxu0
    %462 = vmatprep.mubr.f32.mxu0 0.0
    %v463 = vand.u32 %v69, 4294901760
    %v464 = vsub.f32 %v69, %v463
    %465 = vmatmul.mubr.f32.gmra.mxu0 %v464
    %v466 = vpop.f32.mrf.mxu0
    %v467 = vadd.f32 %v342, %v466
    %v468 = vpop.f32.mrf.mxu0
    %469 = vdwg.mxu0
    %470 = vmatprep.subr.mxu0 0.0
    %471 = vmatpush1.msra.mxu0 0.0
    %472 = vmatprep.subr.mxu0 0.0
    %473 = vmatpush1.msra.mxu0 0.0
    %474 = vmatprep.subr.mxu0 0.0
    %475 = vmatpush1.msra.mxu0 0.0
    %476 = vmatprep.subr.mxu0 0.0
    %477 = vmatpush1.msra.mxu0 0.0
    %478 = vmatprep.subr.mxu0 0.0
    %479 = vmatpush1.msra.mxu0 0.0
    %480 = vmatprep.subr.mxu0 0.0
    %481 = vmatpush1.msra.mxu0 0.0
    %482 = vmatprep.subr.mxu0 0.0
    %483 = vmatpush1.msra.mxu0 0.0
    %484 = vmatprep.subr.mxu0 0.0
    %485 = vmatpush1.msra.mxu0 0.0
    %486 = vmatprep.subr.mxu0 0.0
    %487 = vmatpush1.msra.mxu0 0.0
    %488 = vmatprep.subr.mxu0 0.0
    %489 = vmatpush1.msra.mxu0 0.0
    %490 = vmatprep.subr.mxu0 0.0
    %491 = vmatpush1.msra.mxu0 0.0
    %492 = vmatprep.subr.mxu0 0.0
    %493 = vmatpush1.msra.mxu0 0.0
    %494 = vmatprep.subr.mxu0 0.0
    %495 = vmatpush1.msra.mxu0 0.0
    %496 = vmatprep.subr.mxu0 0.0
    %497 = vmatpush1.msra.mxu0 0.0
    %498 = vmatprep.subr.mxu0 0.0
    %v499 = vand.u32 %v73, 4294901760
    %500 = vmatpush1.msra.mxu0 %v499
    %501 = vmatprep.subr.mxu0 0.0
    %v502 = vand.u32 %v44, 4294901760
    %503 = vmatpush1.msra.mxu0 %v502
    %504 = vmatprep.subr.mxu0 0.0
    %505 = vmatpush2.msra.mxu0 0.0
    %506 = vmatprep.subr.mxu0 0.0
    %507 = vmatpush2.msra.mxu0 0.0
    %508 = vmatprep.subr.mxu0 0.0
    %509 = vmatpush2.msra.mxu0 0.0
    %510 = vmatprep.subr.mxu0 0.0
    %511 = vmatpush2.msra.mxu0 0.0
    %512 = vmatprep.subr.mxu0 0.0
    %513 = vmatpush2.msra.mxu0 0.0
    %514 = vmatprep.subr.mxu0 0.0
    %515 = vmatpush2.msra.mxu0 0.0
    %516 = vmatprep.subr.mxu0 0.0
    %517 = vmatpush2.msra.mxu0 0.0
    %518 = vmatprep.subr.mxu0 0.0
    %519 = vmatpush2.msra.mxu0 0.0
    %520 = vmatprep.subr.mxu0 0.0
    %521 = vmatpush2.msra.mxu0 0.0
    %522 = vmatprep.subr.mxu0 0.0
    %523 = vmatpush2.msra.mxu0 0.0
    %524 = vmatprep.subr.mxu0 0.0
    %525 = vmatpush2.msra.mxu0 0.0
    %526 = vmatprep.subr.mxu0 0.0
    %527 = vmatpush2.msra.mxu0 0.0
    %528 = vmatprep.subr.mxu0 0.0
    %529 = vmatpush2.msra.mxu0 0.0
    %530 = vmatprep.subr.mxu0 0.0
    %531 = vmatpush2.msra.mxu0 0.0
    %532 = vmatprep.subr.mxu0 0.0
    %533 = vmatpush2.msra.mxu0 0.0
    %534 = vmatprep.subr.mxu0 0.0
    %535 = vmatpush2.msra.mxu0 0.0
    %536 = vmatprep.mubr.f32.mxu0 0.0
    %v537 = vand.u32 %v48, 4294901760
    %v538 = vsub.f32 %v48, %v537
    %v539 = vand.u32 %v538, 4294901760
    %540 = vmatmul.mubr.f32.gmra.mxu0 %v539
    %v541 = vpop.f32.mrf.mxu0
    %v542 = vadd.f32 %v418, %v541
    %v543 = vpop.f32.mrf.mxu0
    %544 = vmatprep.mubr.f32.mxu0 0.0
    %v545 = vand.u32 %v51, 4294901760
    %v546 = vsub.f32 %v51, %v545
    %v547 = vand.u32 %v546, 4294901760
    %548 = vmatmul.mubr.f32.gmra.mxu0 %v547
    %v549 = vpop.f32.mrf.mxu0
    %v550 = vadd.f32 %v425, %v549
    %v551 = vpop.f32.mrf.mxu0
    %552 = vmatprep.mubr.f32.mxu0 0.0
    %v553 = vand.u32 %v54, 4294901760
    %v554 = vsub.f32 %v54, %v553
    %v555 = vand.u32 %v554, 4294901760
    %556 = vmatmul.mubr.f32.gmra.mxu0 %v555
    %v557 = vpop.f32.mrf.mxu0
    %v558 = vadd.f32 %v432, %v557
    %v559 = vpop.f32.mrf.mxu0
    %560 = vmatprep.mubr.f32.mxu0 0.0
    %v561 = vand.u32 %v57, 4294901760
    %v562 = vsub.f32 %v57, %v561
    %v563 = vand.u32 %v562, 4294901760
    %564 = vmatmul.mubr.f32.gmra.mxu0 %v563
    %v565 = vpop.f32.mrf.mxu0
    %v566 = vadd.f32 %v439, %v565
    %v567 = vpop.f32.mrf.mxu0
    %568 = vmatprep.mubr.f32.mxu0 0.0
    %v569 = vand.u32 %v60, 4294901760
    %v570 = vsub.f32 %v60, %v569
    %v571 = vand.u32 %v570, 4294901760
    %572 = vmatmul.mubr.f32.gmra.mxu0 %v571
    %v573 = vpop.f32.mrf.mxu0
    %v574 = vadd.f32 %v446, %v573
    %v575 = vpop.f32.mrf.mxu0
    %576 = vmatprep.mubr.f32.mxu0 0.0
    %v577 = vand.u32 %v63, 4294901760
    %v578 = vsub.f32 %v63, %v577
    %v579 = vand.u32 %v578, 4294901760
    %580 = vmatmul.mubr.f32.gmra.mxu0 %v579
    %v581 = vpop.f32.mrf.mxu0
    %v582 = vadd.f32 %v453, %v581
    %v583 = vpop.f32.mrf.mxu0
    %584 = vmatprep.mubr.f32.mxu0 0.0
    %v585 = vand.u32 %v66, 4294901760
    %v586 = vsub.f32 %v66, %v585
    %v587 = vand.u32 %v586, 4294901760
    %588 = vmatmul.mubr.f32.gmra.mxu0 %v587
    %v589 = vpop.f32.mrf.mxu0
    %v590 = vadd.f32 %v460, %v589
    %v591 = vpop.f32.mrf.mxu0
    %592 = vmatprep.mubr.f32.mxu0 0.0
    %v593 = vand.u32 %v69, 4294901760
    %v594 = vsub.f32 %v69, %v593
    %v595 = vand.u32 %v594, 4294901760
    %596 = vmatmul.mubr.f32.gmra.mxu0 %v595
    %v597 = vpop.f32.mrf.mxu0
    %v598 = vadd.f32 %v467, %v597
    %v599 = vpop.f32.mrf.mxu0
    %600 = vdwg.mxu0
    %601 = vmatprep.subr.mxu0 0.0
    %602 = vmatpush1.msra.mxu0 0.0
    %603 = vmatprep.subr.mxu0 0.0
    %604 = vmatpush1.msra.mxu0 0.0
    %605 = vmatprep.subr.mxu0 0.0
    %606 = vmatpush1.msra.mxu0 0.0
    %607 = vmatprep.subr.mxu0 0.0
    %608 = vmatpush1.msra.mxu0 0.0
    %609 = vmatprep.subr.mxu0 0.0
    %610 = vmatpush1.msra.mxu0 0.0
    %611 = vmatprep.subr.mxu0 0.0
    %612 = vmatpush1.msra.mxu0 0.0
    %613 = vmatprep.subr.mxu0 0.0
    %614 = vmatpush1.msra.mxu0 0.0
    %615 = vmatprep.subr.mxu0 0.0
    %616 = vmatpush1.msra.mxu0 0.0
    %617 = vmatprep.subr.mxu0 0.0
    %618 = vmatpush1.msra.mxu0 0.0
    %619 = vmatprep.subr.mxu0 0.0
    %620 = vmatpush1.msra.mxu0 0.0
    %621 = vmatprep.subr.mxu0 0.0
    %622 = vmatpush1.msra.mxu0 0.0
    %623 = vmatprep.subr.mxu0 0.0
    %624 = vmatpush1.msra.mxu0 0.0
    %625 = vmatprep.subr.mxu0 0.0
    %626 = vmatpush1.msra.mxu0 0.0
    %627 = vmatprep.subr.mxu0 0.0
    %628 = vmatpush1.msra.mxu0 0.0
    %629 = vmatprep.subr.mxu0 0.0
    %v630 = vand.u32 %v73, 4294901760
    %v631 = vsub.f32 %v73, %v630
    %v632 = vand.u32 %v631, 4294901760
    %633 = vmatpush1.msra.mxu0 %v632
    %634 = vmatprep.subr.mxu0 0.0
    %v635 = vand.u32 %v44, 4294901760
    %v636 = vsub.f32 %v44, %v635
    %v637 = vand.u32 %v636, 4294901760
    %638 = vmatpush1.msra.mxu0 %v637
    %639 = vmatprep.subr.mxu0 0.0
    %640 = vmatpush2.msra.mxu0 0.0
    %641 = vmatprep.subr.mxu0 0.0
    %642 = vmatpush2.msra.mxu0 0.0
    %643 = vmatprep.subr.mxu0 0.0
    %644 = vmatpush2.msra.mxu0 0.0
    %645 = vmatprep.subr.mxu0 0.0
    %646 = vmatpush2.msra.mxu0 0.0
    %647 = vmatprep.subr.mxu0 0.0
    %648 = vmatpush2.msra.mxu0 0.0
    %649 = vmatprep.subr.mxu0 0.0
    %650 = vmatpush2.msra.mxu0 0.0
    %651 = vmatprep.subr.mxu0 0.0
    %652 = vmatpush2.msra.mxu0 0.0
    %653 = vmatprep.subr.mxu0 0.0
    %654 = vmatpush2.msra.mxu0 0.0
    %655 = vmatprep.subr.mxu0 0.0
    %656 = vmatpush2.msra.mxu0 0.0
    %657 = vmatprep.subr.mxu0 0.0
    %658 = vmatpush2.msra.mxu0 0.0
    %659 = vmatprep.subr.mxu0 0.0
    %660 = vmatpush2.msra.mxu0 0.0
    %661 = vmatprep.subr.mxu0 0.0
    %662 = vmatpush2.msra.mxu0 0.0
    %663 = vmatprep.subr.mxu0 0.0
    %664 = vmatpush2.msra.mxu0 0.0
    %665 = vmatprep.subr.mxu0 0.0
    %666 = vmatpush2.msra.mxu0 0.0
    %667 = vmatprep.subr.mxu0 0.0
    %668 = vmatpush2.msra.mxu0 0.0
    %669 = vmatprep.subr.mxu0 0.0
    %670 = vmatpush2.msra.mxu0 0.0
    %671 = vmatprep.mubr.f32.mxu0 0.0
    %v672 = vand.u32 %v48, 4294901760
    %673 = vmatmul.mubr.f32.gmra.mxu0 %v672
    %v674 = vpop.f32.mrf.mxu0
    %v675 = vadd.f32 %v542, %v674
    %v676 = vpop.f32.mrf.mxu0
    %677 = vmatprep.mubr.f32.mxu0 0.0
    %v678 = vand.u32 %v51, 4294901760
    %679 = vmatmul.mubr.f32.gmra.mxu0 %v678
    %v680 = vpop.f32.mrf.mxu0
    %v681 = vadd.f32 %v550, %v680
    %v682 = vpop.f32.mrf.mxu0
    %683 = vmatprep.mubr.f32.mxu0 0.0
    %v684 = vand.u32 %v54, 4294901760
    %685 = vmatmul.mubr.f32.gmra.mxu0 %v684
    %v686 = vpop.f32.mrf.mxu0
    %v687 = vadd.f32 %v558, %v686
    %v688 = vpop.f32.mrf.mxu0
    %689 = vmatprep.mubr.f32.mxu0 0.0
    %v690 = vand.u32 %v57, 4294901760
    %691 = vmatmul.mubr.f32.gmra.mxu0 %v690
    %v692 = vpop.f32.mrf.mxu0
    %v693 = vadd.f32 %v566, %v692
    %v694 = vpop.f32.mrf.mxu0
    %695 = vmatprep.mubr.f32.mxu0 0.0
    %v696 = vand.u32 %v60, 4294901760
    %697 = vmatmul.mubr.f32.gmra.mxu0 %v696
    %v698 = vpop.f32.mrf.mxu0
    %v699 = vadd.f32 %v574, %v698
    %v700 = vpop.f32.mrf.mxu0
    %701 = vmatprep.mubr.f32.mxu0 0.0
    %v702 = vand.u32 %v63, 4294901760
    %703 = vmatmul.mubr.f32.gmra.mxu0 %v702
    %v704 = vpop.f32.mrf.mxu0
    %v705 = vadd.f32 %v582, %v704
    %v706 = vpop.f32.mrf.mxu0
    %707 = vmatprep.mubr.f32.mxu0 0.0
    %v708 = vand.u32 %v66, 4294901760
    %709 = vmatmul.mubr.f32.gmra.mxu0 %v708
    %v710 = vpop.f32.mrf.mxu0
    %v711 = vadd.f32 %v590, %v710
    %v712 = vpop.f32.mrf.mxu0
    %713 = vmatprep.mubr.f32.mxu0 0.0
    %v714 = vand.u32 %v69, 4294901760
    %715 = vmatmul.mubr.f32.gmra.mxu0 %v714
    %v716 = vpop.f32.mrf.mxu0
    %v717 = vadd.f32 %v598, %v716
    %v718 = vpop.f32.mrf.mxu0
    %719 = vdwg.mxu0
    %720 = vmatprep.subr.mxu0 0.0
    %721 = vmatpush1.msra.mxu0 0.0
    %722 = vmatprep.subr.mxu0 0.0
    %723 = vmatpush1.msra.mxu0 0.0
    %724 = vmatprep.subr.mxu0 0.0
    %725 = vmatpush1.msra.mxu0 0.0
    %726 = vmatprep.subr.mxu0 0.0
    %727 = vmatpush1.msra.mxu0 0.0
    %728 = vmatprep.subr.mxu0 0.0
    %729 = vmatpush1.msra.mxu0 0.0
    %730 = vmatprep.subr.mxu0 0.0
    %731 = vmatpush1.msra.mxu0 0.0
    %732 = vmatprep.subr.mxu0 0.0
    %733 = vmatpush1.msra.mxu0 0.0
    %734 = vmatprep.subr.mxu0 0.0
    %735 = vmatpush1.msra.mxu0 0.0
    %736 = vmatprep.subr.mxu0 0.0
    %737 = vmatpush1.msra.mxu0 0.0
    %738 = vmatprep.subr.mxu0 0.0
    %739 = vmatpush1.msra.mxu0 0.0
    %740 = vmatprep.subr.mxu0 0.0
    %741 = vmatpush1.msra.mxu0 0.0
    %742 = vmatprep.subr.mxu0 0.0
    %743 = vmatpush1.msra.mxu0 0.0
    %744 = vmatprep.subr.mxu0 0.0
    %745 = vmatpush1.msra.mxu0 0.0
    %746 = vmatprep.subr.mxu0 0.0
    %747 = vmatpush1.msra.mxu0 0.0
    %748 = vmatprep.subr.mxu0 0.0
    %v749 = vand.u32 %v73, 4294901760
    %750 = vmatpush1.msra.mxu0 %v749
    %751 = vmatprep.subr.mxu0 0.0
    %v752 = vand.u32 %v44, 4294901760
    %753 = vmatpush1.msra.mxu0 %v752
    %754 = vmatprep.subr.mxu0 0.0
    %755 = vmatpush2.msra.mxu0 0.0
    %756 = vmatprep.subr.mxu0 0.0
    %757 = vmatpush2.msra.mxu0 0.0
    %758 = vmatprep.subr.mxu0 0.0
    %759 = vmatpush2.msra.mxu0 0.0
    %760 = vmatprep.subr.mxu0 0.0
    %761 = vmatpush2.msra.mxu0 0.0
    %762 = vmatprep.subr.mxu0 0.0
    %763 = vmatpush2.msra.mxu0 0.0
    %764 = vmatprep.subr.mxu0 0.0
    %765 = vmatpush2.msra.mxu0 0.0
    %766 = vmatprep.subr.mxu0 0.0
    %767 = vmatpush2.msra.mxu0 0.0
    %768 = vmatprep.subr.mxu0 0.0
    %769 = vmatpush2.msra.mxu0 0.0
    %770 = vmatprep.subr.mxu0 0.0
    %771 = vmatpush2.msra.mxu0 0.0
    %772 = vmatprep.subr.mxu0 0.0
    %773 = vmatpush2.msra.mxu0 0.0
    %774 = vmatprep.subr.mxu0 0.0
    %775 = vmatpush2.msra.mxu0 0.0
    %776 = vmatprep.subr.mxu0 0.0
    %777 = vmatpush2.msra.mxu0 0.0
    %778 = vmatprep.subr.mxu0 0.0
    %779 = vmatpush2.msra.mxu0 0.0
    %780 = vmatprep.subr.mxu0 0.0
    %781 = vmatpush2.msra.mxu0 0.0
    %782 = vmatprep.subr.mxu0 0.0
    %783 = vmatpush2.msra.mxu0 0.0
    %784 = vmatprep.subr.mxu0 0.0
    %785 = vmatpush2.msra.mxu0 0.0
    %786 = vmatprep.mubr.f32.mxu0 0.0
    %v787 = vand.u32 %v48, 4294901760
    %788 = vmatmul.mubr.f32.gmra.mxu0 %v787
    %v789 = vpop.f32.mrf.mxu0
    %v790 = vadd.f32 %v675, %v789
    %v791 = vpop.f32.mrf.mxu0
    %792 = vmatprep.mubr.f32.mxu0 0.0
    %v793 = vand.u32 %v51, 4294901760
    %794 = vmatmul.mubr.f32.gmra.mxu0 %v793
    %v795 = vpop.f32.mrf.mxu0
    %v796 = vadd.f32 %v681, %v795
    %v797 = vpop.f32.mrf.mxu0
    %798 = vmatprep.mubr.f32.mxu0 0.0
    %v799 = vand.u32 %v54, 4294901760
    %800 = vmatmul.mubr.f32.gmra.mxu0 %v799
    %v801 = vpop.f32.mrf.mxu0
    %v802 = vadd.f32 %v687, %v801
    %v803 = vpop.f32.mrf.mxu0
    %804 = vmatprep.mubr.f32.mxu0 0.0
    %v805 = vand.u32 %v57, 4294901760
    %806 = vmatmul.mubr.f32.gmra.mxu0 %v805
    %v807 = vpop.f32.mrf.mxu0
    %v808 = vadd.f32 %v693, %v807
    %v809 = vpop.f32.mrf.mxu0
    %810 = vmatprep.mubr.f32.mxu0 0.0
    %v811 = vand.u32 %v60, 4294901760
    %812 = vmatmul.mubr.f32.gmra.mxu0 %v811
    %v813 = vpop.f32.mrf.mxu0
    %v814 = vadd.f32 %v699, %v813
    %v815 = vpop.f32.mrf.mxu0
    %816 = vmatprep.mubr.f32.mxu0 0.0
    %v817 = vand.u32 %v63, 4294901760
    %818 = vmatmul.mubr.f32.gmra.mxu0 %v817
    %v819 = vpop.f32.mrf.mxu0
    %v820 = vadd.f32 %v705, %v819
    %v821 = vpop.f32.mrf.mxu0
    %822 = vmatprep.mubr.f32.mxu0 0.0
    %v823 = vand.u32 %v66, 4294901760
    %824 = vmatmul.mubr.f32.gmra.mxu0 %v823
    %v825 = vpop.f32.mrf.mxu0
    %v826 = vadd.f32 %v711, %v825
    %v827 = vpop.f32.mrf.mxu0
    %828 = vmatprep.mubr.f32.mxu0 0.0
    %v829 = vand.u32 %v69, 4294901760
    %830 = vmatmul.mubr.f32.gmra.mxu0 %v829
    %v831 = vpop.f32.mrf.mxu0
    %v832 = vadd.f32 %v717, %v831
    %v833 = vpop.f32.mrf.mxu0
    %834 = vdwg.mxu0
    %v835 = vlaneseq
    %v836 = vshrl.u32 %v835, 7
    %v837 = vsub.s32 1, %v836
    %v838 = vrot.slane %v45, %v837
    %840 = vset.pattern.permute.xlu0 0
    %841 = vperm.xlu0 %840, %v35
    %v842 = vpop.permute.xlu0 %841
    %845 = vset.pattern.permute.xlu0 0
    %846 = vperm.xlu0 %845, %v36
    %v847 = vpop.permute.xlu0 %846
    %850 = vset.pattern.permute.xlu0 0
    %851 = vperm.xlu0 %850, %v37
    %v852 = vpop.permute.xlu0 %851
    %855 = vset.pattern.permute.xlu0 0
    %856 = vperm.xlu0 %855, %v38
    %v857 = vpop.permute.xlu0 %856
    %860 = vset.pattern.permute.xlu0 0
    %861 = vperm.xlu0 %860, %v39
    %v862 = vpop.permute.xlu0 %861
    %865 = vset.pattern.permute.xlu0 0
    %866 = vperm.xlu0 %865, %v40
    %v867 = vpop.permute.xlu0 %866
    %870 = vset.pattern.permute.xlu0 0
    %871 = vperm.xlu0 %870, %v41
    %v872 = vpop.permute.xlu0 %871
    %875 = vset.pattern.permute.xlu0 0
    %876 = vperm.xlu0 %875, %v42
    %v877 = vpop.permute.xlu0 %876
    %vm879 = vcmp.gt.f32.partialorder %v838, %v842
    %vm880 = vcmp.gt.f32.partialorder %v838, %v847
    %vm881 = vcmp.gt.f32.partialorder %v838, %v852
    %vm882 = vcmp.gt.f32.partialorder %v838, %v857
    %vm883 = vcmp.gt.f32.partialorder %v838, %v862
    %vm884 = vcmp.gt.f32.partialorder %v838, %v867
    %vm885 = vcmp.gt.f32.partialorder %v838, %v872
    %vm886 = vcmp.gt.f32.partialorder %v838, %v877
    %887 = vset.pattern.permute.xlu0 4
    %888 = vperm.xlu0 %887, %v35
    %v889 = vpop.permute.xlu0 %888
    %891 = vset.pattern.permute.xlu0 4
    %892 = vperm.xlu0 %891, %v36
    %v893 = vpop.permute.xlu0 %892
    %895 = vset.pattern.permute.xlu0 4
    %896 = vperm.xlu0 %895, %v37
    %v897 = vpop.permute.xlu0 %896
    %899 = vset.pattern.permute.xlu0 4
    %900 = vperm.xlu0 %899, %v38
    %v901 = vpop.permute.xlu0 %900
    %903 = vset.pattern.permute.xlu0 4
    %904 = vperm.xlu0 %903, %v39
    %v905 = vpop.permute.xlu0 %904
    %907 = vset.pattern.permute.xlu0 4
    %908 = vperm.xlu0 %907, %v40
    %v909 = vpop.permute.xlu0 %908
    %911 = vset.pattern.permute.xlu0 4
    %912 = vperm.xlu0 %911, %v41
    %v913 = vpop.permute.xlu0 %912
    %915 = vset.pattern.permute.xlu0 4
    %916 = vperm.xlu0 %915, %v42
    %v917 = vpop.permute.xlu0 %916
    %vm919 = vcmp.lt.f32.partialorder %v838, %v889
    %vm920 = vcmp.lt.f32.partialorder %v838, %v893
    %vm921 = vcmp.lt.f32.partialorder %v838, %v897
    %vm922 = vcmp.lt.f32.partialorder %v838, %v901
    %vm923 = vcmp.lt.f32.partialorder %v838, %v905
    %vm924 = vcmp.lt.f32.partialorder %v838, %v909
    %vm925 = vcmp.lt.f32.partialorder %v838, %v913
    %vm926 = vcmp.lt.f32.partialorder %v838, %v917
    %vm927 = vmand %vm879, %vm919
    %vm928 = vmand %vm880, %vm920
    %vm929 = vmand %vm881, %vm921
    %vm930 = vmand %vm882, %vm922
    %vm931 = vmand %vm883, %vm923
    %vm932 = vmand %vm884, %vm924
    %vm933 = vmand %vm885, %vm925
    %vm934 = vmand %vm886, %vm926
    %v935 = vlaneseq
    %v936 = vshrl.u32 %v935, 7
    %v937 = vsub.s32 2, %v936
    %v938 = vrot.slane %v45, %v937
    %939 = vset.pattern.permute.xlu0 1
    %940 = vperm.xlu0 %939, %v35
    %v941 = vpop.permute.xlu0 %940
    %943 = vset.pattern.permute.xlu0 1
    %944 = vperm.xlu0 %943, %v36
    %v945 = vpop.permute.xlu0 %944
    %947 = vset.pattern.permute.xlu0 1
    %948 = vperm.xlu0 %947, %v37
    %v949 = vpop.permute.xlu0 %948
    %951 = vset.pattern.permute.xlu0 1
    %952 = vperm.xlu0 %951, %v38
    %v953 = vpop.permute.xlu0 %952
    %955 = vset.pattern.permute.xlu0 1
    %956 = vperm.xlu0 %955, %v39
    %v957 = vpop.permute.xlu0 %956
    %959 = vset.pattern.permute.xlu0 1
    %960 = vperm.xlu0 %959, %v40
    %v961 = vpop.permute.xlu0 %960
    %963 = vset.pattern.permute.xlu0 1
    %964 = vperm.xlu0 %963, %v41
    %v965 = vpop.permute.xlu0 %964
    %967 = vset.pattern.permute.xlu0 1
    %968 = vperm.xlu0 %967, %v42
    %v969 = vpop.permute.xlu0 %968
    %vm971 = vcmp.gt.f32.partialorder %v938, %v941
    %vm972 = vcmp.gt.f32.partialorder %v938, %v945
    %vm973 = vcmp.gt.f32.partialorder %v938, %v949
    %vm974 = vcmp.gt.f32.partialorder %v938, %v953
    %vm975 = vcmp.gt.f32.partialorder %v938, %v957
    %vm976 = vcmp.gt.f32.partialorder %v938, %v961
    %vm977 = vcmp.gt.f32.partialorder %v938, %v965
    %vm978 = vcmp.gt.f32.partialorder %v938, %v969
    %vm979 = vmand %vm927, %vm971
    %vm980 = vmand %vm928, %vm972
    %vm981 = vmand %vm929, %vm973
    %vm982 = vmand %vm930, %vm974
    %vm983 = vmand %vm931, %vm975
    %vm984 = vmand %vm932, %vm976
    %vm985 = vmand %vm933, %vm977
    %vm986 = vmand %vm934, %vm978
    %987 = vset.pattern.permute.xlu0 5
    %988 = vperm.xlu0 %987, %v35
    %v989 = vpop.permute.xlu0 %988
    %991 = vset.pattern.permute.xlu0 5
    %992 = vperm.xlu0 %991, %v36
    %v993 = vpop.permute.xlu0 %992
    %995 = vset.pattern.permute.xlu0 5
    %996 = vperm.xlu0 %995, %v37
    %v997 = vpop.permute.xlu0 %996
    %999 = vset.pattern.permute.xlu0 5
    %1000 = vperm.xlu0 %999, %v38
    %v1001 = vpop.permute.xlu0 %1000
    %1003 = vset.pattern.permute.xlu0 5
    %1004 = vperm.xlu0 %1003, %v39
    %v1005 = vpop.permute.xlu0 %1004
    %1007 = vset.pattern.permute.xlu0 5
    %1008 = vperm.xlu0 %1007, %v40
    %v1009 = vpop.permute.xlu0 %1008
    %1011 = vset.pattern.permute.xlu0 5
    %1012 = vperm.xlu0 %1011, %v41
    %v1013 = vpop.permute.xlu0 %1012
    %1015 = vset.pattern.permute.xlu0 5
    %1016 = vperm.xlu0 %1015, %v42
    %v1017 = vpop.permute.xlu0 %1016
    %vm1019 = vcmp.lt.f32.partialorder %v938, %v989
    %vm1020 = vcmp.lt.f32.partialorder %v938, %v993
    %vm1021 = vcmp.lt.f32.partialorder %v938, %v997
    %vm1022 = vcmp.lt.f32.partialorder %v938, %v1001
    %vm1023 = vcmp.lt.f32.partialorder %v938, %v1005
    %vm1024 = vcmp.lt.f32.partialorder %v938, %v1009
    %vm1025 = vcmp.lt.f32.partialorder %v938, %v1013
    %vm1026 = vcmp.lt.f32.partialorder %v938, %v1017
    %vm1027 = vmand %vm979, %vm1019
    %vm1028 = vmand %vm980, %vm1020
    %vm1029 = vmand %vm981, %vm1021
    %vm1030 = vmand %vm982, %vm1022
    %vm1031 = vmand %vm983, %vm1023
    %vm1032 = vmand %vm984, %vm1024
    %vm1033 = vmand %vm985, %vm1025
    %vm1034 = vmand %vm986, %vm1026
    %v1035 = vlaneseq
    %v1036 = vshrl.u32 %v1035, 7
    %v1037 = vsub.s32 3, %v1036
    %v1038 = vrot.slane %v45, %v1037
    %1039 = vset.pattern.permute.xlu0 2
    %1040 = vperm.xlu0 %1039, %v35
    %v1041 = vpop.permute.xlu0 %1040
    %1043 = vset.pattern.permute.xlu0 2
    %1044 = vperm.xlu0 %1043, %v36
    %v1045 = vpop.permute.xlu0 %1044
    %1047 = vset.pattern.permute.xlu0 2
    %1048 = vperm.xlu0 %1047, %v37
    %v1049 = vpop.permute.xlu0 %1048
    %1051 = vset.pattern.permute.xlu0 2
    %1052 = vperm.xlu0 %1051, %v38
    %v1053 = vpop.permute.xlu0 %1052
    %1055 = vset.pattern.permute.xlu0 2
    %1056 = vperm.xlu0 %1055, %v39
    %v1057 = vpop.permute.xlu0 %1056
    %1059 = vset.pattern.permute.xlu0 2
    %1060 = vperm.xlu0 %1059, %v40
    %v1061 = vpop.permute.xlu0 %1060
    %1063 = vset.pattern.permute.xlu0 2
    %1064 = vperm.xlu0 %1063, %v41
    %v1065 = vpop.permute.xlu0 %1064
    %1067 = vset.pattern.permute.xlu0 2
    %1068 = vperm.xlu0 %1067, %v42
    %v1069 = vpop.permute.xlu0 %1068
    %vm1071 = vcmp.gt.f32.partialorder %v1038, %v1041
    %vm1072 = vcmp.gt.f32.partialorder %v1038, %v1045
    %vm1073 = vcmp.gt.f32.partialorder %v1038, %v1049
    %vm1074 = vcmp.gt.f32.partialorder %v1038, %v1053
    %vm1075 = vcmp.gt.f32.partialorder %v1038, %v1057
    %vm1076 = vcmp.gt.f32.partialorder %v1038, %v1061
    %vm1077 = vcmp.gt.f32.partialorder %v1038, %v1065
    %vm1078 = vcmp.gt.f32.partialorder %v1038, %v1069
    %vm1079 = vmand %vm1027, %vm1071
    %vm1080 = vmand %vm1028, %vm1072
    %vm1081 = vmand %vm1029, %vm1073
    %vm1082 = vmand %vm1030, %vm1074
    %vm1083 = vmand %vm1031, %vm1075
    %vm1084 = vmand %vm1032, %vm1076
    %vm1085 = vmand %vm1033, %vm1077
    %vm1086 = vmand %vm1034, %vm1078
    %1087 = vset.pattern.permute.xlu0 6
    %1088 = vperm.xlu0 %1087, %v35
    %v1089 = vpop.permute.xlu0 %1088
    %1091 = vset.pattern.permute.xlu0 6
    %1092 = vperm.xlu0 %1091, %v36
    %v1093 = vpop.permute.xlu0 %1092
    %1095 = vset.pattern.permute.xlu0 6
    %1096 = vperm.xlu0 %1095, %v37
    %v1097 = vpop.permute.xlu0 %1096
    %1099 = vset.pattern.permute.xlu0 6
    %1100 = vperm.xlu0 %1099, %v38
    %v1101 = vpop.permute.xlu0 %1100
    %1103 = vset.pattern.permute.xlu0 6
    %1104 = vperm.xlu0 %1103, %v39
    %v1105 = vpop.permute.xlu0 %1104
    %1107 = vset.pattern.permute.xlu0 6
    %1108 = vperm.xlu0 %1107, %v40
    %v1109 = vpop.permute.xlu0 %1108
    %1111 = vset.pattern.permute.xlu0 6
    %1112 = vperm.xlu0 %1111, %v41
    %v1113 = vpop.permute.xlu0 %1112
    %1115 = vset.pattern.permute.xlu0 6
    %1116 = vperm.xlu0 %1115, %v42
    %v1117 = vpop.permute.xlu0 %1116
    %vm1119 = vcmp.lt.f32.partialorder %v1038, %v1089
    %vm1120 = vcmp.lt.f32.partialorder %v1038, %v1093
    %vm1121 = vcmp.lt.f32.partialorder %v1038, %v1097
    %vm1122 = vcmp.lt.f32.partialorder %v1038, %v1101
    %vm1123 = vcmp.lt.f32.partialorder %v1038, %v1105
    %vm1124 = vcmp.lt.f32.partialorder %v1038, %v1109
    %vm1125 = vcmp.lt.f32.partialorder %v1038, %v1113
    %vm1126 = vcmp.lt.f32.partialorder %v1038, %v1117
    %vm1127 = vmand %vm1079, %vm1119
    %vm1128 = vmand %vm1080, %vm1120
    %vm1129 = vmand %vm1081, %vm1121
    %vm1130 = vmand %vm1082, %vm1122
    %vm1131 = vmand %vm1083, %vm1123
    %vm1132 = vmand %vm1084, %vm1124
    %vm1133 = vmand %vm1085, %vm1125
    %vm1134 = vmand %vm1086, %vm1126
    %v1135 = vlaneseq
    %v1136 = vshrl.u32 %v1135, 7
    %v1137 = vsub.s32 4, %v1136
    %v1138 = vrot.slane %v45, %v1137
    %1139 = vset.pattern.permute.xlu0 3
    %1140 = vperm.xlu0 %1139, %v35
    %v1141 = vpop.permute.xlu0 %1140
    %1143 = vset.pattern.permute.xlu0 3
    %1144 = vperm.xlu0 %1143, %v36
    %v1145 = vpop.permute.xlu0 %1144
    %1147 = vset.pattern.permute.xlu0 3
    %1148 = vperm.xlu0 %1147, %v37
    %v1149 = vpop.permute.xlu0 %1148
    %1151 = vset.pattern.permute.xlu0 3
    %1152 = vperm.xlu0 %1151, %v38
    %v1153 = vpop.permute.xlu0 %1152
    %1155 = vset.pattern.permute.xlu0 3
    %1156 = vperm.xlu0 %1155, %v39
    %v1157 = vpop.permute.xlu0 %1156
    %1159 = vset.pattern.permute.xlu0 3
    %1160 = vperm.xlu0 %1159, %v40
    %v1161 = vpop.permute.xlu0 %1160
    %1163 = vset.pattern.permute.xlu0 3
    %1164 = vperm.xlu0 %1163, %v41
    %v1165 = vpop.permute.xlu0 %1164
    %1167 = vset.pattern.permute.xlu0 3
    %1168 = vperm.xlu0 %1167, %v42
    %v1169 = vpop.permute.xlu0 %1168
    %vm1171 = vcmp.gt.f32.partialorder %v1138, %v1141
    %vm1172 = vcmp.gt.f32.partialorder %v1138, %v1145
    %vm1173 = vcmp.gt.f32.partialorder %v1138, %v1149
    %vm1174 = vcmp.gt.f32.partialorder %v1138, %v1153
    %vm1175 = vcmp.gt.f32.partialorder %v1138, %v1157
    %vm1176 = vcmp.gt.f32.partialorder %v1138, %v1161
    %vm1177 = vcmp.gt.f32.partialorder %v1138, %v1165
    %vm1178 = vcmp.gt.f32.partialorder %v1138, %v1169
    %vm1179 = vmand %vm1127, %vm1171
    %vm1180 = vmand %vm1128, %vm1172
    %vm1181 = vmand %vm1129, %vm1173
    %vm1182 = vmand %vm1130, %vm1174
    %vm1183 = vmand %vm1131, %vm1175
    %vm1184 = vmand %vm1132, %vm1176
    %vm1185 = vmand %vm1133, %vm1177
    %vm1186 = vmand %vm1134, %vm1178
    %1187 = vset.pattern.permute.xlu0 7
    %1188 = vperm.xlu0 %1187, %v35
    %v1189 = vpop.permute.xlu0 %1188
    %1191 = vset.pattern.permute.xlu0 7
    %1192 = vperm.xlu0 %1191, %v36
    %v1193 = vpop.permute.xlu0 %1192
    %1195 = vset.pattern.permute.xlu0 7
    %1196 = vperm.xlu0 %1195, %v37
    %v1197 = vpop.permute.xlu0 %1196
    %1199 = vset.pattern.permute.xlu0 7
    %1200 = vperm.xlu0 %1199, %v38
    %v1201 = vpop.permute.xlu0 %1200
    %1203 = vset.pattern.permute.xlu0 7
    %1204 = vperm.xlu0 %1203, %v39
    %v1205 = vpop.permute.xlu0 %1204
    %1207 = vset.pattern.permute.xlu0 7
    %1208 = vperm.xlu0 %1207, %v40
    %v1209 = vpop.permute.xlu0 %1208
    %1211 = vset.pattern.permute.xlu0 7
    %1212 = vperm.xlu0 %1211, %v41
    %v1213 = vpop.permute.xlu0 %1212
    %1215 = vset.pattern.permute.xlu0 7
    %1216 = vperm.xlu0 %1215, %v42
    %v1217 = vpop.permute.xlu0 %1216
    %vm1219 = vcmp.lt.f32.partialorder %v1138, %v1189
    %vm1220 = vcmp.lt.f32.partialorder %v1138, %v1193
    %vm1221 = vcmp.lt.f32.partialorder %v1138, %v1197
    %vm1222 = vcmp.lt.f32.partialorder %v1138, %v1201
    %vm1223 = vcmp.lt.f32.partialorder %v1138, %v1205
    %vm1224 = vcmp.lt.f32.partialorder %v1138, %v1209
    %vm1225 = vcmp.lt.f32.partialorder %v1138, %v1213
    %vm1226 = vcmp.lt.f32.partialorder %v1138, %v1217
    %vm1227 = vmand %vm1179, %vm1219
    %vm1228 = vmand %vm1180, %vm1220
    %vm1229 = vmand %vm1181, %vm1221
    %vm1230 = vmand %vm1182, %vm1222
    %vm1231 = vmand %vm1183, %vm1223
    %vm1232 = vmand %vm1184, %vm1224
    %vm1233 = vmand %vm1185, %vm1225
    %vm1234 = vmand %vm1186, %vm1226
    %v1235 = vsub.f32 0.0, %v790
    %v1236 = vsub.f32 0.0, %v796
    %v1237 = vsub.f32 0.0, %v802
    %v1238 = vsub.f32 0.0, %v808
    %v1239 = vsub.f32 0.0, %v814
    %v1240 = vsub.f32 0.0, %v820
    %v1241 = vsub.f32 0.0, %v826
    %v1242 = vsub.f32 0.0, %v832
    %v1243 = vmul.f32 %v1235, 1.442695
    %v1244 = vpow.pop %v1243
    %v1245 = vmul.f32 %v1236, 1.442695
    %v1246 = vpow.pop %v1245
    %v1247 = vmul.f32 %v1237, 1.442695
    %v1248 = vpow.pop %v1247
    %v1249 = vmul.f32 %v1238, 1.442695
    %v1250 = vpow.pop %v1249
    %v1251 = vmul.f32 %v1239, 1.442695
    %v1252 = vpow.pop %v1251
    %v1253 = vmul.f32 %v1240, 1.442695
    %v1254 = vpow.pop %v1253
    %v1255 = vmul.f32 %v1241, 1.442695
    %v1256 = vpow.pop %v1255
    %v1257 = vmul.f32 %v1242, 1.442695
    %v1258 = vpow.pop %v1257
    %v1259 = vsel %vm1227, %v1244, 0.0
    %v1260 = vsel %vm1228, %v1246, 0.0
    %v1261 = vsel %vm1229, %v1248, 0.0
    %v1262 = vsel %vm1230, %v1250, 0.0
    %v1263 = vsel %vm1231, %v1252, 0.0
    %v1264 = vsel %vm1232, %v1254, 0.0
    %v1265 = vsel %vm1233, %v1256, 0.0
    %v1266 = vsel %vm1234, %v1258, 0.0
    %vm1267 = vcmask 523264
    %v1269 = vsel %vm1267, %v43, 0
    %1271 = vmatprep.subr.mxu0 0.0
    %1272 = vmatpush1.msra.mxu0 0.0
    %1273 = vmatprep.subr.mxu0 0.0
    %1274 = vmatpush1.msra.mxu0 0.0
    %1275 = vmatprep.subr.mxu0 0.0
    %1276 = vmatpush1.msra.mxu0 0.0
    %1277 = vmatprep.subr.mxu0 0.0
    %1278 = vmatpush1.msra.mxu0 0.0
    %1279 = vmatprep.subr.mxu0 0.0
    %1280 = vmatpush1.msra.mxu0 0.0
    %1281 = vmatprep.subr.mxu0 0.0
    %1282 = vmatpush1.msra.mxu0 0.0
    %1283 = vmatprep.subr.mxu0 0.0
    %1284 = vmatpush1.msra.mxu0 0.0
    %1285 = vmatprep.subr.mxu0 0.0
    %1286 = vmatpush1.msra.mxu0 0.0
    %1287 = vmatprep.subr.mxu0 0.0
    %v1288 = vand.u32 %v1266, 4294901760
    %1289 = vmatpush1.msra.mxu0 %v1288
    %1290 = vmatprep.subr.mxu0 0.0
    %v1291 = vand.u32 %v1265, 4294901760
    %1292 = vmatpush1.msra.mxu0 %v1291
    %1293 = vmatprep.subr.mxu0 0.0
    %v1294 = vand.u32 %v1264, 4294901760
    %1295 = vmatpush1.msra.mxu0 %v1294
    %1296 = vmatprep.subr.mxu0 0.0
    %v1297 = vand.u32 %v1263, 4294901760
    %1298 = vmatpush1.msra.mxu0 %v1297
    %1299 = vmatprep.subr.mxu0 0.0
    %v1300 = vand.u32 %v1262, 4294901760
    %1301 = vmatpush1.msra.mxu0 %v1300
    %1302 = vmatprep.subr.mxu0 0.0
    %v1303 = vand.u32 %v1261, 4294901760
    %1304 = vmatpush1.msra.mxu0 %v1303
    %1305 = vmatprep.subr.mxu0 0.0
    %v1306 = vand.u32 %v1260, 4294901760
    %1307 = vmatpush1.msra.mxu0 %v1306
    %1308 = vmatprep.subr.mxu0 0.0
    %v1309 = vand.u32 %v1259, 4294901760
    %1310 = vmatpush1.msra.mxu0 %v1309
    %1311 = vmatprep.subr.mxu0 0.0
    %1312 = vmatpush2.msra.mxu0 0.0
    %1313 = vmatprep.subr.mxu0 0.0
    %1314 = vmatpush2.msra.mxu0 0.0
    %1315 = vmatprep.subr.mxu0 0.0
    %1316 = vmatpush2.msra.mxu0 0.0
    %1317 = vmatprep.subr.mxu0 0.0
    %1318 = vmatpush2.msra.mxu0 0.0
    %1319 = vmatprep.subr.mxu0 0.0
    %1320 = vmatpush2.msra.mxu0 0.0
    %1321 = vmatprep.subr.mxu0 0.0
    %1322 = vmatpush2.msra.mxu0 0.0
    %1323 = vmatprep.subr.mxu0 0.0
    %1324 = vmatpush2.msra.mxu0 0.0
    %1325 = vmatprep.subr.mxu0 0.0
    %1326 = vmatpush2.msra.mxu0 0.0
    %1327 = vmatprep.subr.mxu0 0.0
    %1328 = vmatpush2.msra.mxu0 0.0
    %1329 = vmatprep.subr.mxu0 0.0
    %1330 = vmatpush2.msra.mxu0 0.0
    %1331 = vmatprep.subr.mxu0 0.0
    %1332 = vmatpush2.msra.mxu0 0.0
    %1333 = vmatprep.subr.mxu0 0.0
    %1334 = vmatpush2.msra.mxu0 0.0
    %1335 = vmatprep.subr.mxu0 0.0
    %1336 = vmatpush2.msra.mxu0 0.0
    %1337 = vmatprep.subr.mxu0 0.0
    %1338 = vmatpush2.msra.mxu0 0.0
    %1339 = vmatprep.subr.mxu0 0.0
    %1340 = vmatpush2.msra.mxu0 0.0
    %1341 = vmatprep.subr.mxu0 0.0
    %1342 = vmatpush2.msra.mxu0 0.0
    %1343 = vmatprep.mubr.f32.mxu0 0.0
    %v1344 = vand.u32 %v1269, 4294901760
    %v1345 = vsub.f32 %v1269, %v1344
    %v1346 = vand.u32 %v1345, 4294901760
    %v1347 = vsub.f32 %v1345, %v1346
    %v1348 = vand.u32 %v1347, 4294901760
    %1349 = vmatmul.mubr.f32.gmra.mxu0 %v1348
    %v1350 = vpop.f32.mrf.mxu0
    %v1351 = vadd.f32 0.0, %v1350
    %v1352 = vpop.f32.mrf.mxu0
    %1353 = vdwg.mxu0
    %1354 = vmatprep.subr.mxu0 0.0
    %1355 = vmatpush1.msra.mxu0 0.0
    %1356 = vmatprep.subr.mxu0 0.0
    %1357 = vmatpush1.msra.mxu0 0.0
    %1358 = vmatprep.subr.mxu0 0.0
    %1359 = vmatpush1.msra.mxu0 0.0
    %1360 = vmatprep.subr.mxu0 0.0
    %1361 = vmatpush1.msra.mxu0 0.0
    %1362 = vmatprep.subr.mxu0 0.0
    %1363 = vmatpush1.msra.mxu0 0.0
    %1364 = vmatprep.subr.mxu0 0.0
    %1365 = vmatpush1.msra.mxu0 0.0
    %1366 = vmatprep.subr.mxu0 0.0
    %1367 = vmatpush1.msra.mxu0 0.0
    %1368 = vmatprep.subr.mxu0 0.0
    %1369 = vmatpush1.msra.mxu0 0.0
    %1370 = vmatprep.subr.mxu0 0.0
    %v1371 = vand.u32 %v1266, 4294901760
    %v1372 = vsub.f32 %v1266, %v1371
    %v1373 = vand.u32 %v1372, 4294901760
    %v1374 = vsub.f32 %v1372, %v1373
    %v1375 = vand.u32 %v1374, 4294901760
    %1376 = vmatpush1.msra.mxu0 %v1375
    %1377 = vmatprep.subr.mxu0 0.0
    %v1378 = vand.u32 %v1265, 4294901760
    %v1379 = vsub.f32 %v1265, %v1378
    %v1380 = vand.u32 %v1379, 4294901760
    %v1381 = vsub.f32 %v1379, %v1380
    %v1382 = vand.u32 %v1381, 4294901760
    %1383 = vmatpush1.msra.mxu0 %v1382
    %1384 = vmatprep.subr.mxu0 0.0
    %v1385 = vand.u32 %v1264, 4294901760
    %v1386 = vsub.f32 %v1264, %v1385
    %v1387 = vand.u32 %v1386, 4294901760
    %v1388 = vsub.f32 %v1386, %v1387
    %v1389 = vand.u32 %v1388, 4294901760
    %1390 = vmatpush1.msra.mxu0 %v1389
    %1391 = vmatprep.subr.mxu0 0.0
    %v1392 = vand.u32 %v1263, 4294901760
    %v1393 = vsub.f32 %v1263, %v1392
    %v1394 = vand.u32 %v1393, 4294901760
    %v1395 = vsub.f32 %v1393, %v1394
    %v1396 = vand.u32 %v1395, 4294901760
    %1397 = vmatpush1.msra.mxu0 %v1396
    %1398 = vmatprep.subr.mxu0 0.0
    %v1399 = vand.u32 %v1262, 4294901760
    %v1400 = vsub.f32 %v1262, %v1399
    %v1401 = vand.u32 %v1400, 4294901760
    %v1402 = vsub.f32 %v1400, %v1401
    %v1403 = vand.u32 %v1402, 4294901760
    %1404 = vmatpush1.msra.mxu0 %v1403
    %1405 = vmatprep.subr.mxu0 0.0
    %v1406 = vand.u32 %v1261, 4294901760
    %v1407 = vsub.f32 %v1261, %v1406
    %v1408 = vand.u32 %v1407, 4294901760
    %v1409 = vsub.f32 %v1407, %v1408
    %v1410 = vand.u32 %v1409, 4294901760
    %1411 = vmatpush1.msra.mxu0 %v1410
    %1412 = vmatprep.subr.mxu0 0.0
    %v1413 = vand.u32 %v1260, 4294901760
    %v1414 = vsub.f32 %v1260, %v1413
    %v1415 = vand.u32 %v1414, 4294901760
    %v1416 = vsub.f32 %v1414, %v1415
    %v1417 = vand.u32 %v1416, 4294901760
    %1418 = vmatpush1.msra.mxu0 %v1417
    %1419 = vmatprep.subr.mxu0 0.0
    %v1420 = vand.u32 %v1259, 4294901760
    %v1421 = vsub.f32 %v1259, %v1420
    %v1422 = vand.u32 %v1421, 4294901760
    %v1423 = vsub.f32 %v1421, %v1422
    %v1424 = vand.u32 %v1423, 4294901760
    %1425 = vmatpush1.msra.mxu0 %v1424
    %1426 = vmatprep.subr.mxu0 0.0
    %1427 = vmatpush2.msra.mxu0 0.0
    %1428 = vmatprep.subr.mxu0 0.0
    %1429 = vmatpush2.msra.mxu0 0.0
    %1430 = vmatprep.subr.mxu0 0.0
    %1431 = vmatpush2.msra.mxu0 0.0
    %1432 = vmatprep.subr.mxu0 0.0
    %1433 = vmatpush2.msra.mxu0 0.0
    %1434 = vmatprep.subr.mxu0 0.0
    %1435 = vmatpush2.msra.mxu0 0.0
    %1436 = vmatprep.subr.mxu0 0.0
    %1437 = vmatpush2.msra.mxu0 0.0
    %1438 = vmatprep.subr.mxu0 0.0
    %1439 = vmatpush2.msra.mxu0 0.0
    %1440 = vmatprep.subr.mxu0 0.0
    %1441 = vmatpush2.msra.mxu0 0.0
    %1442 = vmatprep.subr.mxu0 0.0
    %1443 = vmatpush2.msra.mxu0 0.0
    %1444 = vmatprep.subr.mxu0 0.0
    %1445 = vmatpush2.msra.mxu0 0.0
    %1446 = vmatprep.subr.mxu0 0.0
    %1447 = vmatpush2.msra.mxu0 0.0
    %1448 = vmatprep.subr.mxu0 0.0
    %1449 = vmatpush2.msra.mxu0 0.0
    %1450 = vmatprep.subr.mxu0 0.0
    %1451 = vmatpush2.msra.mxu0 0.0
    %1452 = vmatprep.subr.mxu0 0.0
    %1453 = vmatpush2.msra.mxu0 0.0
    %1454 = vmatprep.subr.mxu0 0.0
    %1455 = vmatpush2.msra.mxu0 0.0
    %1456 = vmatprep.subr.mxu0 0.0
    %1457 = vmatpush2.msra.mxu0 0.0
    %1458 = vmatprep.mubr.f32.mxu0 0.0
    %v1459 = vand.u32 %v1269, 4294901760
    %1460 = vmatmul.mubr.f32.gmra.mxu0 %v1459
    %v1461 = vpop.f32.mrf.mxu0
    %v1462 = vadd.f32 %v1351, %v1461
    %v1463 = vpop.f32.mrf.mxu0
    %1464 = vdwg.mxu0
    %1465 = vmatprep.subr.mxu0 0.0
    %1466 = vmatpush1.msra.mxu0 0.0
    %1467 = vmatprep.subr.mxu0 0.0
    %1468 = vmatpush1.msra.mxu0 0.0
    %1469 = vmatprep.subr.mxu0 0.0
    %1470 = vmatpush1.msra.mxu0 0.0
    %1471 = vmatprep.subr.mxu0 0.0
    %1472 = vmatpush1.msra.mxu0 0.0
    %1473 = vmatprep.subr.mxu0 0.0
    %1474 = vmatpush1.msra.mxu0 0.0
    %1475 = vmatprep.subr.mxu0 0.0
    %1476 = vmatpush1.msra.mxu0 0.0
    %1477 = vmatprep.subr.mxu0 0.0
    %1478 = vmatpush1.msra.mxu0 0.0
    %1479 = vmatprep.subr.mxu0 0.0
    %1480 = vmatpush1.msra.mxu0 0.0
    %1481 = vmatprep.subr.mxu0 0.0
    %v1482 = vand.u32 %v1266, 4294901760
    %v1483 = vsub.f32 %v1266, %v1482
    %1484 = vmatpush1.msra.mxu0 %v1483
    %1485 = vmatprep.subr.mxu0 0.0
    %v1486 = vand.u32 %v1265, 4294901760
    %v1487 = vsub.f32 %v1265, %v1486
    %1488 = vmatpush1.msra.mxu0 %v1487
    %1489 = vmatprep.subr.mxu0 0.0
    %v1490 = vand.u32 %v1264, 4294901760
    %v1491 = vsub.f32 %v1264, %v1490
    %1492 = vmatpush1.msra.mxu0 %v1491
    %1493 = vmatprep.subr.mxu0 0.0
    %v1494 = vand.u32 %v1263, 4294901760
    %v1495 = vsub.f32 %v1263, %v1494
    %1496 = vmatpush1.msra.mxu0 %v1495
    %1497 = vmatprep.subr.mxu0 0.0
    %v1498 = vand.u32 %v1262, 4294901760
    %v1499 = vsub.f32 %v1262, %v1498
    %1500 = vmatpush1.msra.mxu0 %v1499
    %1501 = vmatprep.subr.mxu0 0.0
    %v1502 = vand.u32 %v1261, 4294901760
    %v1503 = vsub.f32 %v1261, %v1502
    %1504 = vmatpush1.msra.mxu0 %v1503
    %1505 = vmatprep.subr.mxu0 0.0
    %v1506 = vand.u32 %v1260, 4294901760
    %v1507 = vsub.f32 %v1260, %v1506
    %1508 = vmatpush1.msra.mxu0 %v1507
    %1509 = vmatprep.subr.mxu0 0.0
    %v1510 = vand.u32 %v1259, 4294901760
    %v1511 = vsub.f32 %v1259, %v1510
    %1512 = vmatpush1.msra.mxu0 %v1511
    %1513 = vmatprep.subr.mxu0 0.0
    %1514 = vmatpush2.msra.mxu0 0.0
    %1515 = vmatprep.subr.mxu0 0.0
    %1516 = vmatpush2.msra.mxu0 0.0
    %1517 = vmatprep.subr.mxu0 0.0
    %1518 = vmatpush2.msra.mxu0 0.0
    %1519 = vmatprep.subr.mxu0 0.0
    %1520 = vmatpush2.msra.mxu0 0.0
    %1521 = vmatprep.subr.mxu0 0.0
    %1522 = vmatpush2.msra.mxu0 0.0
    %1523 = vmatprep.subr.mxu0 0.0
    %1524 = vmatpush2.msra.mxu0 0.0
    %1525 = vmatprep.subr.mxu0 0.0
    %1526 = vmatpush2.msra.mxu0 0.0
    %1527 = vmatprep.subr.mxu0 0.0
    %1528 = vmatpush2.msra.mxu0 0.0
    %1529 = vmatprep.subr.mxu0 0.0
    %1530 = vmatpush2.msra.mxu0 0.0
    %1531 = vmatprep.subr.mxu0 0.0
    %1532 = vmatpush2.msra.mxu0 0.0
    %1533 = vmatprep.subr.mxu0 0.0
    %1534 = vmatpush2.msra.mxu0 0.0
    %1535 = vmatprep.subr.mxu0 0.0
    %1536 = vmatpush2.msra.mxu0 0.0
    %1537 = vmatprep.subr.mxu0 0.0
    %1538 = vmatpush2.msra.mxu0 0.0
    %1539 = vmatprep.subr.mxu0 0.0
    %1540 = vmatpush2.msra.mxu0 0.0
    %1541 = vmatprep.subr.mxu0 0.0
    %1542 = vmatpush2.msra.mxu0 0.0
    %1543 = vmatprep.subr.mxu0 0.0
    %1544 = vmatpush2.msra.mxu0 0.0
    %1545 = vmatprep.mubr.f32.mxu0 0.0
    %v1546 = vand.u32 %v1269, 4294901760
    %v1547 = vsub.f32 %v1269, %v1546
    %1548 = vmatmul.mubr.f32.gmra.mxu0 %v1547
    %v1549 = vpop.f32.mrf.mxu0
    %v1550 = vadd.f32 %v1462, %v1549
    %v1551 = vpop.f32.mrf.mxu0
    %1552 = vdwg.mxu0
    %1553 = vmatprep.subr.mxu0 0.0
    %1554 = vmatpush1.msra.mxu0 0.0
    %1555 = vmatprep.subr.mxu0 0.0
    %1556 = vmatpush1.msra.mxu0 0.0
    %1557 = vmatprep.subr.mxu0 0.0
    %1558 = vmatpush1.msra.mxu0 0.0
    %1559 = vmatprep.subr.mxu0 0.0
    %1560 = vmatpush1.msra.mxu0 0.0
    %1561 = vmatprep.subr.mxu0 0.0
    %1562 = vmatpush1.msra.mxu0 0.0
    %1563 = vmatprep.subr.mxu0 0.0
    %1564 = vmatpush1.msra.mxu0 0.0
    %1565 = vmatprep.subr.mxu0 0.0
    %1566 = vmatpush1.msra.mxu0 0.0
    %1567 = vmatprep.subr.mxu0 0.0
    %1568 = vmatpush1.msra.mxu0 0.0
    %1569 = vmatprep.subr.mxu0 0.0
    %v1570 = vand.u32 %v1266, 4294901760
    %1571 = vmatpush1.msra.mxu0 %v1570
    %1572 = vmatprep.subr.mxu0 0.0
    %v1573 = vand.u32 %v1265, 4294901760
    %1574 = vmatpush1.msra.mxu0 %v1573
    %1575 = vmatprep.subr.mxu0 0.0
    %v1576 = vand.u32 %v1264, 4294901760
    %1577 = vmatpush1.msra.mxu0 %v1576
    %1578 = vmatprep.subr.mxu0 0.0
    %v1579 = vand.u32 %v1263, 4294901760
    %1580 = vmatpush1.msra.mxu0 %v1579
    %1581 = vmatprep.subr.mxu0 0.0
    %v1582 = vand.u32 %v1262, 4294901760
    %1583 = vmatpush1.msra.mxu0 %v1582
    %1584 = vmatprep.subr.mxu0 0.0
    %v1585 = vand.u32 %v1261, 4294901760
    %1586 = vmatpush1.msra.mxu0 %v1585
    %1587 = vmatprep.subr.mxu0 0.0
    %v1588 = vand.u32 %v1260, 4294901760
    %1589 = vmatpush1.msra.mxu0 %v1588
    %1590 = vmatprep.subr.mxu0 0.0
    %v1591 = vand.u32 %v1259, 4294901760
    %1592 = vmatpush1.msra.mxu0 %v1591
    %1593 = vmatprep.subr.mxu0 0.0
    %1594 = vmatpush2.msra.mxu0 0.0
    %1595 = vmatprep.subr.mxu0 0.0
    %1596 = vmatpush2.msra.mxu0 0.0
    %1597 = vmatprep.subr.mxu0 0.0
    %1598 = vmatpush2.msra.mxu0 0.0
    %1599 = vmatprep.subr.mxu0 0.0
    %1600 = vmatpush2.msra.mxu0 0.0
    %1601 = vmatprep.subr.mxu0 0.0
    %1602 = vmatpush2.msra.mxu0 0.0
    %1603 = vmatprep.subr.mxu0 0.0
    %1604 = vmatpush2.msra.mxu0 0.0
    %1605 = vmatprep.subr.mxu0 0.0
    %1606 = vmatpush2.msra.mxu0 0.0
    %1607 = vmatprep.subr.mxu0 0.0
    %1608 = vmatpush2.msra.mxu0 0.0
    %1609 = vmatprep.subr.mxu0 0.0
    %1610 = vmatpush2.msra.mxu0 0.0
    %1611 = vmatprep.subr.mxu0 0.0
    %1612 = vmatpush2.msra.mxu0 0.0
    %1613 = vmatprep.subr.mxu0 0.0
    %1614 = vmatpush2.msra.mxu0 0.0
    %1615 = vmatprep.subr.mxu0 0.0
    %1616 = vmatpush2.msra.mxu0 0.0
    %1617 = vmatprep.subr.mxu0 0.0
    %1618 = vmatpush2.msra.mxu0 0.0
    %1619 = vmatprep.subr.mxu0 0.0
    %1620 = vmatpush2.msra.mxu0 0.0
    %1621 = vmatprep.subr.mxu0 0.0
    %1622 = vmatpush2.msra.mxu0 0.0
    %1623 = vmatprep.subr.mxu0 0.0
    %1624 = vmatpush2.msra.mxu0 0.0
    %1625 = vmatprep.mubr.f32.mxu0 0.0
    %v1626 = vand.u32 %v1269, 4294901760
    %v1627 = vsub.f32 %v1269, %v1626
    %v1628 = vand.u32 %v1627, 4294901760
    %1629 = vmatmul.mubr.f32.gmra.mxu0 %v1628
    %v1630 = vpop.f32.mrf.mxu0
    %v1631 = vadd.f32 %v1550, %v1630
    %v1632 = vpop.f32.mrf.mxu0
    %1633 = vdwg.mxu0
    %1634 = vmatprep.subr.mxu0 0.0
    %1635 = vmatpush1.msra.mxu0 0.0
    %1636 = vmatprep.subr.mxu0 0.0
    %1637 = vmatpush1.msra.mxu0 0.0
    %1638 = vmatprep.subr.mxu0 0.0
    %1639 = vmatpush1.msra.mxu0 0.0
    %1640 = vmatprep.subr.mxu0 0.0
    %1641 = vmatpush1.msra.mxu0 0.0
    %1642 = vmatprep.subr.mxu0 0.0
    %1643 = vmatpush1.msra.mxu0 0.0
    %1644 = vmatprep.subr.mxu0 0.0
    %1645 = vmatpush1.msra.mxu0 0.0
    %1646 = vmatprep.subr.mxu0 0.0
    %1647 = vmatpush1.msra.mxu0 0.0
    %1648 = vmatprep.subr.mxu0 0.0
    %1649 = vmatpush1.msra.mxu0 0.0
    %1650 = vmatprep.subr.mxu0 0.0
    %v1651 = vand.u32 %v1266, 4294901760
    %v1652 = vsub.f32 %v1266, %v1651
    %v1653 = vand.u32 %v1652, 4294901760
    %1654 = vmatpush1.msra.mxu0 %v1653
    %1655 = vmatprep.subr.mxu0 0.0
    %v1656 = vand.u32 %v1265, 4294901760
    %v1657 = vsub.f32 %v1265, %v1656
    %v1658 = vand.u32 %v1657, 4294901760
    %1659 = vmatpush1.msra.mxu0 %v1658
    %1660 = vmatprep.subr.mxu0 0.0
    %v1661 = vand.u32 %v1264, 4294901760
    %v1662 = vsub.f32 %v1264, %v1661
    %v1663 = vand.u32 %v1662, 4294901760
    %1664 = vmatpush1.msra.mxu0 %v1663
    %1665 = vmatprep.subr.mxu0 0.0
    %v1666 = vand.u32 %v1263, 4294901760
    %v1667 = vsub.f32 %v1263, %v1666
    %v1668 = vand.u32 %v1667, 4294901760
    %1669 = vmatpush1.msra.mxu0 %v1668
    %1670 = vmatprep.subr.mxu0 0.0
    %v1671 = vand.u32 %v1262, 4294901760
    %v1672 = vsub.f32 %v1262, %v1671
    %v1673 = vand.u32 %v1672, 4294901760
    %1674 = vmatpush1.msra.mxu0 %v1673
    %1675 = vmatprep.subr.mxu0 0.0
    %v1676 = vand.u32 %v1261, 4294901760
    %v1677 = vsub.f32 %v1261, %v1676
    %v1678 = vand.u32 %v1677, 4294901760
    %1679 = vmatpush1.msra.mxu0 %v1678
    %1680 = vmatprep.subr.mxu0 0.0
    %v1681 = vand.u32 %v1260, 4294901760
    %v1682 = vsub.f32 %v1260, %v1681
    %v1683 = vand.u32 %v1682, 4294901760
    %1684 = vmatpush1.msra.mxu0 %v1683
    %1685 = vmatprep.subr.mxu0 0.0
    %v1686 = vand.u32 %v1259, 4294901760
    %v1687 = vsub.f32 %v1259, %v1686
    %v1688 = vand.u32 %v1687, 4294901760
    %1689 = vmatpush1.msra.mxu0 %v1688
    %1690 = vmatprep.subr.mxu0 0.0
    %1691 = vmatpush2.msra.mxu0 0.0
    %1692 = vmatprep.subr.mxu0 0.0
    %1693 = vmatpush2.msra.mxu0 0.0
    %1694 = vmatprep.subr.mxu0 0.0
    %1695 = vmatpush2.msra.mxu0 0.0
    %1696 = vmatprep.subr.mxu0 0.0
    %1697 = vmatpush2.msra.mxu0 0.0
    %1698 = vmatprep.subr.mxu0 0.0
    %1699 = vmatpush2.msra.mxu0 0.0
    %1700 = vmatprep.subr.mxu0 0.0
    %1701 = vmatpush2.msra.mxu0 0.0
    %1702 = vmatprep.subr.mxu0 0.0
    %1703 = vmatpush2.msra.mxu0 0.0
    %1704 = vmatprep.subr.mxu0 0.0
    %1705 = vmatpush2.msra.mxu0 0.0
    %1706 = vmatprep.subr.mxu0 0.0
    %1707 = vmatpush2.msra.mxu0 0.0
    %1708 = vmatprep.subr.mxu0 0.0
    %1709 = vmatpush2.msra.mxu0 0.0
    %1710 = vmatprep.subr.mxu0 0.0
    %1711 = vmatpush2.msra.mxu0 0.0
    %1712 = vmatprep.subr.mxu0 0.0
    %1713 = vmatpush2.msra.mxu0 0.0
    %1714 = vmatprep.subr.mxu0 0.0
    %1715 = vmatpush2.msra.mxu0 0.0
    %1716 = vmatprep.subr.mxu0 0.0
    %1717 = vmatpush2.msra.mxu0 0.0
    %1718 = vmatprep.subr.mxu0 0.0
    %1719 = vmatpush2.msra.mxu0 0.0
    %1720 = vmatprep.subr.mxu0 0.0
    %1721 = vmatpush2.msra.mxu0 0.0
    %1722 = vmatprep.mubr.f32.mxu0 0.0
    %v1723 = vand.u32 %v1269, 4294901760
    %1724 = vmatmul.mubr.f32.gmra.mxu0 %v1723
    %v1725 = vpop.f32.mrf.mxu0
    %v1726 = vadd.f32 %v1631, %v1725
    %v1727 = vpop.f32.mrf.mxu0
    %1728 = vdwg.mxu0
    %1729 = vmatprep.subr.mxu0 0.0
    %1730 = vmatpush1.msra.mxu0 0.0
    %1731 = vmatprep.subr.mxu0 0.0
    %1732 = vmatpush1.msra.mxu0 0.0
    %1733 = vmatprep.subr.mxu0 0.0
    %1734 = vmatpush1.msra.mxu0 0.0
    %1735 = vmatprep.subr.mxu0 0.0
    %1736 = vmatpush1.msra.mxu0 0.0
    %1737 = vmatprep.subr.mxu0 0.0
    %1738 = vmatpush1.msra.mxu0 0.0
    %1739 = vmatprep.subr.mxu0 0.0
    %1740 = vmatpush1.msra.mxu0 0.0
    %1741 = vmatprep.subr.mxu0 0.0
    %1742 = vmatpush1.msra.mxu0 0.0
    %1743 = vmatprep.subr.mxu0 0.0
    %1744 = vmatpush1.msra.mxu0 0.0
    %1745 = vmatprep.subr.mxu0 0.0
    %v1746 = vand.u32 %v1266, 4294901760
    %1747 = vmatpush1.msra.mxu0 %v1746
    %1748 = vmatprep.subr.mxu0 0.0
    %v1749 = vand.u32 %v1265, 4294901760
    %1750 = vmatpush1.msra.mxu0 %v1749
    %1751 = vmatprep.subr.mxu0 0.0
    %v1752 = vand.u32 %v1264, 4294901760
    %1753 = vmatpush1.msra.mxu0 %v1752
    %1754 = vmatprep.subr.mxu0 0.0
    %v1755 = vand.u32 %v1263, 4294901760
    %1756 = vmatpush1.msra.mxu0 %v1755
    %1757 = vmatprep.subr.mxu0 0.0
    %v1758 = vand.u32 %v1262, 4294901760
    %1759 = vmatpush1.msra.mxu0 %v1758
    %1760 = vmatprep.subr.mxu0 0.0
    %v1761 = vand.u32 %v1261, 4294901760
    %1762 = vmatpush1.msra.mxu0 %v1761
    %1763 = vmatprep.subr.mxu0 0.0
    %v1764 = vand.u32 %v1260, 4294901760
    %1765 = vmatpush1.msra.mxu0 %v1764
    %1766 = vmatprep.subr.mxu0 0.0
    %v1767 = vand.u32 %v1259, 4294901760
    %1768 = vmatpush1.msra.mxu0 %v1767
    %1769 = vmatprep.subr.mxu0 0.0
    %1770 = vmatpush2.msra.mxu0 0.0
    %1771 = vmatprep.subr.mxu0 0.0
    %1772 = vmatpush2.msra.mxu0 0.0
    %1773 = vmatprep.subr.mxu0 0.0
    %1774 = vmatpush2.msra.mxu0 0.0
    %1775 = vmatprep.subr.mxu0 0.0
    %1776 = vmatpush2.msra.mxu0 0.0
    %1777 = vmatprep.subr.mxu0 0.0
    %1778 = vmatpush2.msra.mxu0 0.0
    %1779 = vmatprep.subr.mxu0 0.0
    %1780 = vmatpush2.msra.mxu0 0.0
    %1781 = vmatprep.subr.mxu0 0.0
    %1782 = vmatpush2.msra.mxu0 0.0
    %1783 = vmatprep.subr.mxu0 0.0
    %1784 = vmatpush2.msra.mxu0 0.0
    %1785 = vmatprep.subr.mxu0 0.0
    %1786 = vmatpush2.msra.mxu0 0.0
    %1787 = vmatprep.subr.mxu0 0.0
    %1788 = vmatpush2.msra.mxu0 0.0
    %1789 = vmatprep.subr.mxu0 0.0
    %1790 = vmatpush2.msra.mxu0 0.0
    %1791 = vmatprep.subr.mxu0 0.0
    %1792 = vmatpush2.msra.mxu0 0.0
    %1793 = vmatprep.subr.mxu0 0.0
    %1794 = vmatpush2.msra.mxu0 0.0
    %1795 = vmatprep.subr.mxu0 0.0
    %1796 = vmatpush2.msra.mxu0 0.0
    %1797 = vmatprep.subr.mxu0 0.0
    %1798 = vmatpush2.msra.mxu0 0.0
    %1799 = vmatprep.subr.mxu0 0.0
    %1800 = vmatpush2.msra.mxu0 0.0
    %1801 = vmatprep.mubr.f32.mxu0 0.0
    %v1802 = vand.u32 %v1269, 4294901760
    %1803 = vmatmul.mubr.f32.gmra.mxu0 %v1802
    %v1804 = vpop.f32.mrf.mxu0
    %v1805 = vadd.f32 %v1726, %v1804
    %v1806 = vpop.f32.mrf.mxu0
    %1807 = vdwg.mxu0
    %v1808 = vld [vmem:[#allocation2] sm:$0x1]
    %v1809 = vadd.f32 %v1808, %v1805
    %1810 = vst [vmem:[#allocation2] sm:$0x1] %v1809
    %s1811 = scalar_lea.vmem %s0, 16
    %v1812 = vld [vmem:[%s1811] sm:$0xff]
    %v1813 = vld [vmem:[%s1811 + $0x8] sm:$0x1f]
    %v1815 = vsel %vm71, %v1813, 0
    %1817 = vmatprep.subr.mxu0 0.0
    %1818 = vmatpush1.msra.mxu0 0.0
    %1819 = vmatprep.subr.mxu0 0.0
    %1820 = vmatpush1.msra.mxu0 0.0
    %1821 = vmatprep.subr.mxu0 0.0
    %1822 = vmatpush1.msra.mxu0 0.0
    %1823 = vmatprep.subr.mxu0 0.0
    %1824 = vmatpush1.msra.mxu0 0.0
    %1825 = vmatprep.subr.mxu0 0.0
    %1826 = vmatpush1.msra.mxu0 0.0
    %1827 = vmatprep.subr.mxu0 0.0
    %1828 = vmatpush1.msra.mxu0 0.0
    %1829 = vmatprep.subr.mxu0 0.0
    %1830 = vmatpush1.msra.mxu0 0.0
    %1831 = vmatprep.subr.mxu0 0.0
    %1832 = vmatpush1.msra.mxu0 0.0
    %1833 = vmatprep.subr.mxu0 0.0
    %1834 = vmatpush1.msra.mxu0 0.0
    %1835 = vmatprep.subr.mxu0 0.0
    %1836 = vmatpush1.msra.mxu0 0.0
    %1837 = vmatprep.subr.mxu0 0.0
    %1838 = vmatpush1.msra.mxu0 0.0
    %1839 = vmatprep.subr.mxu0 0.0
    %1840 = vmatpush1.msra.mxu0 0.0
    %1841 = vmatprep.subr.mxu0 0.0
    %1842 = vmatpush1.msra.mxu0 0.0
    %1843 = vmatprep.subr.mxu0 0.0
    %1844 = vmatpush1.msra.mxu0 0.0
    %1845 = vmatprep.subr.mxu0 0.0
    %v1846 = vand.u32 %v1815, 4294901760
    %1847 = vmatpush1.msra.mxu0 %v1846
    %1848 = vmatprep.subr.mxu0 0.0
    %v1849 = vand.u32 %v1812, 4294901760
    %1850 = vmatpush1.msra.mxu0 %v1849
    %1851 = vmatprep.subr.mxu0 0.0
    %1852 = vmatpush2.msra.mxu0 0.0
    %1853 = vmatprep.subr.mxu0 0.0
    %1854 = vmatpush2.msra.mxu0 0.0
    %1855 = vmatprep.subr.mxu0 0.0
    %1856 = vmatpush2.msra.mxu0 0.0
    %1857 = vmatprep.subr.mxu0 0.0
    %1858 = vmatpush2.msra.mxu0 0.0
    %1859 = vmatprep.subr.mxu0 0.0
    %1860 = vmatpush2.msra.mxu0 0.0
    %1861 = vmatprep.subr.mxu0 0.0
    %1862 = vmatpush2.msra.mxu0 0.0
    %1863 = vmatprep.subr.mxu0 0.0
    %1864 = vmatpush2.msra.mxu0 0.0
    %1865 = vmatprep.subr.mxu0 0.0
    %1866 = vmatpush2.msra.mxu0 0.0
    %1867 = vmatprep.subr.mxu0 0.0
    %1868 = vmatpush2.msra.mxu0 0.0
    %1869 = vmatprep.subr.mxu0 0.0
    %1870 = vmatpush2.msra.mxu0 0.0
    %1871 = vmatprep.subr.mxu0 0.0
    %1872 = vmatpush2.msra.mxu0 0.0
    %1873 = vmatprep.subr.mxu0 0.0
    %1874 = vmatpush2.msra.mxu0 0.0
    %1875 = vmatprep.subr.mxu0 0.0
    %1876 = vmatpush2.msra.mxu0 0.0
    %1877 = vmatprep.subr.mxu0 0.0
    %1878 = vmatpush2.msra.mxu0 0.0
    %1879 = vmatprep.subr.mxu0 0.0
    %1880 = vmatpush2.msra.mxu0 0.0
    %1881 = vmatprep.subr.mxu0 0.0
    %1882 = vmatpush2.msra.mxu0 0.0
    %1883 = vmatprep.mubr.f32.mxu0 0.0
    %v1884 = vand.u32 %v48, 4294901760
    %v1885 = vsub.f32 %v48, %v1884
    %v1886 = vand.u32 %v1885, 4294901760
    %v1887 = vsub.f32 %v1885, %v1886
    %v1888 = vand.u32 %v1887, 4294901760
    %1889 = vmatmul.mubr.f32.gmra.mxu0 %v1888
    %v1890 = vpop.f32.mrf.mxu0
    %v1891 = vadd.f32 0.0, %v1890
    %v1892 = vpop.f32.mrf.mxu0
    %1893 = vmatprep.mubr.f32.mxu0 0.0
    %v1894 = vand.u32 %v51, 4294901760
    %v1895 = vsub.f32 %v51, %v1894
    %v1896 = vand.u32 %v1895, 4294901760
    %v1897 = vsub.f32 %v1895, %v1896
    %v1898 = vand.u32 %v1897, 4294901760
    %1899 = vmatmul.mubr.f32.gmra.mxu0 %v1898
    %v1900 = vpop.f32.mrf.mxu0
    %v1901 = vadd.f32 0.0, %v1900
    %v1902 = vpop.f32.mrf.mxu0
    %1903 = vmatprep.mubr.f32.mxu0 0.0
    %v1904 = vand.u32 %v54, 4294901760
    %v1905 = vsub.f32 %v54, %v1904
    %v1906 = vand.u32 %v1905, 4294901760
    %v1907 = vsub.f32 %v1905, %v1906
    %v1908 = vand.u32 %v1907, 4294901760
    %1909 = vmatmul.mubr.f32.gmra.mxu0 %v1908
    %v1910 = vpop.f32.mrf.mxu0
    %v1911 = vadd.f32 0.0, %v1910
    %v1912 = vpop.f32.mrf.mxu0
    %1913 = vmatprep.mubr.f32.mxu0 0.0
    %v1914 = vand.u32 %v57, 4294901760
    %v1915 = vsub.f32 %v57, %v1914
    %v1916 = vand.u32 %v1915, 4294901760
    %v1917 = vsub.f32 %v1915, %v1916
    %v1918 = vand.u32 %v1917, 4294901760
    %1919 = vmatmul.mubr.f32.gmra.mxu0 %v1918
    %v1920 = vpop.f32.mrf.mxu0
    %v1921 = vadd.f32 0.0, %v1920
    %v1922 = vpop.f32.mrf.mxu0
    %1923 = vmatprep.mubr.f32.mxu0 0.0
    %v1924 = vand.u32 %v60, 4294901760
    %v1925 = vsub.f32 %v60, %v1924
    %v1926 = vand.u32 %v1925, 4294901760
    %v1927 = vsub.f32 %v1925, %v1926
    %v1928 = vand.u32 %v1927, 4294901760
    %1929 = vmatmul.mubr.f32.gmra.mxu0 %v1928
    %v1930 = vpop.f32.mrf.mxu0
    %v1931 = vadd.f32 0.0, %v1930
    %v1932 = vpop.f32.mrf.mxu0
    %1933 = vmatprep.mubr.f32.mxu0 0.0
    %v1934 = vand.u32 %v63, 4294901760
    %v1935 = vsub.f32 %v63, %v1934
    %v1936 = vand.u32 %v1935, 4294901760
    %v1937 = vsub.f32 %v1935, %v1936
    %v1938 = vand.u32 %v1937, 4294901760
    %1939 = vmatmul.mubr.f32.gmra.mxu0 %v1938
    %v1940 = vpop.f32.mrf.mxu0
    %v1941 = vadd.f32 0.0, %v1940
    %v1942 = vpop.f32.mrf.mxu0
    %1943 = vmatprep.mubr.f32.mxu0 0.0
    %v1944 = vand.u32 %v66, 4294901760
    %v1945 = vsub.f32 %v66, %v1944
    %v1946 = vand.u32 %v1945, 4294901760
    %v1947 = vsub.f32 %v1945, %v1946
    %v1948 = vand.u32 %v1947, 4294901760
    %1949 = vmatmul.mubr.f32.gmra.mxu0 %v1948
    %v1950 = vpop.f32.mrf.mxu0
    %v1951 = vadd.f32 0.0, %v1950
    %v1952 = vpop.f32.mrf.mxu0
    %1953 = vmatprep.mubr.f32.mxu0 0.0
    %v1954 = vand.u32 %v69, 4294901760
    %v1955 = vsub.f32 %v69, %v1954
    %v1956 = vand.u32 %v1955, 4294901760
    %v1957 = vsub.f32 %v1955, %v1956
    %v1958 = vand.u32 %v1957, 4294901760
    %1959 = vmatmul.mubr.f32.gmra.mxu0 %v1958
    %v1960 = vpop.f32.mrf.mxu0
    %v1961 = vadd.f32 0.0, %v1960
    %v1962 = vpop.f32.mrf.mxu0
    %1963 = vdwg.mxu0
    %1964 = vmatprep.subr.mxu0 0.0
    %1965 = vmatpush1.msra.mxu0 0.0
    %1966 = vmatprep.subr.mxu0 0.0
    %1967 = vmatpush1.msra.mxu0 0.0
    %1968 = vmatprep.subr.mxu0 0.0
    %1969 = vmatpush1.msra.mxu0 0.0
    %1970 = vmatprep.subr.mxu0 0.0
    %1971 = vmatpush1.msra.mxu0 0.0
    %1972 = vmatprep.subr.mxu0 0.0
    %1973 = vmatpush1.msra.mxu0 0.0
    %1974 = vmatprep.subr.mxu0 0.0
    %1975 = vmatpush1.msra.mxu0 0.0
    %1976 = vmatprep.subr.mxu0 0.0
    %1977 = vmatpush1.msra.mxu0 0.0
    %1978 = vmatprep.subr.mxu0 0.0
    %1979 = vmatpush1.msra.mxu0 0.0
    %1980 = vmatprep.subr.mxu0 0.0
    %1981 = vmatpush1.msra.mxu0 0.0
    %1982 = vmatprep.subr.mxu0 0.0
    %1983 = vmatpush1.msra.mxu0 0.0
    %1984 = vmatprep.subr.mxu0 0.0
    %1985 = vmatpush1.msra.mxu0 0.0
    %1986 = vmatprep.subr.mxu0 0.0
    %1987 = vmatpush1.msra.mxu0 0.0
    %1988 = vmatprep.subr.mxu0 0.0
    %1989 = vmatpush1.msra.mxu0 0.0
    %1990 = vmatprep.subr.mxu0 0.0
    %1991 = vmatpush1.msra.mxu0 0.0
    %1992 = vmatprep.subr.mxu0 0.0
    %v1993 = vand.u32 %v1815, 4294901760
    %v1994 = vsub.f32 %v1815, %v1993
    %v1995 = vand.u32 %v1994, 4294901760
    %v1996 = vsub.f32 %v1994, %v1995
    %v1997 = vand.u32 %v1996, 4294901760
    %1998 = vmatpush1.msra.mxu0 %v1997
    %1999 = vmatprep.subr.mxu0 0.0
    %v2000 = vand.u32 %v1812, 4294901760
    %v2001 = vsub.f32 %v1812, %v2000
    %v2002 = vand.u32 %v2001, 4294901760
    %v2003 = vsub.f32 %v2001, %v2002
    %v2004 = vand.u32 %v2003, 4294901760
    %2005 = vmatpush1.msra.mxu0 %v2004
    %2006 = vmatprep.subr.mxu0 0.0
    %2007 = vmatpush2.msra.mxu0 0.0
    %2008 = vmatprep.subr.mxu0 0.0
    %2009 = vmatpush2.msra.mxu0 0.0
    %2010 = vmatprep.subr.mxu0 0.0
    %2011 = vmatpush2.msra.mxu0 0.0
    %2012 = vmatprep.subr.mxu0 0.0
    %2013 = vmatpush2.msra.mxu0 0.0
    %2014 = vmatprep.subr.mxu0 0.0
    %2015 = vmatpush2.msra.mxu0 0.0
    %2016 = vmatprep.subr.mxu0 0.0
    %2017 = vmatpush2.msra.mxu0 0.0
    %2018 = vmatprep.subr.mxu0 0.0
    %2019 = vmatpush2.msra.mxu0 0.0
    %2020 = vmatprep.subr.mxu0 0.0
    %2021 = vmatpush2.msra.mxu0 0.0
    %2022 = vmatprep.subr.mxu0 0.0
    %2023 = vmatpush2.msra.mxu0 0.0
    %2024 = vmatprep.subr.mxu0 0.0
    %2025 = vmatpush2.msra.mxu0 0.0
    %2026 = vmatprep.subr.mxu0 0.0
    %2027 = vmatpush2.msra.mxu0 0.0
    %2028 = vmatprep.subr.mxu0 0.0
    %2029 = vmatpush2.msra.mxu0 0.0
    %2030 = vmatprep.subr.mxu0 0.0
    %2031 = vmatpush2.msra.mxu0 0.0
    %2032 = vmatprep.subr.mxu0 0.0
    %2033 = vmatpush2.msra.mxu0 0.0
    %2034 = vmatprep.subr.mxu0 0.0
    %2035 = vmatpush2.msra.mxu0 0.0
    %2036 = vmatprep.subr.mxu0 0.0
    %2037 = vmatpush2.msra.mxu0 0.0
    %2038 = vmatprep.mubr.f32.mxu0 0.0
    %v2039 = vand.u32 %v48, 4294901760
    %2040 = vmatmul.mubr.f32.gmra.mxu0 %v2039
    %v2041 = vpop.f32.mrf.mxu0
    %v2042 = vadd.f32 %v1891, %v2041
    %v2043 = vpop.f32.mrf.mxu0
    %2044 = vmatprep.mubr.f32.mxu0 0.0
    %v2045 = vand.u32 %v51, 4294901760
    %2046 = vmatmul.mubr.f32.gmra.mxu0 %v2045
    %v2047 = vpop.f32.mrf.mxu0
    %v2048 = vadd.f32 %v1901, %v2047
    %v2049 = vpop.f32.mrf.mxu0
    %2050 = vmatprep.mubr.f32.mxu0 0.0
    %v2051 = vand.u32 %v54, 4294901760
    %2052 = vmatmul.mubr.f32.gmra.mxu0 %v2051
    %v2053 = vpop.f32.mrf.mxu0
    %v2054 = vadd.f32 %v1911, %v2053
    %v2055 = vpop.f32.mrf.mxu0
    %2056 = vmatprep.mubr.f32.mxu0 0.0
    %v2057 = vand.u32 %v57, 4294901760
    %2058 = vmatmul.mubr.f32.gmra.mxu0 %v2057
    %v2059 = vpop.f32.mrf.mxu0
    %v2060 = vadd.f32 %v1921, %v2059
    %v2061 = vpop.f32.mrf.mxu0
    %2062 = vmatprep.mubr.f32.mxu0 0.0
    %v2063 = vand.u32 %v60, 4294901760
    %2064 = vmatmul.mubr.f32.gmra.mxu0 %v2063
    %v2065 = vpop.f32.mrf.mxu0
    %v2066 = vadd.f32 %v1931, %v2065
    %v2067 = vpop.f32.mrf.mxu0
    %2068 = vmatprep.mubr.f32.mxu0 0.0
    %v2069 = vand.u32 %v63, 4294901760
    %2070 = vmatmul.mubr.f32.gmra.mxu0 %v2069
    %v2071 = vpop.f32.mrf.mxu0
    %v2072 = vadd.f32 %v1941, %v2071
    %v2073 = vpop.f32.mrf.mxu0
    %2074 = vmatprep.mubr.f32.mxu0 0.0
    %v2075 = vand.u32 %v66, 4294901760
    %2076 = vmatmul.mubr.f32.gmra.mxu0 %v2075
    %v2077 = vpop.f32.mrf.mxu0
    %v2078 = vadd.f32 %v1951, %v2077
    %v2079 = vpop.f32.mrf.mxu0
    %2080 = vmatprep.mubr.f32.mxu0 0.0
    %v2081 = vand.u32 %v69, 4294901760
    %2082 = vmatmul.mubr.f32.gmra.mxu0 %v2081
    %v2083 = vpop.f32.mrf.mxu0
    %v2084 = vadd.f32 %v1961, %v2083
    %v2085 = vpop.f32.mrf.mxu0
    %2086 = vdwg.mxu0
    %2087 = vmatprep.subr.mxu0 0.0
    %2088 = vmatpush1.msra.mxu0 0.0
    %2089 = vmatprep.subr.mxu0 0.0
    %2090 = vmatpush1.msra.mxu0 0.0
    %2091 = vmatprep.subr.mxu0 0.0
    %2092 = vmatpush1.msra.mxu0 0.0
    %2093 = vmatprep.subr.mxu0 0.0
    %2094 = vmatpush1.msra.mxu0 0.0
    %2095 = vmatprep.subr.mxu0 0.0
    %2096 = vmatpush1.msra.mxu0 0.0
    %2097 = vmatprep.subr.mxu0 0.0
    %2098 = vmatpush1.msra.mxu0 0.0
    %2099 = vmatprep.subr.mxu0 0.0
    %2100 = vmatpush1.msra.mxu0 0.0
    %2101 = vmatprep.subr.mxu0 0.0
    %2102 = vmatpush1.msra.mxu0 0.0
    %2103 = vmatprep.subr.mxu0 0.0
    %2104 = vmatpush1.msra.mxu0 0.0
    %2105 = vmatprep.subr.mxu0 0.0
    %2106 = vmatpush1.msra.mxu0 0.0
    %2107 = vmatprep.subr.mxu0 0.0
    %2108 = vmatpush1.msra.mxu0 0.0
    %2109 = vmatprep.subr.mxu0 0.0
    %2110 = vmatpush1.msra.mxu0 0.0
    %2111 = vmatprep.subr.mxu0 0.0
    %2112 = vmatpush1.msra.mxu0 0.0
    %2113 = vmatprep.subr.mxu0 0.0
    %2114 = vmatpush1.msra.mxu0 0.0
    %2115 = vmatprep.subr.mxu0 0.0
    %v2116 = vand.u32 %v1815, 4294901760
    %v2117 = vsub.f32 %v1815, %v2116
    %2118 = vmatpush1.msra.mxu0 %v2117
    %2119 = vmatprep.subr.mxu0 0.0
    %v2120 = vand.u32 %v1812, 4294901760
    %v2121 = vsub.f32 %v1812, %v2120
    %2122 = vmatpush1.msra.mxu0 %v2121
    %2123 = vmatprep.subr.mxu0 0.0
    %2124 = vmatpush2.msra.mxu0 0.0
    %2125 = vmatprep.subr.mxu0 0.0
    %2126 = vmatpush2.msra.mxu0 0.0
    %2127 = vmatprep.subr.mxu0 0.0
    %2128 = vmatpush2.msra.mxu0 0.0
    %2129 = vmatprep.subr.mxu0 0.0
    %2130 = vmatpush2.msra.mxu0 0.0
    %2131 = vmatprep.subr.mxu0 0.0
    %2132 = vmatpush2.msra.mxu0 0.0
    %2133 = vmatprep.subr.mxu0 0.0
    %2134 = vmatpush2.msra.mxu0 0.0
    %2135 = vmatprep.subr.mxu0 0.0
    %2136 = vmatpush2.msra.mxu0 0.0
    %2137 = vmatprep.subr.mxu0 0.0
    %2138 = vmatpush2.msra.mxu0 0.0
    %2139 = vmatprep.subr.mxu0 0.0
    %2140 = vmatpush2.msra.mxu0 0.0
    %2141 = vmatprep.subr.mxu0 0.0
    %2142 = vmatpush2.msra.mxu0 0.0
    %2143 = vmatprep.subr.mxu0 0.0
    %2144 = vmatpush2.msra.mxu0 0.0
    %2145 = vmatprep.subr.mxu0 0.0
    %2146 = vmatpush2.msra.mxu0 0.0
    %2147 = vmatprep.subr.mxu0 0.0
    %2148 = vmatpush2.msra.mxu0 0.0
    %2149 = vmatprep.subr.mxu0 0.0
    %2150 = vmatpush2.msra.mxu0 0.0
    %2151 = vmatprep.subr.mxu0 0.0
    %2152 = vmatpush2.msra.mxu0 0.0
    %2153 = vmatprep.subr.mxu0 0.0
    %2154 = vmatpush2.msra.mxu0 0.0
    %2155 = vmatprep.mubr.f32.mxu0 0.0
    %v2156 = vand.u32 %v48, 4294901760
    %v2157 = vsub.f32 %v48, %v2156
    %2158 = vmatmul.mubr.f32.gmra.mxu0 %v2157
    %v2159 = vpop.f32.mrf.mxu0
    %v2160 = vadd.f32 %v2042, %v2159
    %v2161 = vpop.f32.mrf.mxu0
    %2162 = vmatprep.mubr.f32.mxu0 0.0
    %v2163 = vand.u32 %v51, 4294901760
    %v2164 = vsub.f32 %v51, %v2163
    %2165 = vmatmul.mubr.f32.gmra.mxu0 %v2164
    %v2166 = vpop.f32.mrf.mxu0
    %v2167 = vadd.f32 %v2048, %v2166
    %v2168 = vpop.f32.mrf.mxu0
    %2169 = vmatprep.mubr.f32.mxu0 0.0
    %v2170 = vand.u32 %v54, 4294901760
    %v2171 = vsub.f32 %v54, %v2170
    %2172 = vmatmul.mubr.f32.gmra.mxu0 %v2171
    %v2173 = vpop.f32.mrf.mxu0
    %v2174 = vadd.f32 %v2054, %v2173
    %v2175 = vpop.f32.mrf.mxu0
    %2176 = vmatprep.mubr.f32.mxu0 0.0
    %v2177 = vand.u32 %v57, 4294901760
    %v2178 = vsub.f32 %v57, %v2177
    %2179 = vmatmul.mubr.f32.gmra.mxu0 %v2178
    %v2180 = vpop.f32.mrf.mxu0
    %v2181 = vadd.f32 %v2060, %v2180
    %v2182 = vpop.f32.mrf.mxu0
    %2183 = vmatprep.mubr.f32.mxu0 0.0
    %v2184 = vand.u32 %v60, 4294901760
    %v2185 = vsub.f32 %v60, %v2184
    %2186 = vmatmul.mubr.f32.gmra.mxu0 %v2185
    %v2187 = vpop.f32.mrf.mxu0
    %v2188 = vadd.f32 %v2066, %v2187
    %v2189 = vpop.f32.mrf.mxu0
    %2190 = vmatprep.mubr.f32.mxu0 0.0
    %v2191 = vand.u32 %v63, 4294901760
    %v2192 = vsub.f32 %v63, %v2191
    %2193 = vmatmul.mubr.f32.gmra.mxu0 %v2192
    %v2194 = vpop.f32.mrf.mxu0
    %v2195 = vadd.f32 %v2072, %v2194
    %v2196 = vpop.f32.mrf.mxu0
    %2197 = vmatprep.mubr.f32.mxu0 0.0
    %v2198 = vand.u32 %v66, 4294901760
    %v2199 = vsub.f32 %v66, %v2198
    %2200 = vmatmul.mubr.f32.gmra.mxu0 %v2199
    %v2201 = vpop.f32.mrf.mxu0
    %v2202 = vadd.f32 %v2078, %v2201
    %v2203 = vpop.f32.mrf.mxu0
    %2204 = vmatprep.mubr.f32.mxu0 0.0
    %v2205 = vand.u32 %v69, 4294901760
    %v2206 = vsub.f32 %v69, %v2205
    %2207 = vmatmul.mubr.f32.gmra.mxu0 %v2206
    %v2208 = vpop.f32.mrf.mxu0
    %v2209 = vadd.f32 %v2084, %v2208
    %v2210 = vpop.f32.mrf.mxu0
    %2211 = vdwg.mxu0
    %2212 = vmatprep.subr.mxu0 0.0
    %2213 = vmatpush1.msra.mxu0 0.0
    %2214 = vmatprep.subr.mxu0 0.0
    %2215 = vmatpush1.msra.mxu0 0.0
    %2216 = vmatprep.subr.mxu0 0.0
    %2217 = vmatpush1.msra.mxu0 0.0
    %2218 = vmatprep.subr.mxu0 0.0
    %2219 = vmatpush1.msra.mxu0 0.0
    %2220 = vmatprep.subr.mxu0 0.0
    %2221 = vmatpush1.msra.mxu0 0.0
    %2222 = vmatprep.subr.mxu0 0.0
    %2223 = vmatpush1.msra.mxu0 0.0
    %2224 = vmatprep.subr.mxu0 0.0
    %2225 = vmatpush1.msra.mxu0 0.0
    %2226 = vmatprep.subr.mxu0 0.0
    %2227 = vmatpush1.msra.mxu0 0.0
    %2228 = vmatprep.subr.mxu0 0.0
    %2229 = vmatpush1.msra.mxu0 0.0
    %2230 = vmatprep.subr.mxu0 0.0
    %2231 = vmatpush1.msra.mxu0 0.0
    %2232 = vmatprep.subr.mxu0 0.0
    %2233 = vmatpush1.msra.mxu0 0.0
    %2234 = vmatprep.subr.mxu0 0.0
    %2235 = vmatpush1.msra.mxu0 0.0
    %2236 = vmatprep.subr.mxu0 0.0
    %2237 = vmatpush1.msra.mxu0 0.0
    %2238 = vmatprep.subr.mxu0 0.0
    %2239 = vmatpush1.msra.mxu0 0.0
    %2240 = vmatprep.subr.mxu0 0.0
    %v2241 = vand.u32 %v1815, 4294901760
    %2242 = vmatpush1.msra.mxu0 %v2241
    %2243 = vmatprep.subr.mxu0 0.0
    %v2244 = vand.u32 %v1812, 4294901760
    %2245 = vmatpush1.msra.mxu0 %v2244
    %2246 = vmatprep.subr.mxu0 0.0
    %2247 = vmatpush2.msra.mxu0 0.0
    %2248 = vmatprep.subr.mxu0 0.0
    %2249 = vmatpush2.msra.mxu0 0.0
    %2250 = vmatprep.subr.mxu0 0.0
    %2251 = vmatpush2.msra.mxu0 0.0
    %2252 = vmatprep.subr.mxu0 0.0
    %2253 = vmatpush2.msra.mxu0 0.0
    %2254 = vmatprep.subr.mxu0 0.0
    %2255 = vmatpush2.msra.mxu0 0.0
    %2256 = vmatprep.subr.mxu0 0.0
    %2257 = vmatpush2.msra.mxu0 0.0
    %2258 = vmatprep.subr.mxu0 0.0
    %2259 = vmatpush2.msra.mxu0 0.0
    %2260 = vmatprep.subr.mxu0 0.0
    %2261 = vmatpush2.msra.mxu0 0.0
    %2262 = vmatprep.subr.mxu0 0.0
    %2263 = vmatpush2.msra.mxu0 0.0
    %2264 = vmatprep.subr.mxu0 0.0
    %2265 = vmatpush2.msra.mxu0 0.0
    %2266 = vmatprep.subr.mxu0 0.0
    %2267 = vmatpush2.msra.mxu0 0.0
    %2268 = vmatprep.subr.mxu0 0.0
    %2269 = vmatpush2.msra.mxu0 0.0
    %2270 = vmatprep.subr.mxu0 0.0
    %2271 = vmatpush2.msra.mxu0 0.0
    %2272 = vmatprep.subr.mxu0 0.0
    %2273 = vmatpush2.msra.mxu0 0.0
    %2274 = vmatprep.subr.mxu0 0.0
    %2275 = vmatpush2.msra.mxu0 0.0
    %2276 = vmatprep.subr.mxu0 0.0
    %2277 = vmatpush2.msra.mxu0 0.0
    %2278 = vmatprep.mubr.f32.mxu0 0.0
    %v2279 = vand.u32 %v48, 4294901760
    %v2280 = vsub.f32 %v48, %v2279
    %v2281 = vand.u32 %v2280, 4294901760
    %2282 = vmatmul.mubr.f32.gmra.mxu0 %v2281
    %v2283 = vpop.f32.mrf.mxu0
    %v2284 = vadd.f32 %v2160, %v2283
    %v2285 = vpop.f32.mrf.mxu0
    %2286 = vmatprep.mubr.f32.mxu0 0.0
    %v2287 = vand.u32 %v51, 4294901760
    %v2288 = vsub.f32 %v51, %v2287
    %v2289 = vand.u32 %v2288, 4294901760
    %2290 = vmatmul.mubr.f32.gmra.mxu0 %v2289
    %v2291 = vpop.f32.mrf.mxu0
    %v2292 = vadd.f32 %v2167, %v2291
    %v2293 = vpop.f32.mrf.mxu0
    %2294 = vmatprep.mubr.f32.mxu0 0.0
    %v2295 = vand.u32 %v54, 4294901760
    %v2296 = vsub.f32 %v54, %v2295
    %v2297 = vand.u32 %v2296, 4294901760
    %2298 = vmatmul.mubr.f32.gmra.mxu0 %v2297
    %v2299 = vpop.f32.mrf.mxu0
    %v2300 = vadd.f32 %v2174, %v2299
    %v2301 = vpop.f32.mrf.mxu0
    %2302 = vmatprep.mubr.f32.mxu0 0.0
    %v2303 = vand.u32 %v57, 4294901760
    %v2304 = vsub.f32 %v57, %v2303
    %v2305 = vand.u32 %v2304, 4294901760
    %2306 = vmatmul.mubr.f32.gmra.mxu0 %v2305
    %v2307 = vpop.f32.mrf.mxu0
    %v2308 = vadd.f32 %v2181, %v2307
    %v2309 = vpop.f32.mrf.mxu0
    %2310 = vmatprep.mubr.f32.mxu0 0.0
    %v2311 = vand.u32 %v60, 4294901760
    %v2312 = vsub.f32 %v60, %v2311
    %v2313 = vand.u32 %v2312, 4294901760
    %2314 = vmatmul.mubr.f32.gmra.mxu0 %v2313
    %v2315 = vpop.f32.mrf.mxu0
    %v2316 = vadd.f32 %v2188, %v2315
    %v2317 = vpop.f32.mrf.mxu0
    %2318 = vmatprep.mubr.f32.mxu0 0.0
    %v2319 = vand.u32 %v63, 4294901760
    %v2320 = vsub.f32 %v63, %v2319
    %v2321 = vand.u32 %v2320, 4294901760
    %2322 = vmatmul.mubr.f32.gmra.mxu0 %v2321
    %v2323 = vpop.f32.mrf.mxu0
    %v2324 = vadd.f32 %v2195, %v2323
    %v2325 = vpop.f32.mrf.mxu0
    %2326 = vmatprep.mubr.f32.mxu0 0.0
    %v2327 = vand.u32 %v66, 4294901760
    %v2328 = vsub.f32 %v66, %v2327
    %v2329 = vand.u32 %v2328, 4294901760
    %2330 = vmatmul.mubr.f32.gmra.mxu0 %v2329
    %v2331 = vpop.f32.mrf.mxu0
    %v2332 = vadd.f32 %v2202, %v2331
    %v2333 = vpop.f32.mrf.mxu0
    %2334 = vmatprep.mubr.f32.mxu0 0.0
    %v2335 = vand.u32 %v69, 4294901760
    %v2336 = vsub.f32 %v69, %v2335
    %v2337 = vand.u32 %v2336, 4294901760
    %2338 = vmatmul.mubr.f32.gmra.mxu0 %v2337
    %v2339 = vpop.f32.mrf.mxu0
    %v2340 = vadd.f32 %v2209, %v2339
    %v2341 = vpop.f32.mrf.mxu0
    %2342 = vdwg.mxu0
    %2343 = vmatprep.subr.mxu0 0.0
    %2344 = vmatpush1.msra.mxu0 0.0
    %2345 = vmatprep.subr.mxu0 0.0
    %2346 = vmatpush1.msra.mxu0 0.0
    %2347 = vmatprep.subr.mxu0 0.0
    %2348 = vmatpush1.msra.mxu0 0.0
    %2349 = vmatprep.subr.mxu0 0.0
    %2350 = vmatpush1.msra.mxu0 0.0
    %2351 = vmatprep.subr.mxu0 0.0
    %2352 = vmatpush1.msra.mxu0 0.0
    %2353 = vmatprep.subr.mxu0 0.0
    %2354 = vmatpush1.msra.mxu0 0.0
    %2355 = vmatprep.subr.mxu0 0.0
    %2356 = vmatpush1.msra.mxu0 0.0
    %2357 = vmatprep.subr.mxu0 0.0
    %2358 = vmatpush1.msra.mxu0 0.0
    %2359 = vmatprep.subr.mxu0 0.0
    %2360 = vmatpush1.msra.mxu0 0.0
    %2361 = vmatprep.subr.mxu0 0.0
    %2362 = vmatpush1.msra.mxu0 0.0
    %2363 = vmatprep.subr.mxu0 0.0
    %2364 = vmatpush1.msra.mxu0 0.0
    %2365 = vmatprep.subr.mxu0 0.0
    %2366 = vmatpush1.msra.mxu0 0.0
    %2367 = vmatprep.subr.mxu0 0.0
    %2368 = vmatpush1.msra.mxu0 0.0
    %2369 = vmatprep.subr.mxu0 0.0
    %2370 = vmatpush1.msra.mxu0 0.0
    %2371 = vmatprep.subr.mxu0 0.0
    %v2372 = vand.u32 %v1815, 4294901760
    %v2373 = vsub.f32 %v1815, %v2372
    %v2374 = vand.u32 %v2373, 4294901760
    %2375 = vmatpush1.msra.mxu0 %v2374
    %2376 = vmatprep.subr.mxu0 0.0
    %v2377 = vand.u32 %v1812, 4294901760
    %v2378 = vsub.f32 %v1812, %v2377
    %v2379 = vand.u32 %v2378, 4294901760
    %2380 = vmatpush1.msra.mxu0 %v2379
    %2381 = vmatprep.subr.mxu0 0.0
    %2382 = vmatpush2.msra.mxu0 0.0
    %2383 = vmatprep.subr.mxu0 0.0
    %2384 = vmatpush2.msra.mxu0 0.0
    %2385 = vmatprep.subr.mxu0 0.0
    %2386 = vmatpush2.msra.mxu0 0.0
    %2387 = vmatprep.subr.mxu0 0.0
    %2388 = vmatpush2.msra.mxu0 0.0
    %2389 = vmatprep.subr.mxu0 0.0
    %2390 = vmatpush2.msra.mxu0 0.0
    %2391 = vmatprep.subr.mxu0 0.0
    %2392 = vmatpush2.msra.mxu0 0.0
    %2393 = vmatprep.subr.mxu0 0.0
    %2394 = vmatpush2.msra.mxu0 0.0
    %2395 = vmatprep.subr.mxu0 0.0
    %2396 = vmatpush2.msra.mxu0 0.0
    %2397 = vmatprep.subr.mxu0 0.0
    %2398 = vmatpush2.msra.mxu0 0.0
    %2399 = vmatprep.subr.mxu0 0.0
    %2400 = vmatpush2.msra.mxu0 0.0
    %2401 = vmatprep.subr.mxu0 0.0
    %2402 = vmatpush2.msra.mxu0 0.0
    %2403 = vmatprep.subr.mxu0 0.0
    %2404 = vmatpush2.msra.mxu0 0.0
    %2405 = vmatprep.subr.mxu0 0.0
    %2406 = vmatpush2.msra.mxu0 0.0
    %2407 = vmatprep.subr.mxu0 0.0
    %2408 = vmatpush2.msra.mxu0 0.0
    %2409 = vmatprep.subr.mxu0 0.0
    %2410 = vmatpush2.msra.mxu0 0.0
    %2411 = vmatprep.subr.mxu0 0.0
    %2412 = vmatpush2.msra.mxu0 0.0
    %2413 = vmatprep.mubr.f32.mxu0 0.0
    %v2414 = vand.u32 %v48, 4294901760
    %2415 = vmatmul.mubr.f32.gmra.mxu0 %v2414
    %v2416 = vpop.f32.mrf.mxu0
    %v2417 = vadd.f32 %v2284, %v2416
    %v2418 = vpop.f32.mrf.mxu0
    %2419 = vmatprep.mubr.f32.mxu0 0.0
    %v2420 = vand.u32 %v51, 4294901760
    %2421 = vmatmul.mubr.f32.gmra.mxu0 %v2420
    %v2422 = vpop.f32.mrf.mxu0
    %v2423 = vadd.f32 %v2292, %v2422
    %v2424 = vpop.f32.mrf.mxu0
    %2425 = vmatprep.mubr.f32.mxu0 0.0
    %v2426 = vand.u32 %v54, 4294901760
    %2427 = vmatmul.mubr.f32.gmra.mxu0 %v2426
    %v2428 = vpop.f32.mrf.mxu0
    %v2429 = vadd.f32 %v2300, %v2428
    %v2430 = vpop.f32.mrf.mxu0
    %2431 = vmatprep.mubr.f32.mxu0 0.0
    %v2432 = vand.u32 %v57, 4294901760
    %2433 = vmatmul.mubr.f32.gmra.mxu0 %v2432
    %v2434 = vpop.f32.mrf.mxu0
    %v2435 = vadd.f32 %v2308, %v2434
    %v2436 = vpop.f32.mrf.mxu0
    %2437 = vmatprep.mubr.f32.mxu0 0.0
    %v2438 = vand.u32 %v60, 4294901760
    %2439 = vmatmul.mubr.f32.gmra.mxu0 %v2438
    %v2440 = vpop.f32.mrf.mxu0
    %v2441 = vadd.f32 %v2316, %v2440
    %v2442 = vpop.f32.mrf.mxu0
    %2443 = vmatprep.mubr.f32.mxu0 0.0
    %v2444 = vand.u32 %v63, 4294901760
    %2445 = vmatmul.mubr.f32.gmra.mxu0 %v2444
    %v2446 = vpop.f32.mrf.mxu0
    %v2447 = vadd.f32 %v2324, %v2446
    %v2448 = vpop.f32.mrf.mxu0
    %2449 = vmatprep.mubr.f32.mxu0 0.0
    %v2450 = vand.u32 %v66, 4294901760
    %2451 = vmatmul.mubr.f32.gmra.mxu0 %v2450
    %v2452 = vpop.f32.mrf.mxu0
    %v2453 = vadd.f32 %v2332, %v2452
    %v2454 = vpop.f32.mrf.mxu0
    %2455 = vmatprep.mubr.f32.mxu0 0.0
    %v2456 = vand.u32 %v69, 4294901760
    %2457 = vmatmul.mubr.f32.gmra.mxu0 %v2456
    %v2458 = vpop.f32.mrf.mxu0
    %v2459 = vadd.f32 %v2340, %v2458
    %v2460 = vpop.f32.mrf.mxu0
    %2461 = vdwg.mxu0
    %2462 = vmatprep.subr.mxu0 0.0
    %2463 = vmatpush1.msra.mxu0 0.0
    %2464 = vmatprep.subr.mxu0 0.0
    %2465 = vmatpush1.msra.mxu0 0.0
    %2466 = vmatprep.subr.mxu0 0.0
    %2467 = vmatpush1.msra.mxu0 0.0
    %2468 = vmatprep.subr.mxu0 0.0
    %2469 = vmatpush1.msra.mxu0 0.0
    %2470 = vmatprep.subr.mxu0 0.0
    %2471 = vmatpush1.msra.mxu0 0.0
    %2472 = vmatprep.subr.mxu0 0.0
    %2473 = vmatpush1.msra.mxu0 0.0
    %2474 = vmatprep.subr.mxu0 0.0
    %2475 = vmatpush1.msra.mxu0 0.0
    %2476 = vmatprep.subr.mxu0 0.0
    %2477 = vmatpush1.msra.mxu0 0.0
    %2478 = vmatprep.subr.mxu0 0.0
    %2479 = vmatpush1.msra.mxu0 0.0
    %2480 = vmatprep.subr.mxu0 0.0
    %2481 = vmatpush1.msra.mxu0 0.0
    %2482 = vmatprep.subr.mxu0 0.0
    %2483 = vmatpush1.msra.mxu0 0.0
    %2484 = vmatprep.subr.mxu0 0.0
    %2485 = vmatpush1.msra.mxu0 0.0
    %2486 = vmatprep.subr.mxu0 0.0
    %2487 = vmatpush1.msra.mxu0 0.0
    %2488 = vmatprep.subr.mxu0 0.0
    %2489 = vmatpush1.msra.mxu0 0.0
    %2490 = vmatprep.subr.mxu0 0.0
    %v2491 = vand.u32 %v1815, 4294901760
    %2492 = vmatpush1.msra.mxu0 %v2491
    %2493 = vmatprep.subr.mxu0 0.0
    %v2494 = vand.u32 %v1812, 4294901760
    %2495 = vmatpush1.msra.mxu0 %v2494
    %2496 = vmatprep.subr.mxu0 0.0
    %2497 = vmatpush2.msra.mxu0 0.0
    %2498 = vmatprep.subr.mxu0 0.0
    %2499 = vmatpush2.msra.mxu0 0.0
    %2500 = vmatprep.subr.mxu0 0.0
    %2501 = vmatpush2.msra.mxu0 0.0
    %2502 = vmatprep.subr.mxu0 0.0
    %2503 = vmatpush2.msra.mxu0 0.0
    %2504 = vmatprep.subr.mxu0 0.0
    %2505 = vmatpush2.msra.mxu0 0.0
    %2506 = vmatprep.subr.mxu0 0.0
    %2507 = vmatpush2.msra.mxu0 0.0
    %2508 = vmatprep.subr.mxu0 0.0
    %2509 = vmatpush2.msra.mxu0 0.0
    %2510 = vmatprep.subr.mxu0 0.0
    %2511 = vmatpush2.msra.mxu0 0.0
    %2512 = vmatprep.subr.mxu0 0.0
    %2513 = vmatpush2.msra.mxu0 0.0
    %2514 = vmatprep.subr.mxu0 0.0
    %2515 = vmatpush2.msra.mxu0 0.0
    %2516 = vmatprep.subr.mxu0 0.0
    %2517 = vmatpush2.msra.mxu0 0.0
    %2518 = vmatprep.subr.mxu0 0.0
    %2519 = vmatpush2.msra.mxu0 0.0
    %2520 = vmatprep.subr.mxu0 0.0
    %2521 = vmatpush2.msra.mxu0 0.0
    %2522 = vmatprep.subr.mxu0 0.0
    %2523 = vmatpush2.msra.mxu0 0.0
    %2524 = vmatprep.subr.mxu0 0.0
    %2525 = vmatpush2.msra.mxu0 0.0
    %2526 = vmatprep.subr.mxu0 0.0
    %2527 = vmatpush2.msra.mxu0 0.0
    %2528 = vmatprep.mubr.f32.mxu0 0.0
    %v2529 = vand.u32 %v48, 4294901760
    %2530 = vmatmul.mubr.f32.gmra.mxu0 %v2529
    %v2531 = vpop.f32.mrf.mxu0
    %v2532 = vadd.f32 %v2417, %v2531
    %v2533 = vpop.f32.mrf.mxu0
    %2534 = vmatprep.mubr.f32.mxu0 0.0
    %v2535 = vand.u32 %v51, 4294901760
    %2536 = vmatmul.mubr.f32.gmra.mxu0 %v2535
    %v2537 = vpop.f32.mrf.mxu0
    %v2538 = vadd.f32 %v2423, %v2537
    %v2539 = vpop.f32.mrf.mxu0
    %2540 = vmatprep.mubr.f32.mxu0 0.0
    %v2541 = vand.u32 %v54, 4294901760
    %2542 = vmatmul.mubr.f32.gmra.mxu0 %v2541
    %v2543 = vpop.f32.mrf.mxu0
    %v2544 = vadd.f32 %v2429, %v2543
    %v2545 = vpop.f32.mrf.mxu0
    %2546 = vmatprep.mubr.f32.mxu0 0.0
    %v2547 = vand.u32 %v57, 4294901760
    %2548 = vmatmul.mubr.f32.gmra.mxu0 %v2547
    %v2549 = vpop.f32.mrf.mxu0
    %v2550 = vadd.f32 %v2435, %v2549
    %v2551 = vpop.f32.mrf.mxu0
    %2552 = vmatprep.mubr.f32.mxu0 0.0
    %v2553 = vand.u32 %v60, 4294901760
    %2554 = vmatmul.mubr.f32.gmra.mxu0 %v2553
    %v2555 = vpop.f32.mrf.mxu0
    %v2556 = vadd.f32 %v2441, %v2555
    %v2557 = vpop.f32.mrf.mxu0
    %2558 = vmatprep.mubr.f32.mxu0 0.0
    %v2559 = vand.u32 %v63, 4294901760
    %2560 = vmatmul.mubr.f32.gmra.mxu0 %v2559
    %v2561 = vpop.f32.mrf.mxu0
    %v2562 = vadd.f32 %v2447, %v2561
    %v2563 = vpop.f32.mrf.mxu0
    %2564 = vmatprep.mubr.f32.mxu0 0.0
    %v2565 = vand.u32 %v66, 4294901760
    %2566 = vmatmul.mubr.f32.gmra.mxu0 %v2565
    %v2567 = vpop.f32.mrf.mxu0
    %v2568 = vadd.f32 %v2453, %v2567
    %v2569 = vpop.f32.mrf.mxu0
    %2570 = vmatprep.mubr.f32.mxu0 0.0
    %v2571 = vand.u32 %v69, 4294901760
    %2572 = vmatmul.mubr.f32.gmra.mxu0 %v2571
    %v2573 = vpop.f32.mrf.mxu0
    %v2574 = vadd.f32 %v2459, %v2573
    %v2575 = vpop.f32.mrf.mxu0
    %2576 = vdwg.mxu0
    %v2577 = vlaneseq
    %v2578 = vshrl.u32 %v2577, 7
    %v2579 = vsub.s32 1, %v2578
    %v2580 = vrot.slane %v1813, %v2579
    %vm2581 = vcmp.gt.f32.partialorder %v2580, %v842
    %vm2582 = vcmp.gt.f32.partialorder %v2580, %v847
    %vm2583 = vcmp.gt.f32.partialorder %v2580, %v852
    %vm2584 = vcmp.gt.f32.partialorder %v2580, %v857
    %vm2585 = vcmp.gt.f32.partialorder %v2580, %v862
    %vm2586 = vcmp.gt.f32.partialorder %v2580, %v867
    %vm2587 = vcmp.gt.f32.partialorder %v2580, %v872
    %vm2588 = vcmp.gt.f32.partialorder %v2580, %v877
    %vm2589 = vcmp.lt.f32.partialorder %v2580, %v889
    %vm2590 = vcmp.lt.f32.partialorder %v2580, %v893
    %vm2591 = vcmp.lt.f32.partialorder %v2580, %v897
    %vm2592 = vcmp.lt.f32.partialorder %v2580, %v901
    %vm2593 = vcmp.lt.f32.partialorder %v2580, %v905
    %vm2594 = vcmp.lt.f32.partialorder %v2580, %v909
    %vm2595 = vcmp.lt.f32.partialorder %v2580, %v913
    %vm2596 = vcmp.lt.f32.partialorder %v2580, %v917
    %vm2597 = vmand %vm2581, %vm2589
    %vm2598 = vmand %vm2582, %vm2590
    %vm2599 = vmand %vm2583, %vm2591
    %vm2600 = vmand %vm2584, %vm2592
    %vm2601 = vmand %vm2585, %vm2593
    %vm2602 = vmand %vm2586, %vm2594
    %vm2603 = vmand %vm2587, %vm2595
    %vm2604 = vmand %vm2588, %vm2596
    %v2605 = vlaneseq
    %v2606 = vshrl.u32 %v2605, 7
    %v2607 = vsub.s32 2, %v2606
    %v2608 = vrot.slane %v1813, %v2607
    %vm2609 = vcmp.gt.f32.partialorder %v2608, %v941
    %vm2610 = vcmp.gt.f32.partialorder %v2608, %v945
    %vm2611 = vcmp.gt.f32.partialorder %v2608, %v949
    %vm2612 = vcmp.gt.f32.partialorder %v2608, %v953
    %vm2613 = vcmp.gt.f32.partialorder %v2608, %v957
    %vm2614 = vcmp.gt.f32.partialorder %v2608, %v961
    %vm2615 = vcmp.gt.f32.partialorder %v2608, %v965
    %vm2616 = vcmp.gt.f32.partialorder %v2608, %v969
    %vm2617 = vmand %vm2597, %vm2609
    %vm2618 = vmand %vm2598, %vm2610
    %vm2619 = vmand %vm2599, %vm2611
    %vm2620 = vmand %vm2600, %vm2612
    %vm2621 = vmand %vm2601, %vm2613
    %vm2622 = vmand %vm2602, %vm2614
    %vm2623 = vmand %vm2603, %vm2615
    %vm2624 = vmand %vm2604, %vm2616
    %vm2625 = vcmp.lt.f32.partialorder %v2608, %v989
    %vm2626 = vcmp.lt.f32.partialorder %v2608, %v993
    %vm2627 = vcmp.lt.f32.partialorder %v2608, %v997
    %vm2628 = vcmp.lt.f32.partialorder %v2608, %v1001
    %vm2629 = vcmp.lt.f32.partialorder %v2608, %v1005
    %vm2630 = vcmp.lt.f32.partialorder %v2608, %v1009
    %vm2631 = vcmp.lt.f32.partialorder %v2608, %v1013
    %vm2632 = vcmp.lt.f32.partialorder %v2608, %v1017
    %vm2633 = vmand %vm2617, %vm2625
    %vm2634 = vmand %vm2618, %vm2626
    %vm2635 = vmand %vm2619, %vm2627
    %vm2636 = vmand %vm2620, %vm2628
    %vm2637 = vmand %vm2621, %vm2629
    %vm2638 = vmand %vm2622, %vm2630
    %vm2639 = vmand %vm2623, %vm2631
    %vm2640 = vmand %vm2624, %vm2632
    %v2641 = vlaneseq
    %v2642 = vshrl.u32 %v2641, 7
    %v2643 = vsub.s32 3, %v2642
    %v2644 = vrot.slane %v1813, %v2643
    %vm2645 = vcmp.gt.f32.partialorder %v2644, %v1041
    %vm2646 = vcmp.gt.f32.partialorder %v2644, %v1045
    %vm2647 = vcmp.gt.f32.partialorder %v2644, %v1049
    %vm2648 = vcmp.gt.f32.partialorder %v2644, %v1053
    %vm2649 = vcmp.gt.f32.partialorder %v2644, %v1057
    %vm2650 = vcmp.gt.f32.partialorder %v2644, %v1061
    %vm2651 = vcmp.gt.f32.partialorder %v2644, %v1065
    %vm2652 = vcmp.gt.f32.partialorder %v2644, %v1069
    %vm2653 = vmand %vm2633, %vm2645
    %vm2654 = vmand %vm2634, %vm2646
    %vm2655 = vmand %vm2635, %vm2647
    %vm2656 = vmand %vm2636, %vm2648
    %vm2657 = vmand %vm2637, %vm2649
    %vm2658 = vmand %vm2638, %vm2650
    %vm2659 = vmand %vm2639, %vm2651
    %vm2660 = vmand %vm2640, %vm2652
    %vm2661 = vcmp.lt.f32.partialorder %v2644, %v1089
    %vm2662 = vcmp.lt.f32.partialorder %v2644, %v1093
    %vm2663 = vcmp.lt.f32.partialorder %v2644, %v1097
    %vm2664 = vcmp.lt.f32.partialorder %v2644, %v1101
    %vm2665 = vcmp.lt.f32.partialorder %v2644, %v1105
    %vm2666 = vcmp.lt.f32.partialorder %v2644, %v1109
    %vm2667 = vcmp.lt.f32.partialorder %v2644, %v1113
    %vm2668 = vcmp.lt.f32.partialorder %v2644, %v1117
    %vm2669 = vmand %vm2653, %vm2661
    %vm2670 = vmand %vm2654, %vm2662
    %vm2671 = vmand %vm2655, %vm2663
    %vm2672 = vmand %vm2656, %vm2664
    %vm2673 = vmand %vm2657, %vm2665
    %vm2674 = vmand %vm2658, %vm2666
    %vm2675 = vmand %vm2659, %vm2667
    %vm2676 = vmand %vm2660, %vm2668
    %v2677 = vlaneseq
    %v2678 = vshrl.u32 %v2677, 7
    %v2679 = vsub.s32 4, %v2678
    %v2680 = vrot.slane %v1813, %v2679
    %vm2681 = vcmp.gt.f32.partialorder %v2680, %v1141
    %vm2682 = vcmp.gt.f32.partialorder %v2680, %v1145
    %vm2683 = vcmp.gt.f32.partialorder %v2680, %v1149
    %vm2684 = vcmp.gt.f32.partialorder %v2680, %v1153
    %vm2685 = vcmp.gt.f32.partialorder %v2680, %v1157
    %vm2686 = vcmp.gt.f32.partialorder %v2680, %v1161
    %vm2687 = vcmp.gt.f32.partialorder %v2680, %v1165
    %vm2688 = vcmp.gt.f32.partialorder %v2680, %v1169
    %vm2689 = vmand %vm2669, %vm2681
    %vm2690 = vmand %vm2670, %vm2682
    %vm2691 = vmand %vm2671, %vm2683
    %vm2692 = vmand %vm2672, %vm2684
    %vm2693 = vmand %vm2673, %vm2685
    %vm2694 = vmand %vm2674, %vm2686
    %vm2695 = vmand %vm2675, %vm2687
    %vm2696 = vmand %vm2676, %vm2688
    %vm2697 = vcmp.lt.f32.partialorder %v2680, %v1189
    %vm2698 = vcmp.lt.f32.partialorder %v2680, %v1193
    %vm2699 = vcmp.lt.f32.partialorder %v2680, %v1197
    %vm2700 = vcmp.lt.f32.partialorder %v2680, %v1201
    %vm2701 = vcmp.lt.f32.partialorder %v2680, %v1205
    %vm2702 = vcmp.lt.f32.partialorder %v2680, %v1209
    %vm2703 = vcmp.lt.f32.partialorder %v2680, %v1213
    %vm2704 = vcmp.lt.f32.partialorder %v2680, %v1217
    %vm2705 = vmand %vm2689, %vm2697
    %vm2706 = vmand %vm2690, %vm2698
    %vm2707 = vmand %vm2691, %vm2699
    %vm2708 = vmand %vm2692, %vm2700
    %vm2709 = vmand %vm2693, %vm2701
    %vm2710 = vmand %vm2694, %vm2702
    %vm2711 = vmand %vm2695, %vm2703
    %vm2712 = vmand %vm2696, %vm2704
    %v2713 = vsub.f32 0.0, %v2532
    %v2714 = vsub.f32 0.0, %v2538
    %v2715 = vsub.f32 0.0, %v2544
    %v2716 = vsub.f32 0.0, %v2550
    %v2717 = vsub.f32 0.0, %v2556
    %v2718 = vsub.f32 0.0, %v2562
    %v2719 = vsub.f32 0.0, %v2568
    %v2720 = vsub.f32 0.0, %v2574
    %v2721 = vmul.f32 %v2713, 1.442695
    %v2722 = vpow.pop %v2721
    %v2723 = vmul.f32 %v2714, 1.442695
    %v2724 = vpow.pop %v2723
    %v2725 = vmul.f32 %v2715, 1.442695
    %v2726 = vpow.pop %v2725
    %v2727 = vmul.f32 %v2716, 1.442695
    %v2728 = vpow.pop %v2727
    %v2729 = vmul.f32 %v2717, 1.442695
    %v2730 = vpow.pop %v2729
    %v2731 = vmul.f32 %v2718, 1.442695
    %v2732 = vpow.pop %v2731
    %v2733 = vmul.f32 %v2719, 1.442695
    %v2734 = vpow.pop %v2733
    %v2735 = vmul.f32 %v2720, 1.442695
    %v2736 = vpow.pop %v2735
    %v2737 = vsel %vm2705, %v2722, 0.0
    %v2738 = vsel %vm2706, %v2724, 0.0
    %v2739 = vsel %vm2707, %v2726, 0.0
    %v2740 = vsel %vm2708, %v2728, 0.0
    %v2741 = vsel %vm2709, %v2730, 0.0
    %v2742 = vsel %vm2710, %v2732, 0.0
    %v2743 = vsel %vm2711, %v2734, 0.0
    %v2744 = vsel %vm2712, %v2736, 0.0
    %2745 = vmatprep.subr.mxu0 0.0
    %2746 = vmatpush1.msra.mxu0 0.0
    %2747 = vmatprep.subr.mxu0 0.0
    %2748 = vmatpush1.msra.mxu0 0.0
    %2749 = vmatprep.subr.mxu0 0.0
    %2750 = vmatpush1.msra.mxu0 0.0
    %2751 = vmatprep.subr.mxu0 0.0
    %2752 = vmatpush1.msra.mxu0 0.0
    %2753 = vmatprep.subr.mxu0 0.0
    %2754 = vmatpush1.msra.mxu0 0.0
    %2755 = vmatprep.subr.mxu0 0.0
    %2756 = vmatpush1.msra.mxu0 0.0
    %2757 = vmatprep.subr.mxu0 0.0
    %2758 = vmatpush1.msra.mxu0 0.0
    %2759 = vmatprep.subr.mxu0 0.0
    %2760 = vmatpush1.msra.mxu0 0.0
    %2761 = vmatprep.subr.mxu0 0.0
    %v2762 = vand.u32 %v2744, 4294901760
    %2763 = vmatpush1.msra.mxu0 %v2762
    %2764 = vmatprep.subr.mxu0 0.0
    %v2765 = vand.u32 %v2743, 4294901760
    %2766 = vmatpush1.msra.mxu0 %v2765
    %2767 = vmatprep.subr.mxu0 0.0
    %v2768 = vand.u32 %v2742, 4294901760
    %2769 = vmatpush1.msra.mxu0 %v2768
    %2770 = vmatprep.subr.mxu0 0.0
    %v2771 = vand.u32 %v2741, 4294901760
    %2772 = vmatpush1.msra.mxu0 %v2771
    %2773 = vmatprep.subr.mxu0 0.0
    %v2774 = vand.u32 %v2740, 4294901760
    %2775 = vmatpush1.msra.mxu0 %v2774
    %2776 = vmatprep.subr.mxu0 0.0
    %v2777 = vand.u32 %v2739, 4294901760
    %2778 = vmatpush1.msra.mxu0 %v2777
    %2779 = vmatprep.subr.mxu0 0.0
    %v2780 = vand.u32 %v2738, 4294901760
    %2781 = vmatpush1.msra.mxu0 %v2780
    %2782 = vmatprep.subr.mxu0 0.0
    %v2783 = vand.u32 %v2737, 4294901760
    %2784 = vmatpush1.msra.mxu0 %v2783
    %2785 = vmatprep.subr.mxu0 0.0
    %2786 = vmatpush2.msra.mxu0 0.0
    %2787 = vmatprep.subr.mxu0 0.0
    %2788 = vmatpush2.msra.mxu0 0.0
    %2789 = vmatprep.subr.mxu0 0.0
    %2790 = vmatpush2.msra.mxu0 0.0
    %2791 = vmatprep.subr.mxu0 0.0
    %2792 = vmatpush2.msra.mxu0 0.0
    %2793 = vmatprep.subr.mxu0 0.0
    %2794 = vmatpush2.msra.mxu0 0.0
    %2795 = vmatprep.subr.mxu0 0.0
    %2796 = vmatpush2.msra.mxu0 0.0
    %2797 = vmatprep.subr.mxu0 0.0
    %2798 = vmatpush2.msra.mxu0 0.0
    %2799 = vmatprep.subr.mxu0 0.0
    %2800 = vmatpush2.msra.mxu0 0.0
    %2801 = vmatprep.subr.mxu0 0.0
    %2802 = vmatpush2.msra.mxu0 0.0
    %2803 = vmatprep.subr.mxu0 0.0
    %2804 = vmatpush2.msra.mxu0 0.0
    %2805 = vmatprep.subr.mxu0 0.0
    %2806 = vmatpush2.msra.mxu0 0.0
    %2807 = vmatprep.subr.mxu0 0.0
    %2808 = vmatpush2.msra.mxu0 0.0
    %2809 = vmatprep.subr.mxu0 0.0
    %2810 = vmatpush2.msra.mxu0 0.0
    %2811 = vmatprep.subr.mxu0 0.0
    %2812 = vmatpush2.msra.mxu0 0.0
    %2813 = vmatprep.subr.mxu0 0.0
    %2814 = vmatpush2.msra.mxu0 0.0
    %2815 = vmatprep.subr.mxu0 0.0
    %2816 = vmatpush2.msra.mxu0 0.0
    %2817 = vmatprep.mubr.f32.mxu0 0.0
    %v2818 = vand.u32 %v1269, 4294901760
    %v2819 = vsub.f32 %v1269, %v2818
    %v2820 = vand.u32 %v2819, 4294901760
    %v2821 = vsub.f32 %v2819, %v2820
    %v2822 = vand.u32 %v2821, 4294901760
    %2823 = vmatmul.mubr.f32.gmra.mxu0 %v2822
    %v2824 = vpop.f32.mrf.mxu0
    %v2825 = vadd.f32 0.0, %v2824
    %v2826 = vpop.f32.mrf.mxu0
    %2827 = vdwg.mxu0
    %2828 = vmatprep.subr.mxu0 0.0
    %2829 = vmatpush1.msra.mxu0 0.0
    %2830 = vmatprep.subr.mxu0 0.0
    %2831 = vmatpush1.msra.mxu0 0.0
    %2832 = vmatprep.subr.mxu0 0.0
    %2833 = vmatpush1.msra.mxu0 0.0
    %2834 = vmatprep.subr.mxu0 0.0
    %2835 = vmatpush1.msra.mxu0 0.0
    %2836 = vmatprep.subr.mxu0 0.0
    %2837 = vmatpush1.msra.mxu0 0.0
    %2838 = vmatprep.subr.mxu0 0.0
    %2839 = vmatpush1.msra.mxu0 0.0
    %2840 = vmatprep.subr.mxu0 0.0
    %2841 = vmatpush1.msra.mxu0 0.0
    %2842 = vmatprep.subr.mxu0 0.0
    %2843 = vmatpush1.msra.mxu0 0.0
    %2844 = vmatprep.subr.mxu0 0.0
    %v2845 = vand.u32 %v2744, 4294901760
    %v2846 = vsub.f32 %v2744, %v2845
    %v2847 = vand.u32 %v2846, 4294901760
    %v2848 = vsub.f32 %v2846, %v2847
    %v2849 = vand.u32 %v2848, 4294901760
    %2850 = vmatpush1.msra.mxu0 %v2849
    %2851 = vmatprep.subr.mxu0 0.0
    %v2852 = vand.u32 %v2743, 4294901760
    %v2853 = vsub.f32 %v2743, %v2852
    %v2854 = vand.u32 %v2853, 4294901760
    %v2855 = vsub.f32 %v2853, %v2854
    %v2856 = vand.u32 %v2855, 4294901760
    %2857 = vmatpush1.msra.mxu0 %v2856
    %2858 = vmatprep.subr.mxu0 0.0
    %v2859 = vand.u32 %v2742, 4294901760
    %v2860 = vsub.f32 %v2742, %v2859
    %v2861 = vand.u32 %v2860, 4294901760
    %v2862 = vsub.f32 %v2860, %v2861
    %v2863 = vand.u32 %v2862, 4294901760
    %2864 = vmatpush1.msra.mxu0 %v2863
    %2865 = vmatprep.subr.mxu0 0.0
    %v2866 = vand.u32 %v2741, 4294901760
    %v2867 = vsub.f32 %v2741, %v2866
    %v2868 = vand.u32 %v2867, 4294901760
    %v2869 = vsub.f32 %v2867, %v2868
    %v2870 = vand.u32 %v2869, 4294901760
    %2871 = vmatpush1.msra.mxu0 %v2870
    %2872 = vmatprep.subr.mxu0 0.0
    %v2873 = vand.u32 %v2740, 4294901760
    %v2874 = vsub.f32 %v2740, %v2873
    %v2875 = vand.u32 %v2874, 4294901760
    %v2876 = vsub.f32 %v2874, %v2875
    %v2877 = vand.u32 %v2876, 4294901760
    %2878 = vmatpush1.msra.mxu0 %v2877
    %2879 = vmatprep.subr.mxu0 0.0
    %v2880 = vand.u32 %v2739, 4294901760
    %v2881 = vsub.f32 %v2739, %v2880
    %v2882 = vand.u32 %v2881, 4294901760
    %v2883 = vsub.f32 %v2881, %v2882
    %v2884 = vand.u32 %v2883, 4294901760
    %2885 = vmatpush1.msra.mxu0 %v2884
    %2886 = vmatprep.subr.mxu0 0.0
    %v2887 = vand.u32 %v2738, 4294901760
    %v2888 = vsub.f32 %v2738, %v2887
    %v2889 = vand.u32 %v2888, 4294901760
    %v2890 = vsub.f32 %v2888, %v2889
    %v2891 = vand.u32 %v2890, 4294901760
    %2892 = vmatpush1.msra.mxu0 %v2891
    %2893 = vmatprep.subr.mxu0 0.0
    %v2894 = vand.u32 %v2737, 4294901760
    %v2895 = vsub.f32 %v2737, %v2894
    %v2896 = vand.u32 %v2895, 4294901760
    %v2897 = vsub.f32 %v2895, %v2896
    %v2898 = vand.u32 %v2897, 4294901760
    %2899 = vmatpush1.msra.mxu0 %v2898
    %2900 = vmatprep.subr.mxu0 0.0
    %2901 = vmatpush2.msra.mxu0 0.0
    %2902 = vmatprep.subr.mxu0 0.0
    %2903 = vmatpush2.msra.mxu0 0.0
    %2904 = vmatprep.subr.mxu0 0.0
    %2905 = vmatpush2.msra.mxu0 0.0
    %2906 = vmatprep.subr.mxu0 0.0
    %2907 = vmatpush2.msra.mxu0 0.0
    %2908 = vmatprep.subr.mxu0 0.0
    %2909 = vmatpush2.msra.mxu0 0.0
    %2910 = vmatprep.subr.mxu0 0.0
    %2911 = vmatpush2.msra.mxu0 0.0
    %2912 = vmatprep.subr.mxu0 0.0
    %2913 = vmatpush2.msra.mxu0 0.0
    %2914 = vmatprep.subr.mxu0 0.0
    %2915 = vmatpush2.msra.mxu0 0.0
    %2916 = vmatprep.subr.mxu0 0.0
    %2917 = vmatpush2.msra.mxu0 0.0
    %2918 = vmatprep.subr.mxu0 0.0
    %2919 = vmatpush2.msra.mxu0 0.0
    %2920 = vmatprep.subr.mxu0 0.0
    %2921 = vmatpush2.msra.mxu0 0.0
    %2922 = vmatprep.subr.mxu0 0.0
    %2923 = vmatpush2.msra.mxu0 0.0
    %2924 = vmatprep.subr.mxu0 0.0
    %2925 = vmatpush2.msra.mxu0 0.0
    %2926 = vmatprep.subr.mxu0 0.0
    %2927 = vmatpush2.msra.mxu0 0.0
    %2928 = vmatprep.subr.mxu0 0.0
    %2929 = vmatpush2.msra.mxu0 0.0
    %2930 = vmatprep.subr.mxu0 0.0
    %2931 = vmatpush2.msra.mxu0 0.0
    %2932 = vmatprep.mubr.f32.mxu0 0.0
    %v2933 = vand.u32 %v1269, 4294901760
    %2934 = vmatmul.mubr.f32.gmra.mxu0 %v2933
    %v2935 = vpop.f32.mrf.mxu0
    %v2936 = vadd.f32 %v2825, %v2935
    %v2937 = vpop.f32.mrf.mxu0
    %2938 = vdwg.mxu0
    %2939 = vmatprep.subr.mxu0 0.0
    %2940 = vmatpush1.msra.mxu0 0.0
    %2941 = vmatprep.subr.mxu0 0.0
    %2942 = vmatpush1.msra.mxu0 0.0
    %2943 = vmatprep.subr.mxu0 0.0
    %2944 = vmatpush1.msra.mxu0 0.0
    %2945 = vmatprep.subr.mxu0 0.0
    %2946 = vmatpush1.msra.mxu0 0.0
    %2947 = vmatprep.subr.mxu0 0.0
    %2948 = vmatpush1.msra.mxu0 0.0
    %2949 = vmatprep.subr.mxu0 0.0
    %2950 = vmatpush1.msra.mxu0 0.0
    %2951 = vmatprep.subr.mxu0 0.0
    %2952 = vmatpush1.msra.mxu0 0.0
    %2953 = vmatprep.subr.mxu0 0.0
    %2954 = vmatpush1.msra.mxu0 0.0
    %2955 = vmatprep.subr.mxu0 0.0
    %v2956 = vand.u32 %v2744, 4294901760
    %v2957 = vsub.f32 %v2744, %v2956
    %2958 = vmatpush1.msra.mxu0 %v2957
    %2959 = vmatprep.subr.mxu0 0.0
    %v2960 = vand.u32 %v2743, 4294901760
    %v2961 = vsub.f32 %v2743, %v2960
    %2962 = vmatpush1.msra.mxu0 %v2961
    %2963 = vmatprep.subr.mxu0 0.0
    %v2964 = vand.u32 %v2742, 4294901760
    %v2965 = vsub.f32 %v2742, %v2964
    %2966 = vmatpush1.msra.mxu0 %v2965
    %2967 = vmatprep.subr.mxu0 0.0
    %v2968 = vand.u32 %v2741, 4294901760
    %v2969 = vsub.f32 %v2741, %v2968
    %2970 = vmatpush1.msra.mxu0 %v2969
    %2971 = vmatprep.subr.mxu0 0.0
    %v2972 = vand.u32 %v2740, 4294901760
    %v2973 = vsub.f32 %v2740, %v2972
    %2974 = vmatpush1.msra.mxu0 %v2973
    %2975 = vmatprep.subr.mxu0 0.0
    %v2976 = vand.u32 %v2739, 4294901760
    %v2977 = vsub.f32 %v2739, %v2976
    %2978 = vmatpush1.msra.mxu0 %v2977
    %2979 = vmatprep.subr.mxu0 0.0
    %v2980 = vand.u32 %v2738, 4294901760
    %v2981 = vsub.f32 %v2738, %v2980
    %2982 = vmatpush1.msra.mxu0 %v2981
    %2983 = vmatprep.subr.mxu0 0.0
    %v2984 = vand.u32 %v2737, 4294901760
    %v2985 = vsub.f32 %v2737, %v2984
    %2986 = vmatpush1.msra.mxu0 %v2985
    %2987 = vmatprep.subr.mxu0 0.0
    %2988 = vmatpush2.msra.mxu0 0.0
    %2989 = vmatprep.subr.mxu0 0.0
    %2990 = vmatpush2.msra.mxu0 0.0
    %2991 = vmatprep.subr.mxu0 0.0
    %2992 = vmatpush2.msra.mxu0 0.0
    %2993 = vmatprep.subr.mxu0 0.0
    %2994 = vmatpush2.msra.mxu0 0.0
    %2995 = vmatprep.subr.mxu0 0.0
    %2996 = vmatpush2.msra.mxu0 0.0
    %2997 = vmatprep.subr.mxu0 0.0
    %2998 = vmatpush2.msra.mxu0 0.0
    %2999 = vmatprep.subr.mxu0 0.0
    %3000 = vmatpush2.msra.mxu0 0.0
    %3001 = vmatprep.subr.mxu0 0.0
    %3002 = vmatpush2.msra.mxu0 0.0
    %3003 = vmatprep.subr.mxu0 0.0
    %3004 = vmatpush2.msra.mxu0 0.0
    %3005 = vmatprep.subr.mxu0 0.0
    %3006 = vmatpush2.msra.mxu0 0.0
    %3007 = vmatprep.subr.mxu0 0.0
    %3008 = vmatpush2.msra.mxu0 0.0
    %3009 = vmatprep.subr.mxu0 0.0
    %3010 = vmatpush2.msra.mxu0 0.0
    %3011 = vmatprep.subr.mxu0 0.0
    %3012 = vmatpush2.msra.mxu0 0.0
    %3013 = vmatprep.subr.mxu0 0.0
    %3014 = vmatpush2.msra.mxu0 0.0
    %3015 = vmatprep.subr.mxu0 0.0
    %3016 = vmatpush2.msra.mxu0 0.0
    %3017 = vmatprep.subr.mxu0 0.0
    %3018 = vmatpush2.msra.mxu0 0.0
    %3019 = vmatprep.mubr.f32.mxu0 0.0
    %v3020 = vand.u32 %v1269, 4294901760
    %v3021 = vsub.f32 %v1269, %v3020
    %3022 = vmatmul.mubr.f32.gmra.mxu0 %v3021
    %v3023 = vpop.f32.mrf.mxu0
    %v3024 = vadd.f32 %v2936, %v3023
    %v3025 = vpop.f32.mrf.mxu0
    %3026 = vdwg.mxu0
    %3027 = vmatprep.subr.mxu0 0.0
    %3028 = vmatpush1.msra.mxu0 0.0
    %3029 = vmatprep.subr.mxu0 0.0
    %3030 = vmatpush1.msra.mxu0 0.0
    %3031 = vmatprep.subr.mxu0 0.0
    %3032 = vmatpush1.msra.mxu0 0.0
    %3033 = vmatprep.subr.mxu0 0.0
    %3034 = vmatpush1.msra.mxu0 0.0
    %3035 = vmatprep.subr.mxu0 0.0
    %3036 = vmatpush1.msra.mxu0 0.0
    %3037 = vmatprep.subr.mxu0 0.0
    %3038 = vmatpush1.msra.mxu0 0.0
    %3039 = vmatprep.subr.mxu0 0.0
    %3040 = vmatpush1.msra.mxu0 0.0
    %3041 = vmatprep.subr.mxu0 0.0
    %3042 = vmatpush1.msra.mxu0 0.0
    %3043 = vmatprep.subr.mxu0 0.0
    %v3044 = vand.u32 %v2744, 4294901760
    %3045 = vmatpush1.msra.mxu0 %v3044
    %3046 = vmatprep.subr.mxu0 0.0
    %v3047 = vand.u32 %v2743, 4294901760
    %3048 = vmatpush1.msra.mxu0 %v3047
    %3049 = vmatprep.subr.mxu0 0.0
    %v3050 = vand.u32 %v2742, 4294901760
    %3051 = vmatpush1.msra.mxu0 %v3050
    %3052 = vmatprep.subr.mxu0 0.0
    %v3053 = vand.u32 %v2741, 4294901760
    %3054 = vmatpush1.msra.mxu0 %v3053
    %3055 = vmatprep.subr.mxu0 0.0
    %v3056 = vand.u32 %v2740, 4294901760
    %3057 = vmatpush1.msra.mxu0 %v3056
    %3058 = vmatprep.subr.mxu0 0.0
    %v3059 = vand.u32 %v2739, 4294901760
    %3060 = vmatpush1.msra.mxu0 %v3059
    %3061 = vmatprep.subr.mxu0 0.0
    %v3062 = vand.u32 %v2738, 4294901760
    %3063 = vmatpush1.msra.mxu0 %v3062
    %3064 = vmatprep.subr.mxu0 0.0
    %v3065 = vand.u32 %v2737, 4294901760
    %3066 = vmatpush1.msra.mxu0 %v3065
    %3067 = vmatprep.subr.mxu0 0.0
    %3068 = vmatpush2.msra.mxu0 0.0
    %3069 = vmatprep.subr.mxu0 0.0
    %3070 = vmatpush2.msra.mxu0 0.0
    %3071 = vmatprep.subr.mxu0 0.0
    %3072 = vmatpush2.msra.mxu0 0.0
    %3073 = vmatprep.subr.mxu0 0.0
    %3074 = vmatpush2.msra.mxu0 0.0
    %3075 = vmatprep.subr.mxu0 0.0
    %3076 = vmatpush2.msra.mxu0 0.0
    %3077 = vmatprep.subr.mxu0 0.0
    %3078 = vmatpush2.msra.mxu0 0.0
    %3079 = vmatprep.subr.mxu0 0.0
    %3080 = vmatpush2.msra.mxu0 0.0
    %3081 = vmatprep.subr.mxu0 0.0
    %3082 = vmatpush2.msra.mxu0 0.0
    %3083 = vmatprep.subr.mxu0 0.0
    %3084 = vmatpush2.msra.mxu0 0.0
    %3085 = vmatprep.subr.mxu0 0.0
    %3086 = vmatpush2.msra.mxu0 0.0
    %3087 = vmatprep.subr.mxu0 0.0
    %3088 = vmatpush2.msra.mxu0 0.0
    %3089 = vmatprep.subr.mxu0 0.0
    %3090 = vmatpush2.msra.mxu0 0.0
    %3091 = vmatprep.subr.mxu0 0.0
    %3092 = vmatpush2.msra.mxu0 0.0
    %3093 = vmatprep.subr.mxu0 0.0
    %3094 = vmatpush2.msra.mxu0 0.0
    %3095 = vmatprep.subr.mxu0 0.0
    %3096 = vmatpush2.msra.mxu0 0.0
    %3097 = vmatprep.subr.mxu0 0.0
    %3098 = vmatpush2.msra.mxu0 0.0
    %3099 = vmatprep.mubr.f32.mxu0 0.0
    %v3100 = vand.u32 %v1269, 4294901760
    %v3101 = vsub.f32 %v1269, %v3100
    %v3102 = vand.u32 %v3101, 4294901760
    %3103 = vmatmul.mubr.f32.gmra.mxu0 %v3102
    %v3104 = vpop.f32.mrf.mxu0
    %v3105 = vadd.f32 %v3024, %v3104
    %v3106 = vpop.f32.mrf.mxu0
    %3107 = vdwg.mxu0
    %3108 = vmatprep.subr.mxu0 0.0
    %3109 = vmatpush1.msra.mxu0 0.0
    %3110 = vmatprep.subr.mxu0 0.0
    %3111 = vmatpush1.msra.mxu0 0.0
    %3112 = vmatprep.subr.mxu0 0.0
    %3113 = vmatpush1.msra.mxu0 0.0
    %3114 = vmatprep.subr.mxu0 0.0
    %3115 = vmatpush1.msra.mxu0 0.0
    %3116 = vmatprep.subr.mxu0 0.0
    %3117 = vmatpush1.msra.mxu0 0.0
    %3118 = vmatprep.subr.mxu0 0.0
    %3119 = vmatpush1.msra.mxu0 0.0
    %3120 = vmatprep.subr.mxu0 0.0
    %3121 = vmatpush1.msra.mxu0 0.0
    %3122 = vmatprep.subr.mxu0 0.0
    %3123 = vmatpush1.msra.mxu0 0.0
    %3124 = vmatprep.subr.mxu0 0.0
    %v3125 = vand.u32 %v2744, 4294901760
    %v3126 = vsub.f32 %v2744, %v3125
    %v3127 = vand.u32 %v3126, 4294901760
    %3128 = vmatpush1.msra.mxu0 %v3127
    %3129 = vmatprep.subr.mxu0 0.0
    %v3130 = vand.u32 %v2743, 4294901760
    %v3131 = vsub.f32 %v2743, %v3130
    %v3132 = vand.u32 %v3131, 4294901760
    %3133 = vmatpush1.msra.mxu0 %v3132
    %3134 = vmatprep.subr.mxu0 0.0
    %v3135 = vand.u32 %v2742, 4294901760
    %v3136 = vsub.f32 %v2742, %v3135
    %v3137 = vand.u32 %v3136, 4294901760
    %3138 = vmatpush1.msra.mxu0 %v3137
    %3139 = vmatprep.subr.mxu0 0.0
    %v3140 = vand.u32 %v2741, 4294901760
    %v3141 = vsub.f32 %v2741, %v3140
    %v3142 = vand.u32 %v3141, 4294901760
    %3143 = vmatpush1.msra.mxu0 %v3142
    %3144 = vmatprep.subr.mxu0 0.0
    %v3145 = vand.u32 %v2740, 4294901760
    %v3146 = vsub.f32 %v2740, %v3145
    %v3147 = vand.u32 %v3146, 4294901760
    %3148 = vmatpush1.msra.mxu0 %v3147
    %3149 = vmatprep.subr.mxu0 0.0
    %v3150 = vand.u32 %v2739, 4294901760
    %v3151 = vsub.f32 %v2739, %v3150
    %v3152 = vand.u32 %v3151, 4294901760
    %3153 = vmatpush1.msra.mxu0 %v3152
    %3154 = vmatprep.subr.mxu0 0.0
    %v3155 = vand.u32 %v2738, 4294901760
    %v3156 = vsub.f32 %v2738, %v3155
    %v3157 = vand.u32 %v3156, 4294901760
    %3158 = vmatpush1.msra.mxu0 %v3157
    %3159 = vmatprep.subr.mxu0 0.0
    %v3160 = vand.u32 %v2737, 4294901760
    %v3161 = vsub.f32 %v2737, %v3160
    %v3162 = vand.u32 %v3161, 4294901760
    %3163 = vmatpush1.msra.mxu0 %v3162
    %3164 = vmatprep.subr.mxu0 0.0
    %3165 = vmatpush2.msra.mxu0 0.0
    %3166 = vmatprep.subr.mxu0 0.0
    %3167 = vmatpush2.msra.mxu0 0.0
    %3168 = vmatprep.subr.mxu0 0.0
    %3169 = vmatpush2.msra.mxu0 0.0
    %3170 = vmatprep.subr.mxu0 0.0
    %3171 = vmatpush2.msra.mxu0 0.0
    %3172 = vmatprep.subr.mxu0 0.0
    %3173 = vmatpush2.msra.mxu0 0.0
    %3174 = vmatprep.subr.mxu0 0.0
    %3175 = vmatpush2.msra.mxu0 0.0
    %3176 = vmatprep.subr.mxu0 0.0
    %3177 = vmatpush2.msra.mxu0 0.0
    %3178 = vmatprep.subr.mxu0 0.0
    %3179 = vmatpush2.msra.mxu0 0.0
    %3180 = vmatprep.subr.mxu0 0.0
    %3181 = vmatpush2.msra.mxu0 0.0
    %3182 = vmatprep.subr.mxu0 0.0
    %3183 = vmatpush2.msra.mxu0 0.0
    %3184 = vmatprep.subr.mxu0 0.0
    %3185 = vmatpush2.msra.mxu0 0.0
    %3186 = vmatprep.subr.mxu0 0.0
    %3187 = vmatpush2.msra.mxu0 0.0
    %3188 = vmatprep.subr.mxu0 0.0
    %3189 = vmatpush2.msra.mxu0 0.0
    %3190 = vmatprep.subr.mxu0 0.0
    %3191 = vmatpush2.msra.mxu0 0.0
    %3192 = vmatprep.subr.mxu0 0.0
    %3193 = vmatpush2.msra.mxu0 0.0
    %3194 = vmatprep.subr.mxu0 0.0
    %3195 = vmatpush2.msra.mxu0 0.0
    %3196 = vmatprep.mubr.f32.mxu0 0.0
    %v3197 = vand.u32 %v1269, 4294901760
    %3198 = vmatmul.mubr.f32.gmra.mxu0 %v3197
    %v3199 = vpop.f32.mrf.mxu0
    %v3200 = vadd.f32 %v3105, %v3199
    %v3201 = vpop.f32.mrf.mxu0
    %3202 = vdwg.mxu0
    %3203 = vmatprep.subr.mxu0 0.0
    %3204 = vmatpush1.msra.mxu0 0.0
    %3205 = vmatprep.subr.mxu0 0.0
    %3206 = vmatpush1.msra.mxu0 0.0
    %3207 = vmatprep.subr.mxu0 0.0
    %3208 = vmatpush1.msra.mxu0 0.0
    %3209 = vmatprep.subr.mxu0 0.0
    %3210 = vmatpush1.msra.mxu0 0.0
    %3211 = vmatprep.subr.mxu0 0.0
    %3212 = vmatpush1.msra.mxu0 0.0
    %3213 = vmatprep.subr.mxu0 0.0
    %3214 = vmatpush1.msra.mxu0 0.0
    %3215 = vmatprep.subr.mxu0 0.0
    %3216 = vmatpush1.msra.mxu0 0.0
    %3217 = vmatprep.subr.mxu0 0.0
    %3218 = vmatpush1.msra.mxu0 0.0
    %3219 = vmatprep.subr.mxu0 0.0
    %v3220 = vand.u32 %v2744, 4294901760
    %3221 = vmatpush1.msra.mxu0 %v3220
    %3222 = vmatprep.subr.mxu0 0.0
    %v3223 = vand.u32 %v2743, 4294901760
    %3224 = vmatpush1.msra.mxu0 %v3223
    %3225 = vmatprep.subr.mxu0 0.0
    %v3226 = vand.u32 %v2742, 4294901760
    %3227 = vmatpush1.msra.mxu0 %v3226
    %3228 = vmatprep.subr.mxu0 0.0
    %v3229 = vand.u32 %v2741, 4294901760
    %3230 = vmatpush1.msra.mxu0 %v3229
    %3231 = vmatprep.subr.mxu0 0.0
    %v3232 = vand.u32 %v2740, 4294901760
    %3233 = vmatpush1.msra.mxu0 %v3232
    %3234 = vmatprep.subr.mxu0 0.0
    %v3235 = vand.u32 %v2739, 4294901760
    %3236 = vmatpush1.msra.mxu0 %v3235
    %3237 = vmatprep.subr.mxu0 0.0
    %v3238 = vand.u32 %v2738, 4294901760
    %3239 = vmatpush1.msra.mxu0 %v3238
    %3240 = vmatprep.subr.mxu0 0.0
    %v3241 = vand.u32 %v2737, 4294901760
    %3242 = vmatpush1.msra.mxu0 %v3241
    %3243 = vmatprep.subr.mxu0 0.0
    %3244 = vmatpush2.msra.mxu0 0.0
    %3245 = vmatprep.subr.mxu0 0.0
    %3246 = vmatpush2.msra.mxu0 0.0
    %3247 = vmatprep.subr.mxu0 0.0
    %3248 = vmatpush2.msra.mxu0 0.0
    %3249 = vmatprep.subr.mxu0 0.0
    %3250 = vmatpush2.msra.mxu0 0.0
    %3251 = vmatprep.subr.mxu0 0.0
    %3252 = vmatpush2.msra.mxu0 0.0
    %3253 = vmatprep.subr.mxu0 0.0
    %3254 = vmatpush2.msra.mxu0 0.0
    %3255 = vmatprep.subr.mxu0 0.0
    %3256 = vmatpush2.msra.mxu0 0.0
    %3257 = vmatprep.subr.mxu0 0.0
    %3258 = vmatpush2.msra.mxu0 0.0
    %3259 = vmatprep.subr.mxu0 0.0
    %3260 = vmatpush2.msra.mxu0 0.0
    %3261 = vmatprep.subr.mxu0 0.0
    %3262 = vmatpush2.msra.mxu0 0.0
    %3263 = vmatprep.subr.mxu0 0.0
    %3264 = vmatpush2.msra.mxu0 0.0
    %3265 = vmatprep.subr.mxu0 0.0
    %3266 = vmatpush2.msra.mxu0 0.0
    %3267 = vmatprep.subr.mxu0 0.0
    %3268 = vmatpush2.msra.mxu0 0.0
    %3269 = vmatprep.subr.mxu0 0.0
    %3270 = vmatpush2.msra.mxu0 0.0
    %3271 = vmatprep.subr.mxu0 0.0
    %3272 = vmatpush2.msra.mxu0 0.0
    %3273 = vmatprep.subr.mxu0 0.0
    %3274 = vmatpush2.msra.mxu0 0.0
    %3275 = vmatprep.mubr.f32.mxu0 0.0
    %v3276 = vand.u32 %v1269, 4294901760
    %3277 = vmatmul.mubr.f32.gmra.mxu0 %v3276
    %v3278 = vpop.f32.mrf.mxu0
    %v3279 = vadd.f32 %v3200, %v3278
    %v3280 = vpop.f32.mrf.mxu0
    %3281 = vdwg.mxu0
    %s3282 = scalar_lea.vmem [#allocation2], 1
    %v3283 = vld [vmem:[%s3282] sm:$0x1]
    %v3284 = vadd.f32 %v3283, %v3279
    %3285 = vst [vmem:[%s3282] sm:$0x1] %v3284
    %vm3286 = vmor %vm1227, %vm2705
    %vm3287 = vmor %vm1228, %vm2706
    %vm3288 = vmor %vm1229, %vm2707
    %vm3289 = vmor %vm1230, %vm2708
    %vm3290 = vmor %vm1231, %vm2709
    %vm3291 = vmor %vm1232, %vm2710
    %vm3292 = vmor %vm1233, %vm2711
    %vm3293 = vmor %vm1234, %vm2712
    %v3294 = vsel %vm3286, 1, 0
    %v3295 = vsel %vm3287, 1, 0
    %v3296 = vsel %vm3288, 1, 0
    %v3297 = vsel %vm3289, 1, 0
    %v3298 = vsel %vm3290, 1, 0
    %v3299 = vsel %vm3291, 1, 0
    %v3300 = vsel %vm3292, 1, 0
    %v3301 = vsel %vm3293, 1, 0
    %v3302 = vcvt.s32.f32 %v3294
    %v3303 = vcvt.s32.f32 %v3295
    %v3304 = vcvt.s32.f32 %v3296
    %v3305 = vcvt.s32.f32 %v3297
    %v3306 = vcvt.s32.f32 %v3298
    %v3307 = vcvt.s32.f32 %v3299
    %v3308 = vcvt.s32.f32 %v3300
    %v3309 = vcvt.s32.f32 %v3301
    %3310 = vxpose.xlu0.b32.start [1/16] %v3302, 128
    %3311 = vxpose.xlu0.b32.cont [2/16] %v3303, 128
    %3312 = vxpose.xlu0.b32.cont [3/16] %v3304, 128
    %3313 = vxpose.xlu0.b32.cont [4/16] %v3305, 128
    %3314 = vxpose.xlu0.b32.cont [5/16] %v3306, 128
    %3315 = vxpose.xlu0.b32.cont [6/16] %v3307, 128
    %3316 = vxpose.xlu0.b32.cont [7/16] %v3308, 128
    %3317 = vxpose.xlu0.b32.cont [8/16] %v3309, 128
    %3318 = vxpose.xlu0.b32.cont [9/16] 0.0, 128
    %3319 = vxpose.xlu0.b32.cont [10/16] 0.0, 128
    %3320 = vxpose.xlu0.b32.cont [11/16] 0.0, 128
    %3321 = vxpose.xlu0.b32.cont [12/16] 0.0, 128
    %3322 = vxpose.xlu0.b32.cont [13/16] 0.0, 128
    %3323 = vxpose.xlu0.b32.cont [14/16] 0.0, 128
    %3324 = vxpose.xlu0.b32.cont [15/16] 0.0, 128
    %3325 = vxpose.xlu0.b32.end [16/16] 0.0, 128
    %v3326 = vpop.trf.xlu0
    %v3327 = vpop.trf.xlu0
    %v3328 = vpop.trf.xlu0
    %v3329 = vpop.trf.xlu0
    %v3330 = vpop.trf.xlu0
    %v3331 = vpop.trf.xlu0
    %v3332 = vpop.trf.xlu0
    %v3333 = vpop.trf.xlu0
    %v3334 = vpop.trf.xlu0
    %v3335 = vpop.trf.xlu0
    %v3336 = vpop.trf.xlu0
    %v3337 = vpop.trf.xlu0
    %v3338 = vpop.trf.xlu0
    %v3339 = vpop.trf.xlu0
    %v3340 = vpop.trf.xlu0
    %v3341 = vpop.trf.xlu0
    %v3342 = vsel %vm1267, %v3326, -inf
    %v3343 = vsel %vm1267, %v3327, -inf
    %v3344 = vsel %vm1267, %v3328, -inf
    %v3345 = vsel %vm1267, %v3329, -inf
    %v3346 = vsel %vm1267, %v3330, -inf
    %v3347 = vmax.f32 %v3342, %v3346
    %v3348 = vsel %vm1267, %v3331, -inf
    %v3349 = vmax.f32 %v3343, %v3348
    %v3350 = vsel %vm1267, %v3332, -inf
    %v3351 = vmax.f32 %v3344, %v3350
    %v3352 = vsel %vm1267, %v3333, -inf
    %v3353 = vmax.f32 %v3345, %v3352
    %v3354 = vsel %vm1267, %v3334, -inf
    %v3355 = vmax.f32 %v3347, %v3354
    %v3356 = vsel %vm1267, %v3335, -inf
    %v3357 = vmax.f32 %v3349, %v3356
    %v3358 = vsel %vm1267, %v3336, -inf
    %v3359 = vmax.f32 %v3351, %v3358
    %v3360 = vsel %vm1267, %v3337, -inf
    %v3361 = vmax.f32 %v3353, %v3360
    %v3362 = vsel %vm1267, %v3338, -inf
    %v3363 = vmax.f32 %v3355, %v3362
    %v3364 = vsel %vm1267, %v3339, -inf
    %v3365 = vmax.f32 %v3357, %v3364
    %v3366 = vsel %vm1267, %v3340, -inf
    %v3367 = vmax.f32 %v3359, %v3366
    %v3368 = vsel %vm1267, %v3341, -inf
    %v3369 = vmax.f32 %v3361, %v3368
    %v3370 = vmax.f32 %v3363, %v3365
    %v3371 = vmax.f32 %v3367, %v3369
    %v3372 = vmax.f32 %v3370, %v3371
    %v3373 = vrot.slane %v3372, 4
    %v3374 = vmax.f32 %v3372, %v3373
    %v3375 = vrot.slane %v3374, 2
    %v3376 = vmax.f32 %v3374, %v3375
    %v3377 = vrot.slane %v3376, 1
    %v3378 = vmax.f32 %v3376, %v3377
    %vm3379 = vcmask 516096
    %3380 = vst.msk [vmem:[#allocation4] sm:$0x1] %vm3379, %v3378
    // Predicated region
    $region22: #{tpu_custom_call.1} parent=1 // pred_check
      _
    $region23: #{tpu_custom_call.1} parent=1 // pred_check_branch
      %3382 = sbr.rel (0) target = $region25
    $region24: #{tpu_custom_call.1} parent=1 // pred_region
      %s3384 = ssub.s32 32, 32
      %3385 = vsyncadd [#allocation3], %s3384
      %s3386 = sshll.u32 [#allocation2], 4
      %s3387 = int_to_ptr.vmem [resolvable:$true] %s3386
      %3392 = dma.vmem_to_hbm [thread:$0]  %s3387, 32, %s4, [#allocation3], 16, 16, 1
    $region25: #{tpu_custom_call.1} parent=1 // pred_fallthru
      _
    // Predicated region
    $region26: #{tpu_custom_call.1} parent=1 // pred_check
      _
    $region27: #{tpu_custom_call.1} parent=1 // pred_check_branch
      %3394 = sbr.rel (0) target = $region29
    $region28: #{tpu_custom_call.1} parent=1 // pred_region
      %s3396 = ssub.s32 16, 16
      %3397 = vsyncadd [#allocation5], %s3396
      %s3399 = sshll.u32 [#allocation4], 4
      %s3400 = int_to_ptr.vmem [resolvable:$true] %s3399
      %3402 = dma.vmem_to_hbm [thread:$0]  %s3400, 16, %s5, [#allocation5]
    $region29: #{tpu_custom_call.1} parent=1 // pred_fallthru
      _
    // Predicated region
    $region30: #{tpu_custom_call.1} parent=1 // pred_check
      _
    $region31: #{tpu_custom_call.1} parent=1 // pred_check_branch
      %3404 = sbr.rel (0) target = $region33
    $region32: #{tpu_custom_call.1} parent=1 // pred_region
      %3405 = dma.done [#allocation3], 32
    $region33: #{tpu_custom_call.1} parent=1 // pred_fallthru
      _
    // Predicated region
    $region34: #{tpu_custom_call.1} parent=1 // pred_check
      _
    $region35: #{tpu_custom_call.1} parent=1 // pred_check_branch
      %3407 = sbr.rel (0) target = $region37
    $region36: #{tpu_custom_call.1} parent=1 // pred_region
      %3408 = dma.done [#allocation5], 16
    $region37: #{tpu_custom_call.1} parent=1 // pred_fallthru
      _
    %3409 = vsyncpa [#allocation3], 1
    %3410 = vsyncpa [#allocation5], 1

</llo_original>
